<compile_context>
chip_gen: v7x
topology: tpu7x:2x2x1
jax: 0.10.0
libtpu: 0.0.40
codegen_flags: <defaults>
</compile_context>

<pallas_src>
import functools
import math

import jax
import jax.numpy as jnp
from jax import lax
from jax.experimental import pallas as pl
from jax.experimental.pallas import tpu as pltpu


def _pick_vmem_limit():
    """Per-generation scoped-VMEM budget (review: <=~48 MiB on v7x, larger on v5e/v6e)."""
    try:
        kind = jax.devices()[0].device_kind.lower()
    except Exception:
        kind = ""
    if "v7" in kind:
        return 48 * 1024 * 1024          # v7x: 64 MiB physical, leave headroom
    if "v5" in kind or "v6" in kind or "v4" in kind:
        return 64 * 1024 * 1024          # 128 MiB physical
    return 32 * 1024 * 1024              # conservative default (older / unknown)


_VMEM_LIMIT = _pick_vmem_limit()


def _tile(dim, want, align):
    """Largest block size <= `want` that divides `dim` and is a multiple of `align`;
    falls back to the full dim (always a legal block shape).  Never exceeds `want` for
    dims > want unless no aligned divisor exists, so tile sizes stay VMEM-bounded."""
    if dim <= want:
        return dim
    t = (want // align) * align
    while t >= align:
        if dim % t == 0:
            return t
        t -= align
    return dim


# --------------------------- tiled linear (bias + optional relu) -------------

def _linear_kernel(x_ref, w_ref, b_ref, o_ref, acc_ref, *, activation):
    @pl.when(pl.program_id(2) == 0)
    def _():
        acc_ref[...] = jnp.zeros_like(acc_ref)

    acc_ref[...] += jnp.dot(x_ref[...], w_ref[...],
                            preferred_element_type=jnp.float32)

    @pl.when(pl.program_id(2) == pl.num_programs(2) - 1)
    def _():
        y = acc_ref[...] + b_ref[...]
        if activation == "relu":
            y = jnp.maximum(y, 0.0)
        o_ref[...] = y.astype(o_ref.dtype)


def pallas_linear(x2d, w, b, activation=None, out_dtype=jnp.bfloat16,
                  tm=256, tn=512, tk=1024):
    M, K = x2d.shape
    _, N = w.shape
    tm, tn, tk = _tile(M, tm, 8), _tile(N, tn, 128), _tile(K, tk, 128)
    kern = functools.partial(_linear_kernel, activation=activation)
    return pl.pallas_call(
        kern,
        out_shape=jax.ShapeDtypeStruct((M, N), out_dtype),
        grid=(M // tm, N // tn, K // tk),
        in_specs=[
            pl.BlockSpec((tm, tk), lambda i, j, k: (i, k)),
            pl.BlockSpec((tk, tn), lambda i, j, k: (k, j)),
            pl.BlockSpec((1, tn), lambda i, j, k: (0, j)),
        ],
        out_specs=pl.BlockSpec((tm, tn), lambda i, j, k: (i, j)),
        scratch_shapes=[pltpu.VMEM((tm, tn), jnp.float32)],
        compiler_params=pltpu.CompilerParams(
            dimension_semantics=("parallel", "parallel", "arbitrary"),
            vmem_limit_bytes=_VMEM_LIMIT),
    )(x2d, w, b)


# ---------------- linear with fused bias + residual + LayerNorm epilogue -----
# Used for the attention output projection: out = LN(x @ w + b + res).
# N == d_model is untiled so the LN statistics see the full feature row.

def _linear_res_ln_kernel(x_ref, w_ref, b_ref, r_ref, g_ref, bt_ref, o_ref,
                          acc_ref, *, eps):
    @pl.when(pl.program_id(1) == 0)
    def _():
        acc_ref[...] = jnp.zeros_like(acc_ref)

    acc_ref[...] += jnp.dot(x_ref[...], w_ref[...],
                            preferred_element_type=jnp.float32)

    @pl.when(pl.program_id(1) == pl.num_programs(1) - 1)
    def _():
        y = acc_ref[...] + b_ref[...] + r_ref[...].astype(jnp.float32)
        mean = jnp.mean(y, axis=-1, keepdims=True)
        var = jnp.mean((y - mean) ** 2, axis=-1, keepdims=True)   # unbiased=False
        xhat = (y - mean) * lax.rsqrt(var + eps)
        o_ref[...] = (xhat * g_ref[...] + bt_ref[...]).astype(o_ref.dtype)


def pallas_linear_res_ln(x2d, w, b, res2d, gamma, beta, eps=1e-12, tm=256, tk=1024):
    # eps=1e-12 matches the reference repo's custom LayerNorm.
    M, K = x2d.shape
    D = w.shape[1]
    tm, tk = _tile(M, tm, 8), _tile(K, tk, 128)
    kern = functools.partial(_linear_res_ln_kernel, eps=eps)
    return pl.pallas_call(
        kern,
        out_shape=jax.ShapeDtypeStruct((M, D), jnp.bfloat16),
        grid=(M // tm, K // tk),
        in_specs=[
            pl.BlockSpec((tm, tk), lambda i, k: (i, k)),
            pl.BlockSpec((tk, D), lambda i, k: (k, 0)),
            pl.BlockSpec((1, D), lambda i, k: (0, 0)),
            pl.BlockSpec((tm, D), lambda i, k: (i, 0)),
            pl.BlockSpec((1, D), lambda i, k: (0, 0)),
            pl.BlockSpec((1, D), lambda i, k: (0, 0)),
        ],
        out_specs=pl.BlockSpec((tm, D), lambda i, k: (i, 0)),
        scratch_shapes=[pltpu.VMEM((tm, D), jnp.float32)],
        compiler_params=pltpu.CompilerParams(
            dimension_semantics=("parallel", "arbitrary"),
            vmem_limit_bytes=_VMEM_LIMIT),
    )(x2d, w, b, res2d, gamma, beta)


# ---------------- FFN, F-tiled, with fused residual + LayerNorm epilogue -----
# out = LN(relu(x @ w1 + b1) @ w2 + b2 + res); grid axis over ffn_hidden keeps the
# per-step weight VMEM bounded for any hidden size (no resident weights).

def _ffn_res_ln_kernel(x_ref, w1_ref, b1_ref, w2_ref, b2_ref, r_ref, g_ref,
                       bt_ref, o_ref, acc_ref, *, eps):
    j = pl.program_id(1)

    @pl.when(j == 0)
    def _():
        acc_ref[...] = jnp.zeros_like(acc_ref)

    h = jnp.dot(x_ref[...], w1_ref[...],
                preferred_element_type=jnp.float32) + b1_ref[...]
    h = jnp.maximum(h, 0.0).astype(x_ref.dtype)            # bf16 back into the MXU
    acc_ref[...] += jnp.dot(h, w2_ref[...], preferred_element_type=jnp.float32)

    @pl.when(j == pl.num_programs(1) - 1)
    def _():
        y = acc_ref[...] + b2_ref[...] + r_ref[...].astype(jnp.float32)
        mean = jnp.mean(y, axis=-1, keepdims=True)
        var = jnp.mean((y - mean) ** 2, axis=-1, keepdims=True)
        xhat = (y - mean) * lax.rsqrt(var + eps)
        o_ref[...] = (xhat * g_ref[...] + bt_ref[...]).astype(o_ref.dtype)


def pallas_ffn_res_ln(x2d, w1, b1, w2, b2, res2d, gamma, beta, eps=1e-12,
                      tm=256, tf=512):
    M, D = x2d.shape
    F = w1.shape[1]
    tm, tf = _tile(M, tm, 8), _tile(F, tf, 128)
    kern = functools.partial(_ffn_res_ln_kernel, eps=eps)
    return pl.pallas_call(
        kern,
        out_shape=jax.ShapeDtypeStruct((M, D), jnp.bfloat16),
        grid=(M // tm, F // tf),
        in_specs=[
            pl.BlockSpec((tm, D), lambda i, j: (i, 0)),
            pl.BlockSpec((D, tf), lambda i, j: (0, j)),
            pl.BlockSpec((1, tf), lambda i, j: (0, j)),
            pl.BlockSpec((tf, D), lambda i, j: (j, 0)),
            pl.BlockSpec((1, D), lambda i, j: (0, 0)),
            pl.BlockSpec((tm, D), lambda i, j: (i, 0)),
            pl.BlockSpec((1, D), lambda i, j: (0, 0)),
            pl.BlockSpec((1, D), lambda i, j: (0, 0)),
        ],
        out_specs=pl.BlockSpec((tm, D), lambda i, j: (i, 0)),
        scratch_shapes=[pltpu.VMEM((tm, D), jnp.float32)],
        compiler_params=pltpu.CompilerParams(
            dimension_semantics=("parallel", "arbitrary"),
            vmem_limit_bytes=_VMEM_LIMIT),
    )(x2d, w1, b1, w2, b2, res2d, gamma, beta)


# --------------------------- flash-style multi-head attention ----------------
# grid = (B, q_tiles, kv_tiles); online softmax state (per head) lives in VMEM scratch.
# The mask is rebuilt in-kernel from compact key/query validity vectors + iota causal.
# Per-head results land in a (tq, d_model) f32 scratch; one lane-dense HBM store at the end.

def _attn_kernel(q_ref, kv_ref, kvld_ref, qvld_ref, o_ref,
                 m_sc, l_sc, acc_sc, out_sc, qs_sc, *, n_head, d_head, scale, causal):
    qi = pl.program_id(1)
    ki = pl.program_id(2)
    n_kv = pl.num_programs(2)
    tq = q_ref.shape[1]
    tk = kv_ref.shape[1]
    d_model = n_head * d_head

    @pl.when(ki == 0)
    def _():
        m_sc[...] = jnp.full_like(m_sc, -jnp.inf)
        l_sc[...] = jnp.zeros_like(l_sc)
        acc_sc[...] = jnp.zeros_like(acc_sc)
        # softmax scale folded into q once per q-tile (not into the (tq,tk) scores)
        qs_sc[...] = (q_ref[0].astype(jnp.float32) * scale).astype(qs_sc.dtype)

    # mask shared by all heads, built from compact validity vectors (no [Sq,Sk] HBM mask)
    keep = jnp.logical_and(kvld_ref[0] != 0.0, qvld_ref[0] != 0.0)       # (tq, tk)
    if causal:
        q_pos = qi * tq + lax.broadcasted_iota(jnp.int32, (tq, tk), 0)
        k_pos = ki * tk + lax.broadcasted_iota(jnp.int32, (tq, tk), 1)
        keep = jnp.logical_and(keep, k_pos <= q_pos)

    kv_all = kv_ref[0]                                                    # (tk, 2*D) bf16

    for h in range(n_head):                                               # static unroll
        lo = h * d_head
        qh = qs_sc[:, lo:lo + d_head]                                     # (tq, dh) bf16
        kh = kv_all[:, lo:lo + d_head]                                    # (tk, dh)
        vh = kv_all[:, d_model + lo:d_model + lo + d_head]                # (tk, dh)

        s = lax.dot_general(qh, kh, (((1,), (1,)), ((), ())),
                            preferred_element_type=jnp.float32)           # (tq, tk)
        s = jnp.where(keep, s, -10000.0)          # score.masked_fill(mask == 0, -10000)

        m_prev = m_sc[h]
        m_new = jnp.maximum(m_prev, jnp.max(s, axis=-1, keepdims=True))
        alpha = jnp.exp(m_prev - m_new)
        p = jnp.exp(s - m_new)
        l_sc[h] = alpha * l_sc[h] + jnp.sum(p, axis=-1, keepdims=True)
        acc_sc[h] = alpha * acc_sc[h] + jnp.dot(p.astype(vh.dtype), vh,
                                                preferred_element_type=jnp.float32)
        m_sc[h] = m_new

    @pl.when(ki == n_kv - 1)
    def _():
        for h in range(n_head):
            lo = h * d_head
            inv = pl.reciprocal(l_sc[h], approx=True)
            out_sc[:, lo:lo + d_head] = acc_sc[h] * inv
        o_ref[0] = out_sc[...].astype(o_ref.dtype)        # single lane-dense store


def pallas_attention(q, kv, kvld, qvld, *, n_head, causal, tq_want=256, tk_want=512):
    B, Sq, D = q.shape
    Sk = kv.shape[1]
    d_head = D // n_head
    tq = _tile(Sq, tq_want, 8)
    tk = _tile(Sk, tk_want, 128)
    kern = functools.partial(_attn_kernel, n_head=n_head, d_head=d_head,
                             scale=1.0 / math.sqrt(d_head), causal=causal)
    return pl.pallas_call(
        kern,
        out_shape=jax.ShapeDtypeStruct((B, Sq, D), jnp.bfloat16),
        grid=(B, Sq // tq, Sk // tk),
        in_specs=[
            pl.BlockSpec((1, tq, D), lambda b, qi, ki: (b, qi, 0)),
            pl.BlockSpec((1, tk, 2 * D), lambda b, qi, ki: (b, ki, 0)),
            pl.BlockSpec((1, 1, tk), lambda b, qi, ki: (b, 0, ki)),
            pl.BlockSpec((1, tq, 1), lambda b, qi, ki: (b, qi, 0)),
        ],
        out_specs=pl.BlockSpec((1, tq, D), lambda b, qi, ki: (b, qi, 0)),
        scratch_shapes=[
            pltpu.VMEM((n_head, tq, 1), jnp.float32),      # running max m
            pltpu.VMEM((n_head, tq, 1), jnp.float32),      # running denom l
            pltpu.VMEM((n_head, tq, d_head), jnp.float32),  # running numerator
            pltpu.VMEM((tq, D), jnp.float32),               # lane-dense output staging
            pltpu.VMEM((tq, D), jnp.bfloat16),              # pre-scaled q
        ],
        compiler_params=pltpu.CompilerParams(
            dimension_semantics=("parallel", "parallel", "arbitrary"),
            vmem_limit_bytes=_VMEM_LIMIT),
    )(q, kv, kvld, qvld)


# --------------------------- model pieces (glue in JAX) ----------------------

def mha_block(p, norm, x_q, x_kv, kvld, qvld, res, n_head, causal):
    B, Sq, D = x_q.shape
    Sk = x_kv.shape[1]
    q = pallas_linear(x_q.reshape(B * Sq, D), p["wq"]["w"], p["wq"]["b"]).reshape(B, Sq, D)
    kv = pallas_linear(x_kv.reshape(B * Sk, D), p["wkv"]["w"], p["wkv"]["b"]).reshape(B, Sk, 2 * D)
    o = pallas_attention(q, kv, kvld, qvld, n_head=n_head, causal=causal)
    # output projection with fused residual-add + LayerNorm epilogue
    y = pallas_linear_res_ln(o.reshape(B * Sq, D), p["wo"]["w"], p["wo"]["b"],
                             res.reshape(B * Sq, D), norm["gamma"], norm["beta"])
    return y.reshape(B, Sq, D)


def ffn_block(p_ffn, norm, x):
    B, S, D = x.shape
    y = pallas_ffn_res_ln(x.reshape(B * S, D), p_ffn["w1"]["w"], p_ffn["w1"]["b"],
                          p_ffn["w2"]["w"], p_ffn["w2"]["b"],
                          x.reshape(B * S, D), norm["gamma"], norm["beta"])
    return y.reshape(B, S, D)


def encoder_layer(p, x, src_kvld, enc_qvld, n_head):
    x = mha_block(p["attn"], p["norm1"], x, x, src_kvld, enc_qvld, x, n_head, causal=False)
    x = ffn_block(p["ffn"], p["norm2"], x)
    return x


def decoder_layer(p, dec, enc, dec_kvld, dec_qvld, src_kvld, crs_qvld, n_head):
    x = mha_block(p["self_attn"], p["norm1"], dec, dec, dec_kvld, dec_qvld, dec,
                  n_head, causal=True)
    x = mha_block(p["cross_attn"], p["norm2"], x, enc, src_kvld, crs_qvld, x,
                  n_head, causal=False)
    x = ffn_block(p["ffn"], p["norm3"], x)
    return x


def sinusoid_encoding(max_len, d_model):
    pos = jnp.arange(max_len, dtype=jnp.float32)[:, None]
    i2 = jnp.arange(0, d_model, 2, dtype=jnp.float32)[None, :]
    angle = pos / jnp.power(10000.0, i2 / d_model)
    enc = jnp.zeros((max_len, d_model), jnp.float32)
    enc = enc.at[:, 0::2].set(jnp.sin(angle))
    enc = enc.at[:, 1::2].set(jnp.cos(angle))
    return enc


def transformer_embedding(tok_table, pos_enc, tokens):
    # TODO(synk): nn.Embedding gather stays in JAX (no clean Pallas gather); dropout == identity.
    seq_len = tokens.shape[1]
    x = jnp.take(tok_table, tokens, axis=0) + pos_enc[:seq_len][None, :, :]
    return x.astype(jnp.bfloat16)


def transformer_forward(params, src, trg, *, src_pad_idx, trg_pad_idx, n_head, dec_voc):
    B, Ss = src.shape
    St = trg.shape[1]
    f32 = jnp.float32
    # Compact validity vectors (no [B,Sq,Sk] mask tensors in HBM):
    #   encoder / cross attention: mask keys by src padding only
    #   decoder self attention:    mask query rows by trg padding, causal tril in-kernel
    src_kvld = (src != src_pad_idx).astype(f32)[:, None, :]          # (B, 1, Ss)
    enc_qvld = jnp.ones((B, Ss, 1), f32)
    dec_kvld = jnp.ones((B, 1, St), f32)
    dec_qvld = (trg != trg_pad_idx).astype(f32)[:, :, None]          # (B, St, 1)
    crs_qvld = jnp.ones((B, St, 1), f32)

    # Encoder
    x = transformer_embedding(params["enc_emb"], params["pos_enc"], src)
    for lp in params["enc_layers"]:
        x = encoder_layer(lp, x, src_kvld, enc_qvld, n_head)
    enc_src = x

    # Decoder
    y = transformer_embedding(params["dec_emb"], params["pos_enc"], trg)
    for lp in params["dec_layers"]:
        y = decoder_layer(lp, y, enc_src, dec_kvld, dec_qvld, src_kvld, crs_qvld, n_head)

    B2, S2, D = y.shape
    # vocab projection: weights pre-padded to a multiple of 128 lanes, logits kept f32
    logits = pallas_linear(y.reshape(B2 * S2, D), params["out"]["w"], params["out"]["b"],
                           out_dtype=jnp.float32)
    return logits[:, :dec_voc].reshape(B2, S2, dec_voc)


# --------------------------- deterministic params ----------------------------

def init_params(key, *, enc_voc, dec_voc, d_model, ffn_hidden, n_layers, max_len, pad_idx):
    keys = iter(jax.random.split(key, 512))

    def lin(din, dout, pad_n_to=None):
        n = dout if pad_n_to is None else ((dout + pad_n_to - 1) // pad_n_to) * pad_n_to
        w = 0.02 * jax.random.normal(next(keys), (din, dout), jnp.float32)
        if n != dout:
            w = jnp.pad(w, ((0, 0), (0, n - dout)))
        return {"w": w.astype(jnp.bfloat16), "b": jnp.zeros((1, n), jnp.float32)}

    def attn_p():
        return {"wq": lin(d_model, d_model),
                "wkv": lin(d_model, 2 * d_model),
                "wo": lin(d_model, d_model)}

    def norm_p():
        return {"gamma": jnp.ones((1, d_model), jnp.float32),
                "beta": jnp.zeros((1, d_model), jnp.float32)}

    def ffn_p():
        return {"w1": lin(d_model, ffn_hidden), "w2": lin(ffn_hidden, d_model)}

    def emb(voc):
        t = 0.02 * jax.random.normal(next(keys), (voc, d_model), jnp.float32)
        return t.at[pad_idx].set(0.0)        # nn.Embedding(..., padding_idx)

    return {
        "pos_enc": sinusoid_encoding(max_len, d_model),
        "enc_emb": emb(enc_voc),
        "dec_emb": emb(dec_voc),
        "enc_layers": [
            {"attn": attn_p(), "norm1": norm_p(), "ffn": ffn_p(), "norm2": norm_p()}
            for _ in range(n_layers)
        ],
        "dec_layers": [
            {"self_attn": attn_p(), "norm1": norm_p(), "cross_attn": attn_p(),
             "norm2": norm_p(), "ffn": ffn_p(), "norm3": norm_p()}
            for _ in range(n_layers)
        ],
        "out": lin(d_model, dec_voc, pad_n_to=128),   # lane-dense vocab projection
    }


# --------------------------------- main ---------------------------------------

if __name__ == "__main__":
    SRC_PAD, TRG_PAD, TRG_SOS = 1, 1, 2
    ENC_VOC, DEC_VOC = 50, 60
    D_MODEL, N_HEAD, FFN_HIDDEN, N_LAYERS, MAX_LEN = 32, 4, 64, 2, 16
    B, S_SRC, S_TRG = 2, 8, 8

    key = jax.random.PRNGKey(0)
    kp, ks, kt = jax.random.split(key, 3)
    params = init_params(kp, enc_voc=ENC_VOC, dec_voc=DEC_VOC, d_model=D_MODEL,
                         ffn_hidden=FFN_HIDDEN, n_layers=N_LAYERS, max_len=MAX_LEN,
                         pad_idx=SRC_PAD)

    src = jax.random.randint(ks, (B, S_SRC), 3, ENC_VOC, dtype=jnp.int32)
    trg = jax.random.randint(kt, (B, S_TRG), 3, DEC_VOC, dtype=jnp.int32)
    # exercise the pad masks and SOS token
    src = src.at[:, -2:].set(SRC_PAD)
    trg = trg.at[0, -1].set(TRG_PAD)
    trg = trg.at[:, 0].set(TRG_SOS)

    fwd = jax.jit(functools.partial(
        transformer_forward, src_pad_idx=SRC_PAD, trg_pad_idx=TRG_PAD,
        n_head=N_HEAD, dec_voc=DEC_VOC))
    out = jax.block_until_ready(fwd(params, src, trg))

    assert out.shape == (B, S_TRG, DEC_VOC), out.shape
    assert bool(jnp.all(jnp.isfinite(out)))
    # TODO(synk): dropout layers are identity here (eval-mode semantics); drop_prob unused.
    print("KERNEL_OK")
</pallas_src>

<mosaic_0001>
module attributes {stable_mosaic.version = 11 : i64} {
  func.func @_linear_res_ln_kernel(%arg0: i32, %arg1: i32, %arg2: memref<16x32xbf16, #tpu.memory_space<vmem>>, %arg3: memref<32x32xbf16, #tpu.memory_space<vmem>>, %arg4: memref<1x32xf32, #tpu.memory_space<vmem>>, %arg5: memref<16x32xbf16, #tpu.memory_space<vmem>>, %arg6: memref<1x32xf32, #tpu.memory_space<vmem>>, %arg7: memref<1x32xf32, #tpu.memory_space<vmem>>, %arg8: memref<16x32xbf16, #tpu.memory_space<vmem>>, %arg9: memref<16x32xf32, #tpu.memory_space<vmem>>) attributes {dimension_semantics = [#tpu.dimension_semantics<parallel>, #tpu.dimension_semantics<arbitrary>], iteration_bounds = array<i64: 1, 1>, scalar_prefetch = 0 : i64, scratch_operands = 1 : i64, tpu.core_type = #tpu.core_type<tc>, window_params = [{transform_indices = @transform_0, window_bounds = array<i64: 16, 32>}, {transform_indices = @transform_1, window_bounds = array<i64: 32, 32>}, {pipeline_mode = #tpu.pipeline_mode<synchronous>, transform_indices = @transform_2, window_bounds = array<i64: 1, 32>}, {transform_indices = @transform_3, window_bounds = array<i64: 16, 32>}, {pipeline_mode = #tpu.pipeline_mode<synchronous>, transform_indices = @transform_4, window_bounds = array<i64: 1, 32>}, {pipeline_mode = #tpu.pipeline_mode<synchronous>, transform_indices = @transform_5, window_bounds = array<i64: 1, 32>}, {transform_indices = @transform_6, window_bounds = array<i64: 16, 32>}]} {
    %c0_i32 = arith.constant 0 : i32
    %0 = arith.cmpi eq, %arg1, %c0_i32 : i32
    %1 = arith.extui %0 : i1 to i32
    %c0_i32_0 = arith.constant 0 : i32
    %2 = arith.cmpi ne, %1, %c0_i32_0 : i32
    scf.if %2 {
      %cst_10 = arith.constant 0.000000e+00 : f32
      %12 = vector.broadcast %cst_10 : f32 to vector<16x32xf32>
      %c0_11 = arith.constant 0 : index
      %c0_12 = arith.constant 0 : index
      %13 = vector.load %arg9[%c0_11, %c0_12] : memref<16x32xf32, #tpu.memory_space<vmem>>, vector<16x32xf32>
      tpu.vector_store %arg9[%c0_11, %c0_12], %12 {strides = array<i32>} : memref<16x32xf32, #tpu.memory_space<vmem>>, vector<16x32xf32>,
    } else {
    }
    %c0 = arith.constant 0 : index
    %c0_1 = arith.constant 0 : index
    %3 = vector.load %arg9[%c0, %c0_1] : memref<16x32xf32, #tpu.memory_space<vmem>>, vector<16x32xf32>
    %c0_2 = arith.constant 0 : index
    %c0_3 = arith.constant 0 : index
    %4 = vector.load %arg2[%c0_2, %c0_3] : memref<16x32xbf16, #tpu.memory_space<vmem>>, vector<16x32xbf16>
    %c0_4 = arith.constant 0 : index
    %c0_5 = arith.constant 0 : index
    %5 = vector.load %arg3[%c0_4, %c0_5] : memref<32x32xbf16, #tpu.memory_space<vmem>>, vector<32x32xbf16>
    %cst = arith.constant dense<0.000000e+00> : vector<16x32xf32>
    %6 = tpu.matmul %4, %5, %cst {dimension_numbers = #tpu.dot_dimension_numbers<[1], [0], [0], [1], [0, 0, 1, 1], [], []>} : vector<16x32xbf16>, vector<32x32xbf16>, vector<16x32xf32> -> vector<16x32xf32>
    %7 = arith.addf %3, %6 : vector<16x32xf32>
    %c0_6 = arith.constant 0 : index
    %c0_7 = arith.constant 0 : index
    %8 = vector.load %arg9[%c0_6, %c0_7] : memref<16x32xf32, #tpu.memory_space<vmem>>, vector<16x32xf32>
    tpu.vector_store %arg9[%c0_6, %c0_7], %7 {strides = array<i32>} : memref<16x32xf32, #tpu.memory_space<vmem>>, vector<16x32xf32>,
    %c0_i32_8 = arith.constant 0 : i32
    %9 = arith.cmpi eq, %arg1, %c0_i32_8 : i32
    %10 = arith.extui %9 : i1 to i32
    %c0_i32_9 = arith.constant 0 : i32
    %11 = arith.cmpi ne, %10, %c0_i32_9 : i32
    scf.if %11 {
      %c0_10 = arith.constant 0 : index
      %c0_11 = arith.constant 0 : index
      %12 = vector.load %arg9[%c0_10, %c0_11] : memref<16x32xf32, #tpu.memory_space<vmem>>, vector<16x32xf32>
      %c0_12 = arith.constant 0 : index
      %c0_13 = arith.constant 0 : index
      %13 = vector.load %arg4[%c0_12, %c0_13] : memref<1x32xf32, #tpu.memory_space<vmem>>, vector<1x32xf32>
      %14 = vector.broadcast %13 : vector<1x32xf32> to vector<16x32xf32>
      %15 = arith.addf %12, %14 : vector<16x32xf32>
      %c0_14 = arith.constant 0 : index
      %c0_15 = arith.constant 0 : index
      %16 = vector.load %arg5[%c0_14, %c0_15] : memref<16x32xbf16, #tpu.memory_space<vmem>>, vector<16x32xbf16>
      %17 = arith.extf %16 : vector<16x32xbf16> to vector<16x32xf32>
      %18 = arith.addf %15, %17 : vector<16x32xf32>
      %cst_16 = arith.constant dense<0.000000e+00> : vector<16xf32>
      %19 = vector.multi_reduction <add>, %18, %cst_16 [1] : vector<16x32xf32> to vector<16xf32>
      %20 = vector.shape_cast %19 : vector<16xf32> to vector<16x1xf32>
      %cst_17 = arith.constant 3.200000e+01 : f32
      %21 = vector.broadcast %cst_17 : f32 to vector<16x1xf32>
      %22 = arith.divf %20, %21 : vector<16x1xf32>
      %23 = vector.broadcast %22 : vector<16x1xf32> to vector<16x32xf32>
      %24 = arith.subf %18, %23 : vector<16x32xf32>
      %25 = arith.mulf %24, %24 : vector<16x32xf32>
      %cst_18 = arith.constant dense<0.000000e+00> : vector<16xf32>
      %26 = vector.multi_reduction <add>, %25, %cst_18 [1] : vector<16x32xf32> to vector<16xf32>
      %27 = vector.shape_cast %26 : vector<16xf32> to vector<16x1xf32>
      %cst_19 = arith.constant 3.200000e+01 : f32
      %28 = vector.broadcast %cst_19 : f32 to vector<16x1xf32>
      %29 = arith.divf %27, %28 : vector<16x1xf32>
      %30 = vector.broadcast %22 : vector<16x1xf32> to vector<16x32xf32>
      %31 = arith.subf %18, %30 : vector<16x32xf32>
      %cst_20 = arith.constant 9.99999996E-13 : f32
      %32 = vector.broadcast %cst_20 : f32 to vector<16x1xf32>
      %33 = arith.addf %29, %32 : vector<16x1xf32>
      %34 = math.rsqrt %33 : vector<16x1xf32>
      %35 = vector.broadcast %34 : vector<16x1xf32> to vector<16x32xf32>
      %36 = arith.mulf %31, %35 : vector<16x32xf32>
      %c0_21 = arith.constant 0 : index
      %c0_22 = arith.constant 0 : index
      %37 = vector.load %arg6[%c0_21, %c0_22] : memref<1x32xf32, #tpu.memory_space<vmem>>, vector<1x32xf32>
      %38 = vector.broadcast %37 : vector<1x32xf32> to vector<16x32xf32>
      %39 = arith.mulf %36, %38 : vector<16x32xf32>
      %c0_23 = arith.constant 0 : index
      %c0_24 = arith.constant 0 : index
      %40 = vector.load %arg7[%c0_23, %c0_24] : memref<1x32xf32, #tpu.memory_space<vmem>>, vector<1x32xf32>
      %41 = vector.broadcast %40 : vector<1x32xf32> to vector<16x32xf32>
      %42 = arith.addf %39, %41 : vector<16x32xf32>
      %43 = arith.truncf %42 : vector<16x32xf32> to vector<16x32xbf16>
      %c0_25 = arith.constant 0 : index
      %c0_26 = arith.constant 0 : index
      %44 = vector.load %arg8[%c0_25, %c0_26] : memref<16x32xbf16, #tpu.memory_space<vmem>>, vector<16x32xbf16>
      tpu.vector_store %arg8[%c0_25, %c0_26], %43 {strides = array<i32>} : memref<16x32xbf16, #tpu.memory_space<vmem>>, vector<16x32xbf16>,
    } else {
    }
    return
  }
  func.func @transform_0(%arg0: i32, %arg1: i32) -> (i32, i32) {
    %c0_i32 = arith.constant 0 : i32
    return %arg0, %arg1 : i32, i32
  }
  func.func @transform_1(%arg0: i32, %arg1: i32) -> (i32, i32) {
    %c0_i32 = arith.constant 0 : i32
    %c0_i32_0 = arith.constant 0 : i32
    return %arg1, %c0_i32 : i32, i32
  }
  func.func @transform_2(%arg0: i32, %arg1: i32) -> (i32, i32) {
    %c0_i32 = arith.constant 0 : i32
    %c0_i32_0 = arith.constant 0 : i32
    %c0_i32_1 = arith.constant 0 : i32
    return %c0_i32, %c0_i32_0 : i32, i32
  }
  func.func @transform_3(%arg0: i32, %arg1: i32) -> (i32, i32) {
    %c0_i32 = arith.constant 0 : i32
    %c0_i32_0 = arith.constant 0 : i32
    return %arg0, %c0_i32 : i32, i32
  }
  func.func @transform_4(%arg0: i32, %arg1: i32) -> (i32, i32) {
    %c0_i32 = arith.constant 0 : i32
    %c0_i32_0 = arith.constant 0 : i32
    %c0_i32_1 = arith.constant 0 : i32
    return %c0_i32, %c0_i32_0 : i32, i32
  }
  func.func @transform_5(%arg0: i32, %arg1: i32) -> (i32, i32) {
    %c0_i32 = arith.constant 0 : i32
    %c0_i32_0 = arith.constant 0 : i32
    %c0_i32_1 = arith.constant 0 : i32
    return %c0_i32, %c0_i32_0 : i32, i32
  }
  func.func @transform_6(%arg0: i32, %arg1: i32) -> (i32, i32) {
    %c0_i32 = arith.constant 0 : i32
    %c0_i32_0 = arith.constant 0 : i32
    return %arg0, %c0_i32 : i32, i32
  }
}

module attributes {stable_mosaic.version = 11 : i64} {
  func.func @_linear_kernel(%arg0: i32, %arg1: i32, %arg2: i32, %arg3: memref<16x32xbf16, #tpu.memory_space<vmem>>, %arg4: memref<32x32xbf16, #tpu.memory_space<vmem>>, %arg5: memref<1x32xf32, #tpu.memory_space<vmem>>, %arg6: memref<16x32xbf16, #tpu.memory_space<vmem>>, %arg7: memref<16x32xf32, #tpu.memory_space<vmem>>) attributes {dimension_semantics = [#tpu.dimension_semantics<parallel>, #tpu.dimension_semantics<parallel>, #tpu.dimension_semantics<arbitrary>], iteration_bounds = array<i64: 1, 1, 1>, scalar_prefetch = 0 : i64, scratch_operands = 1 : i64, tpu.core_type = #tpu.core_type<tc>, window_params = [{transform_indices = @transform_0, window_bounds = array<i64: 16, 32>}, {transform_indices = @transform_1, window_bounds = array<i64: 32, 32>}, {transform_indices = @transform_2, window_bounds = array<i64: 1, 32>}, {transform_indices = @transform_3, window_bounds = array<i64: 16, 32>}]} {
    %c0_i32 = arith.constant 0 : i32
    %0 = arith.cmpi eq, %arg2, %c0_i32 : i32
    %1 = arith.extui %0 : i1 to i32
    %c0_i32_0 = arith.constant 0 : i32
    %2 = arith.cmpi ne, %1, %c0_i32_0 : i32
    scf.if %2 {
      %cst_10 = arith.constant 0.000000e+00 : f32
      %12 = vector.broadcast %cst_10 : f32 to vector<16x32xf32>
      %c0_11 = arith.constant 0 : index
      %c0_12 = arith.constant 0 : index
      %13 = vector.load %arg7[%c0_11, %c0_12] : memref<16x32xf32, #tpu.memory_space<vmem>>, vector<16x32xf32>
      tpu.vector_store %arg7[%c0_11, %c0_12], %12 {strides = array<i32>} : memref<16x32xf32, #tpu.memory_space<vmem>>, vector<16x32xf32>,
    } else {
    }
    %c0 = arith.constant 0 : index
    %c0_1 = arith.constant 0 : index
    %3 = vector.load %arg7[%c0, %c0_1] : memref<16x32xf32, #tpu.memory_space<vmem>>, vector<16x32xf32>
    %c0_2 = arith.constant 0 : index
    %c0_3 = arith.constant 0 : index
    %4 = vector.load %arg3[%c0_2, %c0_3] : memref<16x32xbf16, #tpu.memory_space<vmem>>, vector<16x32xbf16>
    %c0_4 = arith.constant 0 : index
    %c0_5 = arith.constant 0 : index
    %5 = vector.load %arg4[%c0_4, %c0_5] : memref<32x32xbf16, #tpu.memory_space<vmem>>, vector<32x32xbf16>
    %cst = arith.constant dense<0.000000e+00> : vector<16x32xf32>
    %6 = tpu.matmul %4, %5, %cst {dimension_numbers = #tpu.dot_dimension_numbers<[1], [0], [0], [1], [0, 0, 1, 1], [], []>} : vector<16x32xbf16>, vector<32x32xbf16>, vector<16x32xf32> -> vector<16x32xf32>
    %7 = arith.addf %3, %6 : vector<16x32xf32>
    %c0_6 = arith.constant 0 : index
    %c0_7 = arith.constant 0 : index
    %8 = vector.load %arg7[%c0_6, %c0_7] : memref<16x32xf32, #tpu.memory_space<vmem>>, vector<16x32xf32>
    tpu.vector_store %arg7[%c0_6, %c0_7], %7 {strides = array<i32>} : memref<16x32xf32, #tpu.memory_space<vmem>>, vector<16x32xf32>,
    %c0_i32_8 = arith.constant 0 : i32
    %9 = arith.cmpi eq, %arg2, %c0_i32_8 : i32
    %10 = arith.extui %9 : i1 to i32
    %c0_i32_9 = arith.constant 0 : i32
    %11 = arith.cmpi ne, %10, %c0_i32_9 : i32
    scf.if %11 {
      %c0_10 = arith.constant 0 : index
      %c0_11 = arith.constant 0 : index
      %12 = vector.load %arg7[%c0_10, %c0_11] : memref<16x32xf32, #tpu.memory_space<vmem>>, vector<16x32xf32>
      %c0_12 = arith.constant 0 : index
      %c0_13 = arith.constant 0 : index
      %13 = vector.load %arg5[%c0_12, %c0_13] : memref<1x32xf32, #tpu.memory_space<vmem>>, vector<1x32xf32>
      %14 = vector.broadcast %13 : vector<1x32xf32> to vector<16x32xf32>
      %15 = arith.addf %12, %14 : vector<16x32xf32>
      %16 = arith.truncf %15 : vector<16x32xf32> to vector<16x32xbf16>
      %c0_14 = arith.constant 0 : index
      %c0_15 = arith.constant 0 : index
      %17 = vector.load %arg6[%c0_14, %c0_15] : memref<16x32xbf16, #tpu.memory_space<vmem>>, vector<16x32xbf16>
      tpu.vector_store %arg6[%c0_14, %c0_15], %16 {strides = array<i32>} : memref<16x32xbf16, #tpu.memory_space<vmem>>, vector<16x32xbf16>,
    } else {
    }
    return
  }
  func.func @transform_0(%arg0: i32, %arg1: i32, %arg2: i32) -> (i32, i32) {
    %c0_i32 = arith.constant 0 : i32
    return %arg0, %arg2 : i32, i32
  }
  func.func @transform_1(%arg0: i32, %arg1: i32, %arg2: i32) -> (i32, i32) {
    %c0_i32 = arith.constant 0 : i32
    return %arg2, %arg1 : i32, i32
  }
  func.func @transform_2(%arg0: i32, %arg1: i32, %arg2: i32) -> (i32, i32) {
    %c0_i32 = arith.constant 0 : i32
    %c0_i32_0 = arith.constant 0 : i32
    return %c0_i32, %arg1 : i32, i32
  }
  func.func @transform_3(%arg0: i32, %arg1: i32, %arg2: i32) -> (i32, i32) {
    %c0_i32 = arith.constant 0 : i32
    return %arg0, %arg1 : i32, i32
  }
}

module attributes {stable_mosaic.version = 11 : i64} {
  func.func @_linear_kernel(%arg0: i32, %arg1: i32, %arg2: i32, %arg3: memref<16x32xbf16, #tpu.memory_space<vmem>>, %arg4: memref<32x64xbf16, #tpu.memory_space<vmem>>, %arg5: memref<1x64xf32, #tpu.memory_space<vmem>>, %arg6: memref<16x64xbf16, #tpu.memory_space<vmem>>, %arg7: memref<16x64xf32, #tpu.memory_space<vmem>>) attributes {dimension_semantics = [#tpu.dimension_semantics<parallel>, #tpu.dimension_semantics<parallel>, #tpu.dimension_semantics<arbitrary>], iteration_bounds = array<i64: 1, 1, 1>, scalar_prefetch = 0 : i64, scratch_operands = 1 : i64, tpu.core_type = #tpu.core_type<tc>, window_params = [{transform_indices = @transform_0, window_bounds = array<i64: 16, 32>}, {transform_indices = @transform_1, window_bounds = array<i64: 32, 64>}, {transform_indices = @transform_2, window_bounds = array<i64: 1, 64>}, {transform_indices = @transform_3, window_bounds = array<i64: 16, 64>}]} {
    %c0_i32 = arith.constant 0 : i32
    %0 = arith.cmpi eq, %arg2, %c0_i32 : i32
    %1 = arith.extui %0 : i1 to i32
    %c0_i32_0 = arith.constant 0 : i32
    %2 = arith.cmpi ne, %1, %c0_i32_0 : i32
    scf.if %2 {
      %cst_10 = arith.constant 0.000000e+00 : f32
      %12 = vector.broadcast %cst_10 : f32 to vector<16x64xf32>
      %c0_11 = arith.constant 0 : index
      %c0_12 = arith.constant 0 : index
      %13 = vector.load %arg7[%c0_11, %c0_12] : memref<16x64xf32, #tpu.memory_space<vmem>>, vector<16x64xf32>
      tpu.vector_store %arg7[%c0_11, %c0_12], %12 {strides = array<i32>} : memref<16x64xf32, #tpu.memory_space<vmem>>, vector<16x64xf32>,
    } else {
    }
    %c0 = arith.constant 0 : index
    %c0_1 = arith.constant 0 : index
    %3 = vector.load %arg7[%c0, %c0_1] : memref<16x64xf32, #tpu.memory_space<vmem>>, vector<16x64xf32>
    %c0_2 = arith.constant 0 : index
    %c0_3 = arith.constant 0 : index
    %4 = vector.load %arg3[%c0_2, %c0_3] : memref<16x32xbf16, #tpu.memory_space<vmem>>, vector<16x32xbf16>
    %c0_4 = arith.constant 0 : index
    %c0_5 = arith.constant 0 : index
    %5 = vector.load %arg4[%c0_4, %c0_5] : memref<32x64xbf16, #tpu.memory_space<vmem>>, vector<32x64xbf16>
    %cst = arith.constant dense<0.000000e+00> : vector<16x64xf32>
    %6 = tpu.matmul %4, %5, %cst {dimension_numbers = #tpu.dot_dimension_numbers<[1], [0], [0], [1], [0, 0, 1, 1], [], []>} : vector<16x32xbf16>, vector<32x64xbf16>, vector<16x64xf32> -> vector<16x64xf32>
    %7 = arith.addf %3, %6 : vector<16x64xf32>
    %c0_6 = arith.constant 0 : index
    %c0_7 = arith.constant 0 : index
    %8 = vector.load %arg7[%c0_6, %c0_7] : memref<16x64xf32, #tpu.memory_space<vmem>>, vector<16x64xf32>
    tpu.vector_store %arg7[%c0_6, %c0_7], %7 {strides = array<i32>} : memref<16x64xf32, #tpu.memory_space<vmem>>, vector<16x64xf32>,
    %c0_i32_8 = arith.constant 0 : i32
    %9 = arith.cmpi eq, %arg2, %c0_i32_8 : i32
    %10 = arith.extui %9 : i1 to i32
    %c0_i32_9 = arith.constant 0 : i32
    %11 = arith.cmpi ne, %10, %c0_i32_9 : i32
    scf.if %11 {
      %c0_10 = arith.constant 0 : index
      %c0_11 = arith.constant 0 : index
      %12 = vector.load %arg7[%c0_10, %c0_11] : memref<16x64xf32, #tpu.memory_space<vmem>>, vector<16x64xf32>
      %c0_12 = arith.constant 0 : index
      %c0_13 = arith.constant 0 : index
      %13 = vector.load %arg5[%c0_12, %c0_13] : memref<1x64xf32, #tpu.memory_space<vmem>>, vector<1x64xf32>
      %14 = vector.broadcast %13 : vector<1x64xf32> to vector<16x64xf32>
      %15 = arith.addf %12, %14 : vector<16x64xf32>
      %16 = arith.truncf %15 : vector<16x64xf32> to vector<16x64xbf16>
      %c0_14 = arith.constant 0 : index
      %c0_15 = arith.constant 0 : index
      %17 = vector.load %arg6[%c0_14, %c0_15] : memref<16x64xbf16, #tpu.memory_space<vmem>>, vector<16x64xbf16>
      tpu.vector_store %arg6[%c0_14, %c0_15], %16 {strides = array<i32>} : memref<16x64xbf16, #tpu.memory_space<vmem>>, vector<16x64xbf16>,
    } else {
    }
    return
  }
  func.func @transform_0(%arg0: i32, %arg1: i32, %arg2: i32) -> (i32, i32) {
    %c0_i32 = arith.constant 0 : i32
    return %arg0, %arg2 : i32, i32
  }
  func.func @transform_1(%arg0: i32, %arg1: i32, %arg2: i32) -> (i32, i32) {
    %c0_i32 = arith.constant 0 : i32
    return %arg2, %arg1 : i32, i32
  }
  func.func @transform_2(%arg0: i32, %arg1: i32, %arg2: i32) -> (i32, i32) {
    %c0_i32 = arith.constant 0 : i32
    %c0_i32_0 = arith.constant 0 : i32
    return %c0_i32, %arg1 : i32, i32
  }
  func.func @transform_3(%arg0: i32, %arg1: i32, %arg2: i32) -> (i32, i32) {
    %c0_i32 = arith.constant 0 : i32
    return %arg0, %arg1 : i32, i32
  }
}

module attributes {stable_mosaic.version = 11 : i64} {
  func.func @_attn_kernel(%arg0: i32, %arg1: i32, %arg2: i32, %arg3: memref<1x8x32xbf16, #tpu.memory_space<vmem>>, %arg4: memref<1x8x64xbf16, #tpu.memory_space<vmem>>, %arg5: memref<1x1x8xf32, #tpu.memory_space<vmem>>, %arg6: memref<1x8x1xf32, #tpu.memory_space<vmem>>, %arg7: memref<1x8x32xbf16, #tpu.memory_space<vmem>>, %arg8: memref<4x8x1xf32, #tpu.memory_space<vmem>>, %arg9: memref<4x8x1xf32, #tpu.memory_space<vmem>>, %arg10: memref<4x8x8xf32, #tpu.memory_space<vmem>>, %arg11: memref<8x32xf32, #tpu.memory_space<vmem>>, %arg12: memref<8x32xbf16, #tpu.memory_space<vmem>>) attributes {dimension_semantics = [#tpu.dimension_semantics<parallel>, #tpu.dimension_semantics<parallel>, #tpu.dimension_semantics<arbitrary>], iteration_bounds = array<i64: 2, 1, 1>, scalar_prefetch = 0 : i64, scratch_operands = 5 : i64, tpu.core_type = #tpu.core_type<tc>, window_params = [{transform_indices = @transform_0, window_bounds = array<i64: 1, 8, 32>}, {transform_indices = @transform_1, window_bounds = array<i64: 1, 8, 64>}, {transform_indices = @transform_2, window_bounds = array<i64: 1, 1, 8>}, {transform_indices = @transform_3, window_bounds = array<i64: 1, 8, 1>}, {transform_indices = @transform_4, window_bounds = array<i64: 1, 8, 32>}]} {
    %c0_i32 = arith.constant 0 : i32
    %0 = arith.cmpi eq, %arg2, %c0_i32 : i32
    %1 = arith.extui %0 : i1 to i32
    %c0_i32_0 = arith.constant 0 : i32
    %2 = arith.cmpi ne, %1, %c0_i32_0 : i32
    scf.if %2 {
      %cst_106 = arith.constant 0xFF800000 : f32
      %171 = vector.broadcast %cst_106 : f32 to vector<4x8x1xf32>
      %c0_107 = arith.constant 0 : index
      %c0_108 = arith.constant 0 : index
      %c0_109 = arith.constant 0 : index
      %172 = vector.load %arg8[%c0_107, %c0_108, %c0_109] : memref<4x8x1xf32, #tpu.memory_space<vmem>>, vector<4x8x1xf32>
      tpu.vector_store %arg8[%c0_107, %c0_108, %c0_109], %171 {strides = array<i32>} : memref<4x8x1xf32, #tpu.memory_space<vmem>>, vector<4x8x1xf32>,
      %cst_110 = arith.constant 0.000000e+00 : f32
      %173 = vector.broadcast %cst_110 : f32 to vector<4x8x1xf32>
      %c0_111 = arith.constant 0 : index
      %c0_112 = arith.constant 0 : index
      %c0_113 = arith.constant 0 : index
      %174 = vector.load %arg9[%c0_111, %c0_112, %c0_113] : memref<4x8x1xf32, #tpu.memory_space<vmem>>, vector<4x8x1xf32>
      tpu.vector_store %arg9[%c0_111, %c0_112, %c0_113], %173 {strides = array<i32>} : memref<4x8x1xf32, #tpu.memory_space<vmem>>, vector<4x8x1xf32>,
      %cst_114 = arith.constant 0.000000e+00 : f32
      %175 = vector.broadcast %cst_114 : f32 to vector<4x8x8xf32>
      %c0_115 = arith.constant 0 : index
      %c0_116 = arith.constant 0 : index
      %c0_117 = arith.constant 0 : index
      %176 = vector.load %arg10[%c0_115, %c0_116, %c0_117] : memref<4x8x8xf32, #tpu.memory_space<vmem>>, vector<4x8x8xf32>
      tpu.vector_store %arg10[%c0_115, %c0_116, %c0_117], %175 {strides = array<i32>} : memref<4x8x8xf32, #tpu.memory_space<vmem>>, vector<4x8x8xf32>,
      %c0_118 = arith.constant 0 : index
      %c0_119 = arith.constant 0 : index
      %c0_120 = arith.constant 0 : index
      %177 = vector.load %arg3[%c0_118, %c0_119, %c0_120] : memref<1x8x32xbf16, #tpu.memory_space<vmem>>, vector<1x8x32xbf16>
      %178 = vector.shape_cast %177 : vector<1x8x32xbf16> to vector<8x32xbf16>
      %179 = arith.extf %178 : vector<8x32xbf16> to vector<8x32xf32>
      %cst_121 = arith.constant 0.353553385 : f32
      %180 = vector.broadcast %cst_121 : f32 to vector<8x32xf32>
      %181 = arith.mulf %179, %180 : vector<8x32xf32>
      %182 = arith.truncf %181 : vector<8x32xf32> to vector<8x32xbf16>
      %c0_122 = arith.constant 0 : index
      %c0_123 = arith.constant 0 : index
      %183 = vector.load %arg12[%c0_122, %c0_123] : memref<8x32xbf16, #tpu.memory_space<vmem>>, vector<8x32xbf16>
      tpu.vector_store %arg12[%c0_122, %c0_123], %182 {strides = array<i32>} : memref<8x32xbf16, #tpu.memory_space<vmem>>, vector<8x32xbf16>,
    } else {
    }
    %c0 = arith.constant 0 : index
    %c0_1 = arith.constant 0 : index
    %c0_2 = arith.constant 0 : index
    %3 = vector.load %arg5[%c0, %c0_1, %c0_2] : memref<1x1x8xf32, #tpu.memory_space<vmem>>, vector<1x1x8xf32>
    %4 = vector.shape_cast %3 : vector<1x1x8xf32> to vector<1x8xf32>
    %cst = arith.constant 0.000000e+00 : f32
    %5 = vector.broadcast %cst : f32 to vector<1x8xf32>
    %6 = arith.cmpf one, %4, %5 : vector<1x8xf32>
    %c0_3 = arith.constant 0 : index
    %c0_4 = arith.constant 0 : index
    %c0_5 = arith.constant 0 : index
    %7 = vector.load %arg6[%c0_3, %c0_4, %c0_5] : memref<1x8x1xf32, #tpu.memory_space<vmem>>, vector<1x8x1xf32>
    %8 = vector.shape_cast %7 : vector<1x8x1xf32> to vector<8x1xf32>
    %cst_6 = arith.constant 0.000000e+00 : f32
    %9 = vector.broadcast %cst_6 : f32 to vector<8x1xf32>
    %10 = arith.cmpf one, %8, %9 : vector<8x1xf32>
    %11 = vector.broadcast %6 : vector<1x8xi1> to vector<8x8xi1>
    %12 = vector.broadcast %10 : vector<8x1xi1> to vector<8x8xi1>
    %13 = arith.andi %11, %12 : vector<8x8xi1>
    %c0_7 = arith.constant 0 : index
    %c0_8 = arith.constant 0 : index
    %c0_9 = arith.constant 0 : index
    %14 = vector.load %arg4[%c0_7, %c0_8, %c0_9] : memref<1x8x64xbf16, #tpu.memory_space<vmem>>, vector<1x8x64xbf16>
    %15 = vector.shape_cast %14 : vector<1x8x64xbf16> to vector<8x64xbf16>
    %c0_10 = arith.constant 0 : index
    %c0_11 = arith.constant 0 : index
    %16 = vector.load %arg12[%c0_10, %c0_11] : memref<8x32xbf16, #tpu.memory_space<vmem>>, vector<8x8xbf16>
    %17 = vector.extract_strided_slice %15 {offsets = [0, 0], sizes = [8, 8], strides = [1, 1]} : vector<8x64xbf16> to vector<8x8xbf16>
    %18 = vector.extract_strided_slice %15 {offsets = [0, 32], sizes = [8, 8], strides = [1, 1]} : vector<8x64xbf16> to vector<8x8xbf16>
    %cst_12 = arith.constant dense<0.000000e+00> : vector<8x8xf32>
    %19 = tpu.matmul %16, %17, %cst_12 {dimension_numbers = #tpu.dot_dimension_numbers<[1], [1], [0], [0], [0, 0, 1, 0], [], []>} : vector<8x8xbf16>, vector<8x8xbf16>, vector<8x8xf32> -> vector<8x8xf32>
    %cst_13 = arith.constant -1.000000e+04 : f32
    %20 = vector.broadcast %cst_13 : f32 to vector<8x8xf32>
    %21 = arith.select %13, %19, %20 : vector<8x8xi1>, vector<8x8xf32>
    %c0_14 = arith.constant 0 : index
    %c0_15 = arith.constant 0 : index
    %c0_16 = arith.constant 0 : index
    %22 = vector.load %arg8[%c0_14, %c0_15, %c0_16] : memref<4x8x1xf32, #tpu.memory_space<vmem>>, vector<1x8x1xf32>
    %23 = vector.shape_cast %22 : vector<1x8x1xf32> to vector<8x1xf32>
    %cst_17 = arith.constant dense<0xFF800000> : vector<8xf32>
    %24 = vector.multi_reduction <maximumf>, %21, %cst_17 [1] : vector<8x8xf32> to vector<8xf32>
    %25 = vector.shape_cast %24 : vector<8xf32> to vector<8x1xf32>
    %26 = arith.maximumf %23, %25 : vector<8x1xf32>
    %27 = arith.subf %23, %26 : vector<8x1xf32>
    %28 = math.exp %27 : vector<8x1xf32>
    %29 = vector.broadcast %26 : vector<8x1xf32> to vector<8x8xf32>
    %30 = arith.subf %21, %29 : vector<8x8xf32>
    %31 = math.exp %30 : vector<8x8xf32>
    %c0_18 = arith.constant 0 : index
    %c0_19 = arith.constant 0 : index
    %c0_20 = arith.constant 0 : index
    %32 = vector.load %arg9[%c0_18, %c0_19, %c0_20] : memref<4x8x1xf32, #tpu.memory_space<vmem>>, vector<1x8x1xf32>
    %33 = vector.shape_cast %32 : vector<1x8x1xf32> to vector<8x1xf32>
    %34 = arith.mulf %28, %33 : vector<8x1xf32>
    %cst_21 = arith.constant dense<0.000000e+00> : vector<8xf32>
    %35 = vector.multi_reduction <add>, %31, %cst_21 [1] : vector<8x8xf32> to vector<8xf32>
    %36 = vector.shape_cast %35 : vector<8xf32> to vector<8x1xf32>
    %37 = arith.addf %34, %36 : vector<8x1xf32>
    %c0_22 = arith.constant 0 : index
    %c0_23 = arith.constant 0 : index
    %c0_24 = arith.constant 0 : index
    %38 = vector.load %arg9[%c0_22, %c0_23, %c0_24] : memref<4x8x1xf32, #tpu.memory_space<vmem>>, vector<1x8x1xf32>
    %39 = vector.shape_cast %38 : vector<1x8x1xf32> to vector<8x1xf32>
    %40 = vector.shape_cast %37 : vector<8x1xf32> to vector<1x8x1xf32>
    tpu.vector_store %arg9[%c0_22, %c0_23, %c0_24], %40 {strides = array<i32>} : memref<4x8x1xf32, #tpu.memory_space<vmem>>, vector<1x8x1xf32>,
    %c0_25 = arith.constant 0 : index
    %c0_26 = arith.constant 0 : index
    %c0_27 = arith.constant 0 : index
    %41 = vector.load %arg10[%c0_25, %c0_26, %c0_27] : memref<4x8x8xf32, #tpu.memory_space<vmem>>, vector<1x8x8xf32>
    %42 = vector.shape_cast %41 : vector<1x8x8xf32> to vector<8x8xf32>
    %43 = vector.broadcast %28 : vector<8x1xf32> to vector<8x8xf32>
    %44 = arith.mulf %43, %42 : vector<8x8xf32>
    %45 = arith.truncf %31 : vector<8x8xf32> to vector<8x8xbf16>
    %cst_28 = arith.constant dense<0.000000e+00> : vector<8x8xf32>
    %46 = tpu.matmul %45, %18, %cst_28 {dimension_numbers = #tpu.dot_dimension_numbers<[1], [0], [0], [1], [0, 0, 1, 1], [], []>} : vector<8x8xbf16>, vector<8x8xbf16>, vector<8x8xf32> -> vector<8x8xf32>
    %47 = arith.addf %44, %46 : vector<8x8xf32>
    %c0_29 = arith.constant 0 : index
    %c0_30 = arith.constant 0 : index
    %c0_31 = arith.constant 0 : index
    %48 = vector.load %arg10[%c0_29, %c0_30, %c0_31] : memref<4x8x8xf32, #tpu.memory_space<vmem>>, vector<1x8x8xf32>
    %49 = vector.shape_cast %48 : vector<1x8x8xf32> to vector<8x8xf32>
    %50 = vector.shape_cast %47 : vector<8x8xf32> to vector<1x8x8xf32>
    tpu.vector_store %arg10[%c0_29, %c0_30, %c0_31], %50 {strides = array<i32>} : memref<4x8x8xf32, #tpu.memory_space<vmem>>, vector<1x8x8xf32>,
    %c0_32 = arith.constant 0 : index
    %c0_33 = arith.constant 0 : index
    %c0_34 = arith.constant 0 : index
    %51 = vector.load %arg8[%c0_32, %c0_33, %c0_34] : memref<4x8x1xf32, #tpu.memory_space<vmem>>, vector<1x8x1xf32>
    %52 = vector.shape_cast %51 : vector<1x8x1xf32> to vector<8x1xf32>
    %53 = vector.shape_cast %26 : vector<8x1xf32> to vector<1x8x1xf32>
    tpu.vector_store %arg8[%c0_32, %c0_33, %c0_34], %53 {strides = array<i32>} : memref<4x8x1xf32, #tpu.memory_space<vmem>>, vector<1x8x1xf32>,
    %c0_35 = arith.constant 0 : index
    %c8 = arith.constant 8 : index
    %54 = vector.load %arg12[%c0_35, %c8] : memref<8x32xbf16, #tpu.memory_space<vmem>>, vector<8x8xbf16>
    %55 = vector.extract_strided_slice %15 {offsets = [0, 8], sizes = [8, 8], strides = [1, 1]} : vector<8x64xbf16> to vector<8x8xbf16>
    %56 = vector.extract_strided_slice %15 {offsets = [0, 40], sizes = [8, 8], strides = [1, 1]} : vector<8x64xbf16> to vector<8x8xbf16>
    %cst_36 = arith.constant dense<0.000000e+00> : vector<8x8xf32>
    %57 = tpu.matmul %54, %55, %cst_36 {dimension_numbers = #tpu.dot_dimension_numbers<[1], [1], [0], [0], [0, 0, 1, 0], [], []>} : vector<8x8xbf16>, vector<8x8xbf16>, vector<8x8xf32> -> vector<8x8xf32>
    %cst_37 = arith.constant -1.000000e+04 : f32
    %58 = vector.broadcast %cst_37 : f32 to vector<8x8xf32>
    %59 = arith.select %13, %57, %58 : vector<8x8xi1>, vector<8x8xf32>
    %c1 = arith.constant 1 : index
    %c0_38 = arith.constant 0 : index
    %c0_39 = arith.constant 0 : index
    %60 = vector.load %arg8[%c1, %c0_38, %c0_39] : memref<4x8x1xf32, #tpu.memory_space<vmem>>, vector<1x8x1xf32>
    %61 = vector.shape_cast %60 : vector<1x8x1xf32> to vector<8x1xf32>
    %cst_40 = arith.constant dense<0xFF800000> : vector<8xf32>
    %62 = vector.multi_reduction <maximumf>, %59, %cst_40 [1] : vector<8x8xf32> to vector<8xf32>
    %63 = vector.shape_cast %62 : vector<8xf32> to vector<8x1xf32>
    %64 = arith.maximumf %61, %63 : vector<8x1xf32>
    %65 = arith.subf %61, %64 : vector<8x1xf32>
    %66 = math.exp %65 : vector<8x1xf32>
    %67 = vector.broadcast %64 : vector<8x1xf32> to vector<8x8xf32>
    %68 = arith.subf %59, %67 : vector<8x8xf32>
    %69 = math.exp %68 : vector<8x8xf32>
    %c1_41 = arith.constant 1 : index
    %c0_42 = arith.constant 0 : index
    %c0_43 = arith.constant 0 : index
    %70 = vector.load %arg9[%c1_41, %c0_42, %c0_43] : memref<4x8x1xf32, #tpu.memory_space<vmem>>, vector<1x8x1xf32>
    %71 = vector.shape_cast %70 : vector<1x8x1xf32> to vector<8x1xf32>
    %72 = arith.mulf %66, %71 : vector<8x1xf32>
    %cst_44 = arith.constant dense<0.000000e+00> : vector<8xf32>
    %73 = vector.multi_reduction <add>, %69, %cst_44 [1] : vector<8x8xf32> to vector<8xf32>
    %74 = vector.shape_cast %73 : vector<8xf32> to vector<8x1xf32>
    %75 = arith.addf %72, %74 : vector<8x1xf32>
    %c1_45 = arith.constant 1 : index
    %c0_46 = arith.constant 0 : index
    %c0_47 = arith.constant 0 : index
    %76 = vector.load %arg9[%c1_45, %c0_46, %c0_47] : memref<4x8x1xf32, #tpu.memory_space<vmem>>, vector<1x8x1xf32>
    %77 = vector.shape_cast %76 : vector<1x8x1xf32> to vector<8x1xf32>
    %78 = vector.shape_cast %75 : vector<8x1xf32> to vector<1x8x1xf32>
    tpu.vector_store %arg9[%c1_45, %c0_46, %c0_47], %78 {strides = array<i32>} : memref<4x8x1xf32, #tpu.memory_space<vmem>>, vector<1x8x1xf32>,
    %c1_48 = arith.constant 1 : index
    %c0_49 = arith.constant 0 : index
    %c0_50 = arith.constant 0 : index
    %79 = vector.load %arg10[%c1_48, %c0_49, %c0_50] : memref<4x8x8xf32, #tpu.memory_space<vmem>>, vector<1x8x8xf32>
    %80 = vector.shape_cast %79 : vector<1x8x8xf32> to vector<8x8xf32>
    %81 = vector.broadcast %66 : vector<8x1xf32> to vector<8x8xf32>
    %82 = arith.mulf %81, %80 : vector<8x8xf32>
    %83 = arith.truncf %69 : vector<8x8xf32> to vector<8x8xbf16>
    %cst_51 = arith.constant dense<0.000000e+00> : vector<8x8xf32>
    %84 = tpu.matmul %83, %56, %cst_51 {dimension_numbers = #tpu.dot_dimension_numbers<[1], [0], [0], [1], [0, 0, 1, 1], [], []>} : vector<8x8xbf16>, vector<8x8xbf16>, vector<8x8xf32> -> vector<8x8xf32>
    %85 = arith.addf %82, %84 : vector<8x8xf32>
    %c1_52 = arith.constant 1 : index
    %c0_53 = arith.constant 0 : index
    %c0_54 = arith.constant 0 : index
    %86 = vector.load %arg10[%c1_52, %c0_53, %c0_54] : memref<4x8x8xf32, #tpu.memory_space<vmem>>, vector<1x8x8xf32>
    %87 = vector.shape_cast %86 : vector<1x8x8xf32> to vector<8x8xf32>
    %88 = vector.shape_cast %85 : vector<8x8xf32> to vector<1x8x8xf32>
    tpu.vector_store %arg10[%c1_52, %c0_53, %c0_54], %88 {strides = array<i32>} : memref<4x8x8xf32, #tpu.memory_space<vmem>>, vector<1x8x8xf32>,
    %c1_55 = arith.constant 1 : index
    %c0_56 = arith.constant 0 : index
    %c0_57 = arith.constant 0 : index
    %89 = vector.load %arg8[%c1_55, %c0_56, %c0_57] : memref<4x8x1xf32, #tpu.memory_space<vmem>>, vector<1x8x1xf32>
    %90 = vector.shape_cast %89 : vector<1x8x1xf32> to vector<8x1xf32>
    %91 = vector.shape_cast %64 : vector<8x1xf32> to vector<1x8x1xf32>
    tpu.vector_store %arg8[%c1_55, %c0_56, %c0_57], %91 {strides = array<i32>} : memref<4x8x1xf32, #tpu.memory_space<vmem>>, vector<1x8x1xf32>,
    %c0_58 = arith.constant 0 : index
    %c16 = arith.constant 16 : index
    %92 = vector.load %arg12[%c0_58, %c16] : memref<8x32xbf16, #tpu.memory_space<vmem>>, vector<8x8xbf16>
    %93 = vector.extract_strided_slice %15 {offsets = [0, 16], sizes = [8, 8], strides = [1, 1]} : vector<8x64xbf16> to vector<8x8xbf16>
    %94 = vector.extract_strided_slice %15 {offsets = [0, 48], sizes = [8, 8], strides = [1, 1]} : vector<8x64xbf16> to vector<8x8xbf16>
    %cst_59 = arith.constant dense<0.000000e+00> : vector<8x8xf32>
    %95 = tpu.matmul %92, %93, %cst_59 {dimension_numbers = #tpu.dot_dimension_numbers<[1], [1], [0], [0], [0, 0, 1, 0], [], []>} : vector<8x8xbf16>, vector<8x8xbf16>, vector<8x8xf32> -> vector<8x8xf32>
    %cst_60 = arith.constant -1.000000e+04 : f32
    %96 = vector.broadcast %cst_60 : f32 to vector<8x8xf32>
    %97 = arith.select %13, %95, %96 : vector<8x8xi1>, vector<8x8xf32>
    %c2 = arith.constant 2 : index
    %c0_61 = arith.constant 0 : index
    %c0_62 = arith.constant 0 : index
    %98 = vector.load %arg8[%c2, %c0_61, %c0_62] : memref<4x8x1xf32, #tpu.memory_space<vmem>>, vector<1x8x1xf32>
    %99 = vector.shape_cast %98 : vector<1x8x1xf32> to vector<8x1xf32>
    %cst_63 = arith.constant dense<0xFF800000> : vector<8xf32>
    %100 = vector.multi_reduction <maximumf>, %97, %cst_63 [1] : vector<8x8xf32> to vector<8xf32>
    %101 = vector.shape_cast %100 : vector<8xf32> to vector<8x1xf32>
    %102 = arith.maximumf %99, %101 : vector<8x1xf32>
    %103 = arith.subf %99, %102 : vector<8x1xf32>
    %104 = math.exp %103 : vector<8x1xf32>
    %105 = vector.broadcast %102 : vector<8x1xf32> to vector<8x8xf32>
    %106 = arith.subf %97, %105 : vector<8x8xf32>
    %107 = math.exp %106 : vector<8x8xf32>
    %c2_64 = arith.constant 2 : index
    %c0_65 = arith.constant 0 : index
    %c0_66 = arith.constant 0 : index
    %108 = vector.load %arg9[%c2_64, %c0_65, %c0_66] : memref<4x8x1xf32, #tpu.memory_space<vmem>>, vector<1x8x1xf32>
    %109 = vector.shape_cast %108 : vector<1x8x1xf32> to vector<8x1xf32>
    %110 = arith.mulf %104, %109 : vector<8x1xf32>
    %cst_67 = arith.constant dense<0.000000e+00> : vector<8xf32>
    %111 = vector.multi_reduction <add>, %107, %cst_67 [1] : vector<8x8xf32> to vector<8xf32>
    %112 = vector.shape_cast %111 : vector<8xf32> to vector<8x1xf32>
    %113 = arith.addf %110, %112 : vector<8x1xf32>
    %c2_68 = arith.constant 2 : index
    %c0_69 = arith.constant 0 : index
    %c0_70 = arith.constant 0 : index
    %114 = vector.load %arg9[%c2_68, %c0_69, %c0_70] : memref<4x8x1xf32, #tpu.memory_space<vmem>>, vector<1x8x1xf32>
    %115 = vector.shape_cast %114 : vector<1x8x1xf32> to vector<8x1xf32>
    %116 = vector.shape_cast %113 : vector<8x1xf32> to vector<1x8x1xf32>
    tpu.vector_store %arg9[%c2_68, %c0_69, %c0_70], %116 {strides = array<i32>} : memref<4x8x1xf32, #tpu.memory_space<vmem>>, vector<1x8x1xf32>,
    %c2_71 = arith.constant 2 : index
    %c0_72 = arith.constant 0 : index
    %c0_73 = arith.constant 0 : index
    %117 = vector.load %arg10[%c2_71, %c0_72, %c0_73] : memref<4x8x8xf32, #tpu.memory_space<vmem>>, vector<1x8x8xf32>
    %118 = vector.shape_cast %117 : vector<1x8x8xf32> to vector<8x8xf32>
    %119 = vector.broadcast %104 : vector<8x1xf32> to vector<8x8xf32>
    %120 = arith.mulf %119, %118 : vector<8x8xf32>
    %121 = arith.truncf %107 : vector<8x8xf32> to vector<8x8xbf16>
    %cst_74 = arith.constant dense<0.000000e+00> : vector<8x8xf32>
    %122 = tpu.matmul %121, %94, %cst_74 {dimension_numbers = #tpu.dot_dimension_numbers<[1], [0], [0], [1], [0, 0, 1, 1], [], []>} : vector<8x8xbf16>, vector<8x8xbf16>, vector<8x8xf32> -> vector<8x8xf32>
    %123 = arith.addf %120, %122 : vector<8x8xf32>
    %c2_75 = arith.constant 2 : index
    %c0_76 = arith.constant 0 : index
    %c0_77 = arith.constant 0 : index
    %124 = vector.load %arg10[%c2_75, %c0_76, %c0_77] : memref<4x8x8xf32, #tpu.memory_space<vmem>>, vector<1x8x8xf32>
    %125 = vector.shape_cast %124 : vector<1x8x8xf32> to vector<8x8xf32>
    %126 = vector.shape_cast %123 : vector<8x8xf32> to vector<1x8x8xf32>
    tpu.vector_store %arg10[%c2_75, %c0_76, %c0_77], %126 {strides = array<i32>} : memref<4x8x8xf32, #tpu.memory_space<vmem>>, vector<1x8x8xf32>,
    %c2_78 = arith.constant 2 : index
    %c0_79 = arith.constant 0 : index
    %c0_80 = arith.constant 0 : index
    %127 = vector.load %arg8[%c2_78, %c0_79, %c0_80] : memref<4x8x1xf32, #tpu.memory_space<vmem>>, vector<1x8x1xf32>
    %128 = vector.shape_cast %127 : vector<1x8x1xf32> to vector<8x1xf32>
    %129 = vector.shape_cast %102 : vector<8x1xf32> to vector<1x8x1xf32>
    tpu.vector_store %arg8[%c2_78, %c0_79, %c0_80], %129 {strides = array<i32>} : memref<4x8x1xf32, #tpu.memory_space<vmem>>, vector<1x8x1xf32>,
    %c0_81 = arith.constant 0 : index
    %c24 = arith.constant 24 : index
    %130 = vector.load %arg12[%c0_81, %c24] : memref<8x32xbf16, #tpu.memory_space<vmem>>, vector<8x8xbf16>
    %131 = vector.extract_strided_slice %15 {offsets = [0, 24], sizes = [8, 8], strides = [1, 1]} : vector<8x64xbf16> to vector<8x8xbf16>
    %132 = vector.extract_strided_slice %15 {offsets = [0, 56], sizes = [8, 8], strides = [1, 1]} : vector<8x64xbf16> to vector<8x8xbf16>
    %cst_82 = arith.constant dense<0.000000e+00> : vector<8x8xf32>
    %133 = tpu.matmul %130, %131, %cst_82 {dimension_numbers = #tpu.dot_dimension_numbers<[1], [1], [0], [0], [0, 0, 1, 0], [], []>} : vector<8x8xbf16>, vector<8x8xbf16>, vector<8x8xf32> -> vector<8x8xf32>
    %cst_83 = arith.constant -1.000000e+04 : f32
    %134 = vector.broadcast %cst_83 : f32 to vector<8x8xf32>
    %135 = arith.select %13, %133, %134 : vector<8x8xi1>, vector<8x8xf32>
    %c3 = arith.constant 3 : index
    %c0_84 = arith.constant 0 : index
    %c0_85 = arith.constant 0 : index
    %136 = vector.load %arg8[%c3, %c0_84, %c0_85] : memref<4x8x1xf32, #tpu.memory_space<vmem>>, vector<1x8x1xf32>
    %137 = vector.shape_cast %136 : vector<1x8x1xf32> to vector<8x1xf32>
    %cst_86 = arith.constant dense<0xFF800000> : vector<8xf32>
    %138 = vector.multi_reduction <maximumf>, %135, %cst_86 [1] : vector<8x8xf32> to vector<8xf32>
    %139 = vector.shape_cast %138 : vector<8xf32> to vector<8x1xf32>
    %140 = arith.maximumf %137, %139 : vector<8x1xf32>
    %141 = arith.subf %137, %140 : vector<8x1xf32>
    %142 = math.exp %141 : vector<8x1xf32>
    %143 = vector.broadcast %140 : vector<8x1xf32> to vector<8x8xf32>
    %144 = arith.subf %135, %143 : vector<8x8xf32>
    %145 = math.exp %144 : vector<8x8xf32>
    %c3_87 = arith.constant 3 : index
    %c0_88 = arith.constant 0 : index
    %c0_89 = arith.constant 0 : index
    %146 = vector.load %arg9[%c3_87, %c0_88, %c0_89] : memref<4x8x1xf32, #tpu.memory_space<vmem>>, vector<1x8x1xf32>
    %147 = vector.shape_cast %146 : vector<1x8x1xf32> to vector<8x1xf32>
    %148 = arith.mulf %142, %147 : vector<8x1xf32>
    %cst_90 = arith.constant dense<0.000000e+00> : vector<8xf32>
    %149 = vector.multi_reduction <add>, %145, %cst_90 [1] : vector<8x8xf32> to vector<8xf32>
    %150 = vector.shape_cast %149 : vector<8xf32> to vector<8x1xf32>
    %151 = arith.addf %148, %150 : vector<8x1xf32>
    %c3_91 = arith.constant 3 : index
    %c0_92 = arith.constant 0 : index
    %c0_93 = arith.constant 0 : index
    %152 = vector.load %arg9[%c3_91, %c0_92, %c0_93] : memref<4x8x1xf32, #tpu.memory_space<vmem>>, vector<1x8x1xf32>
    %153 = vector.shape_cast %152 : vector<1x8x1xf32> to vector<8x1xf32>
    %154 = vector.shape_cast %151 : vector<8x1xf32> to vector<1x8x1xf32>
    tpu.vector_store %arg9[%c3_91, %c0_92, %c0_93], %154 {strides = array<i32>} : memref<4x8x1xf32, #tpu.memory_space<vmem>>, vector<1x8x1xf32>,
    %c3_94 = arith.constant 3 : index
    %c0_95 = arith.constant 0 : index
    %c0_96 = arith.constant 0 : index
    %155 = vector.load %arg10[%c3_94, %c0_95, %c0_96] : memref<4x8x8xf32, #tpu.memory_space<vmem>>, vector<1x8x8xf32>
    %156 = vector.shape_cast %155 : vector<1x8x8xf32> to vector<8x8xf32>
    %157 = vector.broadcast %142 : vector<8x1xf32> to vector<8x8xf32>
    %158 = arith.mulf %157, %156 : vector<8x8xf32>
    %159 = arith.truncf %145 : vector<8x8xf32> to vector<8x8xbf16>
    %cst_97 = arith.constant dense<0.000000e+00> : vector<8x8xf32>
    %160 = tpu.matmul %159, %132, %cst_97 {dimension_numbers = #tpu.dot_dimension_numbers<[1], [0], [0], [1], [0, 0, 1, 1], [], []>} : vector<8x8xbf16>, vector<8x8xbf16>, vector<8x8xf32> -> vector<8x8xf32>
    %161 = arith.addf %158, %160 : vector<8x8xf32>
    %c3_98 = arith.constant 3 : index
    %c0_99 = arith.constant 0 : index
    %c0_100 = arith.constant 0 : index
    %162 = vector.load %arg10[%c3_98, %c0_99, %c0_100] : memref<4x8x8xf32, #tpu.memory_space<vmem>>, vector<1x8x8xf32>
    %163 = vector.shape_cast %162 : vector<1x8x8xf32> to vector<8x8xf32>
    %164 = vector.shape_cast %161 : vector<8x8xf32> to vector<1x8x8xf32>
    tpu.vector_store %arg10[%c3_98, %c0_99, %c0_100], %164 {strides = array<i32>} : memref<4x8x8xf32, #tpu.memory_space<vmem>>, vector<1x8x8xf32>,
    %c3_101 = arith.constant 3 : index
    %c0_102 = arith.constant 0 : index
    %c0_103 = arith.constant 0 : index
    %165 = vector.load %arg8[%c3_101, %c0_102, %c0_103] : memref<4x8x1xf32, #tpu.memory_space<vmem>>, vector<1x8x1xf32>
    %166 = vector.shape_cast %165 : vector<1x8x1xf32> to vector<8x1xf32>
    %167 = vector.shape_cast %140 : vector<8x1xf32> to vector<1x8x1xf32>
    tpu.vector_store %arg8[%c3_101, %c0_102, %c0_103], %167 {strides = array<i32>} : memref<4x8x1xf32, #tpu.memory_space<vmem>>, vector<1x8x1xf32>,
    %c0_i32_104 = arith.constant 0 : i32
    %168 = arith.cmpi eq, %arg2, %c0_i32_104 : i32
    %169 = arith.extui %168 : i1 to i32
    %c0_i32_105 = arith.constant 0 : i32
    %170 = arith.cmpi ne, %169, %c0_i32_105 : i32
    scf.if %170 {
      %c0_106 = arith.constant 0 : index
      %c0_107 = arith.constant 0 : index
      %c0_108 = arith.constant 0 : index
      %171 = vector.load %arg9[%c0_106, %c0_107, %c0_108] : memref<4x8x1xf32, #tpu.memory_space<vmem>>, vector<1x8x1xf32>
      %172 = vector.shape_cast %171 : vector<1x8x1xf32> to vector<8x1xf32>
      %173 = tpu.reciprocal %172 {approx = true} : vector<8x1xf32> -> vector<8x1xf32>
      %c0_109 = arith.constant 0 : index
      %c0_110 = arith.constant 0 : index
      %c0_111 = arith.constant 0 : index
      %174 = vector.load %arg10[%c0_109, %c0_110, %c0_111] : memref<4x8x8xf32, #tpu.memory_space<vmem>>, vector<1x8x8xf32>
      %175 = vector.shape_cast %174 : vector<1x8x8xf32> to vector<8x8xf32>
      %176 = vector.broadcast %173 : vector<8x1xf32> to vector<8x8xf32>
      %177 = arith.mulf %175, %176 : vector<8x8xf32>
      %c0_112 = arith.constant 0 : index
      %c0_113 = arith.constant 0 : index
      %178 = vector.load %arg11[%c0_112, %c0_113] : memref<8x32xf32, #tpu.memory_space<vmem>>, vector<8x8xf32>
      tpu.vector_store %arg11[%c0_112, %c0_113], %177 {strides = array<i32>} : memref<8x32xf32, #tpu.memory_space<vmem>>, vector<8x8xf32>,
      %c1_114 = arith.constant 1 : index
      %c0_115 = arith.constant 0 : index
      %c0_116 = arith.constant 0 : index
      %179 = vector.load %arg9[%c1_114, %c0_115, %c0_116] : memref<4x8x1xf32, #tpu.memory_space<vmem>>, vector<1x8x1xf32>
      %180 = vector.shape_cast %179 : vector<1x8x1xf32> to vector<8x1xf32>
      %181 = tpu.reciprocal %180 {approx = true} : vector<8x1xf32> -> vector<8x1xf32>
      %c1_117 = arith.constant 1 : index
      %c0_118 = arith.constant 0 : index
      %c0_119 = arith.constant 0 : index
      %182 = vector.load %arg10[%c1_117, %c0_118, %c0_119] : memref<4x8x8xf32, #tpu.memory_space<vmem>>, vector<1x8x8xf32>
      %183 = vector.shape_cast %182 : vector<1x8x8xf32> to vector<8x8xf32>
      %184 = vector.broadcast %181 : vector<8x1xf32> to vector<8x8xf32>
      %185 = arith.mulf %183, %184 : vector<8x8xf32>
      %c0_120 = arith.constant 0 : index
      %c8_121 = arith.constant 8 : index
      %186 = vector.load %arg11[%c0_120, %c8_121] : memref<8x32xf32, #tpu.memory_space<vmem>>, vector<8x8xf32>
      tpu.vector_store %arg11[%c0_120, %c8_121], %185 {strides = array<i32>} : memref<8x32xf32, #tpu.memory_space<vmem>>, vector<8x8xf32>,
      %c2_122 = arith.constant 2 : index
      %c0_123 = arith.constant 0 : index
      %c0_124 = arith.constant 0 : index
      %187 = vector.load %arg9[%c2_122, %c0_123, %c0_124] : memref<4x8x1xf32, #tpu.memory_space<vmem>>, vector<1x8x1xf32>
      %188 = vector.shape_cast %187 : vector<1x8x1xf32> to vector<8x1xf32>
      %189 = tpu.reciprocal %188 {approx = true} : vector<8x1xf32> -> vector<8x1xf32>
      %c2_125 = arith.constant 2 : index
      %c0_126 = arith.constant 0 : index
      %c0_127 = arith.constant 0 : index
      %190 = vector.load %arg10[%c2_125, %c0_126, %c0_127] : memref<4x8x8xf32, #tpu.memory_space<vmem>>, vector<1x8x8xf32>
      %191 = vector.shape_cast %190 : vector<1x8x8xf32> to vector<8x8xf32>
      %192 = vector.broadcast %189 : vector<8x1xf32> to vector<8x8xf32>
      %193 = arith.mulf %191, %192 : vector<8x8xf32>
      %c0_128 = arith.constant 0 : index
      %c16_129 = arith.constant 16 : index
      %194 = vector.load %arg11[%c0_128, %c16_129] : memref<8x32xf32, #tpu.memory_space<vmem>>, vector<8x8xf32>
      tpu.vector_store %arg11[%c0_128, %c16_129], %193 {strides = array<i32>} : memref<8x32xf32, #tpu.memory_space<vmem>>, vector<8x8xf32>,
      %c3_130 = arith.constant 3 : index
      %c0_131 = arith.constant 0 : index
      %c0_132 = arith.constant 0 : index
      %195 = vector.load %arg9[%c3_130, %c0_131, %c0_132] : memref<4x8x1xf32, #tpu.memory_space<vmem>>, vector<1x8x1xf32>
      %196 = vector.shape_cast %195 : vector<1x8x1xf32> to vector<8x1xf32>
      %197 = tpu.reciprocal %196 {approx = true} : vector<8x1xf32> -> vector<8x1xf32>
      %c3_133 = arith.constant 3 : index
      %c0_134 = arith.constant 0 : index
      %c0_135 = arith.constant 0 : index
      %198 = vector.load %arg10[%c3_133, %c0_134, %c0_135] : memref<4x8x8xf32, #tpu.memory_space<vmem>>, vector<1x8x8xf32>
      %199 = vector.shape_cast %198 : vector<1x8x8xf32> to vector<8x8xf32>
      %200 = vector.broadcast %197 : vector<8x1xf32> to vector<8x8xf32>
      %201 = arith.mulf %199, %200 : vector<8x8xf32>
      %c0_136 = arith.constant 0 : index
      %c24_137 = arith.constant 24 : index
      %202 = vector.load %arg11[%c0_136, %c24_137] : memref<8x32xf32, #tpu.memory_space<vmem>>, vector<8x8xf32>
      tpu.vector_store %arg11[%c0_136, %c24_137], %201 {strides = array<i32>} : memref<8x32xf32, #tpu.memory_space<vmem>>, vector<8x8xf32>,
      %c0_138 = arith.constant 0 : index
      %c0_139 = arith.constant 0 : index
      %203 = vector.load %arg11[%c0_138, %c0_139] : memref<8x32xf32, #tpu.memory_space<vmem>>, vector<8x32xf32>
      %204 = arith.truncf %203 : vector<8x32xf32> to vector<8x32xbf16>
      %c0_140 = arith.constant 0 : index
      %c0_141 = arith.constant 0 : index
      %c0_142 = arith.constant 0 : index
      %205 = vector.load %arg7[%c0_140, %c0_141, %c0_142] : memref<1x8x32xbf16, #tpu.memory_space<vmem>>, vector<1x8x32xbf16>
      %206 = vector.shape_cast %205 : vector<1x8x32xbf16> to vector<8x32xbf16>
      %207 = vector.shape_cast %204 : vector<8x32xbf16> to vector<1x8x32xbf16>
      tpu.vector_store %arg7[%c0_140, %c0_141, %c0_142], %207 {strides = array<i32>} : memref<1x8x32xbf16, #tpu.memory_space<vmem>>, vector<1x8x32xbf16>,
    } else {
    }
    return
  }
  func.func @transform_0(%arg0: i32, %arg1: i32, %arg2: i32) -> (i32, i32, i32) {
    %c0_i32 = arith.constant 0 : i32
    %c0_i32_0 = arith.constant 0 : i32
    return %arg0, %arg1, %c0_i32 : i32, i32, i32
  }
  func.func @transform_1(%arg0: i32, %arg1: i32, %arg2: i32) -> (i32, i32, i32) {
    %c0_i32 = arith.constant 0 : i32
    %c0_i32_0 = arith.constant 0 : i32
    return %arg0, %arg2, %c0_i32 : i32, i32, i32
  }
  func.func @transform_2(%arg0: i32, %arg1: i32, %arg2: i32) -> (i32, i32, i32) {
    %c0_i32 = arith.constant 0 : i32
    %c0_i32_0 = arith.constant 0 : i32
    return %arg0, %c0_i32, %arg2 : i32, i32, i32
  }
  func.func @transform_3(%arg0: i32, %arg1: i32, %arg2: i32) -> (i32, i32, i32) {
    %c0_i32 = arith.constant 0 : i32
    %c0_i32_0 = arith.constant 0 : i32
    return %arg0, %arg1, %c0_i32 : i32, i32, i32
  }
  func.func @transform_4(%arg0: i32, %arg1: i32, %arg2: i32) -> (i32, i32, i32) {
    %c0_i32 = arith.constant 0 : i32
    %c0_i32_0 = arith.constant 0 : i32
    return %arg0, %arg1, %c0_i32 : i32, i32, i32
  }
}

module attributes {stable_mosaic.version = 11 : i64} {
  func.func @_linear_kernel(%arg0: i32, %arg1: i32, %arg2: i32, %arg3: memref<16x32xbf16, #tpu.memory_space<vmem>>, %arg4: memref<32x128xbf16, #tpu.memory_space<vmem>>, %arg5: memref<1x128xf32, #tpu.memory_space<vmem>>, %arg6: memref<16x128xf32, #tpu.memory_space<vmem>>, %arg7: memref<16x128xf32, #tpu.memory_space<vmem>>) attributes {dimension_semantics = [#tpu.dimension_semantics<parallel>, #tpu.dimension_semantics<parallel>, #tpu.dimension_semantics<arbitrary>], iteration_bounds = array<i64: 1, 1, 1>, scalar_prefetch = 0 : i64, scratch_operands = 1 : i64, tpu.core_type = #tpu.core_type<tc>, window_params = [{transform_indices = @transform_0, window_bounds = array<i64: 16, 32>}, {transform_indices = @transform_1, window_bounds = array<i64: 32, 128>}, {transform_indices = @transform_2, window_bounds = array<i64: 1, 128>}, {transform_indices = @transform_3, window_bounds = array<i64: 16, 128>}]} {
    %c0_i32 = arith.constant 0 : i32
    %0 = arith.cmpi eq, %arg2, %c0_i32 : i32
    %1 = arith.extui %0 : i1 to i32
    %c0_i32_0 = arith.constant 0 : i32
    %2 = arith.cmpi ne, %1, %c0_i32_0 : i32
    scf.if %2 {
      %cst_10 = arith.constant 0.000000e+00 : f32
      %12 = vector.broadcast %cst_10 : f32 to vector<16x128xf32>
      %c0_11 = arith.constant 0 : index
      %c0_12 = arith.constant 0 : index
      %13 = vector.load %arg7[%c0_11, %c0_12] : memref<16x128xf32, #tpu.memory_space<vmem>>, vector<16x128xf32>
      tpu.vector_store %arg7[%c0_11, %c0_12], %12 {strides = array<i32>} : memref<16x128xf32, #tpu.memory_space<vmem>>, vector<16x128xf32>,
    } else {
    }
    %c0 = arith.constant 0 : index
    %c0_1 = arith.constant 0 : index
    %3 = vector.load %arg7[%c0, %c0_1] : memref<16x128xf32, #tpu.memory_space<vmem>>, vector<16x128xf32>
    %c0_2 = arith.constant 0 : index
    %c0_3 = arith.constant 0 : index
    %4 = vector.load %arg3[%c0_2, %c0_3] : memref<16x32xbf16, #tpu.memory_space<vmem>>, vector<16x32xbf16>
    %c0_4 = arith.constant 0 : index
    %c0_5 = arith.constant 0 : index
    %5 = vector.load %arg4[%c0_4, %c0_5] : memref<32x128xbf16, #tpu.memory_space<vmem>>, vector<32x128xbf16>
    %cst = arith.constant dense<0.000000e+00> : vector<16x128xf32>
    %6 = tpu.matmul %4, %5, %cst {dimension_numbers = #tpu.dot_dimension_numbers<[1], [0], [0], [1], [0, 0, 1, 1], [], []>} : vector<16x32xbf16>, vector<32x128xbf16>, vector<16x128xf32> -> vector<16x128xf32>
    %7 = arith.addf %3, %6 : vector<16x128xf32>
    %c0_6 = arith.constant 0 : index
    %c0_7 = arith.constant 0 : index
    %8 = vector.load %arg7[%c0_6, %c0_7] : memref<16x128xf32, #tpu.memory_space<vmem>>, vector<16x128xf32>
    tpu.vector_store %arg7[%c0_6, %c0_7], %7 {strides = array<i32>} : memref<16x128xf32, #tpu.memory_space<vmem>>, vector<16x128xf32>,
    %c0_i32_8 = arith.constant 0 : i32
    %9 = arith.cmpi eq, %arg2, %c0_i32_8 : i32
    %10 = arith.extui %9 : i1 to i32
    %c0_i32_9 = arith.constant 0 : i32
    %11 = arith.cmpi ne, %10, %c0_i32_9 : i32
    scf.if %11 {
      %c0_10 = arith.constant 0 : index
      %c0_11 = arith.constant 0 : index
      %12 = vector.load %arg7[%c0_10, %c0_11] : memref<16x128xf32, #tpu.memory_space<vmem>>, vector<16x128xf32>
      %c0_12 = arith.constant 0 : index
      %c0_13 = arith.constant 0 : index
      %13 = vector.load %arg5[%c0_12, %c0_13] : memref<1x128xf32, #tpu.memory_space<vmem>>, vector<1x128xf32>
      %14 = vector.broadcast %13 : vector<1x128xf32> to vector<16x128xf32>
      %15 = arith.addf %12, %14 : vector<16x128xf32>
      %c0_14 = arith.constant 0 : index
      %c0_15 = arith.constant 0 : index
      %16 = vector.load %arg6[%c0_14, %c0_15] : memref<16x128xf32, #tpu.memory_space<vmem>>, vector<16x128xf32>
      tpu.vector_store %arg6[%c0_14, %c0_15], %15 {strides = array<i32>} : memref<16x128xf32, #tpu.memory_space<vmem>>, vector<16x128xf32>,
    } else {
    }
    return
  }
  func.func @transform_0(%arg0: i32, %arg1: i32, %arg2: i32) -> (i32, i32) {
    %c0_i32 = arith.constant 0 : i32
    return %arg0, %arg2 : i32, i32
  }
  func.func @transform_1(%arg0: i32, %arg1: i32, %arg2: i32) -> (i32, i32) {
    %c0_i32 = arith.constant 0 : i32
    return %arg2, %arg1 : i32, i32
  }
  func.func @transform_2(%arg0: i32, %arg1: i32, %arg2: i32) -> (i32, i32) {
    %c0_i32 = arith.constant 0 : i32
    %c0_i32_0 = arith.constant 0 : i32
    return %c0_i32, %arg1 : i32, i32
  }
  func.func @transform_3(%arg0: i32, %arg1: i32, %arg2: i32) -> (i32, i32) {
    %c0_i32 = arith.constant 0 : i32
    return %arg0, %arg1 : i32, i32
  }
}

module attributes {stable_mosaic.version = 11 : i64} {
  func.func @_ffn_res_ln_kernel(%arg0: i32, %arg1: i32, %arg2: memref<16x32xbf16, #tpu.memory_space<vmem>>, %arg3: memref<32x64xbf16, #tpu.memory_space<vmem>>, %arg4: memref<1x64xf32, #tpu.memory_space<vmem>>, %arg5: memref<64x32xbf16, #tpu.memory_space<vmem>>, %arg6: memref<1x32xf32, #tpu.memory_space<vmem>>, %arg7: memref<16x32xbf16, #tpu.memory_space<vmem>>, %arg8: memref<1x32xf32, #tpu.memory_space<vmem>>, %arg9: memref<1x32xf32, #tpu.memory_space<vmem>>, %arg10: memref<16x32xbf16, #tpu.memory_space<vmem>>, %arg11: memref<16x32xf32, #tpu.memory_space<vmem>>) attributes {dimension_semantics = [#tpu.dimension_semantics<parallel>, #tpu.dimension_semantics<arbitrary>], iteration_bounds = array<i64: 1, 1>, scalar_prefetch = 0 : i64, scratch_operands = 1 : i64, tpu.core_type = #tpu.core_type<tc>, window_params = [{transform_indices = @transform_0, window_bounds = array<i64: 16, 32>}, {transform_indices = @transform_1, window_bounds = array<i64: 32, 64>}, {transform_indices = @transform_2, window_bounds = array<i64: 1, 64>}, {transform_indices = @transform_3, window_bounds = array<i64: 64, 32>}, {pipeline_mode = #tpu.pipeline_mode<synchronous>, transform_indices = @transform_4, window_bounds = array<i64: 1, 32>}, {transform_indices = @transform_5, window_bounds = array<i64: 16, 32>}, {pipeline_mode = #tpu.pipeline_mode<synchronous>, transform_indices = @transform_6, window_bounds = array<i64: 1, 32>}, {pipeline_mode = #tpu.pipeline_mode<synchronous>, transform_indices = @transform_7, window_bounds = array<i64: 1, 32>}, {transform_indices = @transform_8, window_bounds = array<i64: 16, 32>}]} {
    %c0_i32 = arith.constant 0 : i32
    %0 = arith.cmpi eq, %arg1, %c0_i32 : i32
    %1 = arith.extui %0 : i1 to i32
    %c0_i32_0 = arith.constant 0 : i32
    %2 = arith.cmpi ne, %1, %c0_i32_0 : i32
    scf.if %2 {
      %cst_16 = arith.constant 0.000000e+00 : f32
      %20 = vector.broadcast %cst_16 : f32 to vector<16x32xf32>
      %c0_17 = arith.constant 0 : index
      %c0_18 = arith.constant 0 : index
      %21 = vector.load %arg11[%c0_17, %c0_18] : memref<16x32xf32, #tpu.memory_space<vmem>>, vector<16x32xf32>
      tpu.vector_store %arg11[%c0_17, %c0_18], %20 {strides = array<i32>} : memref<16x32xf32, #tpu.memory_space<vmem>>, vector<16x32xf32>,
    } else {
    }
    %c0 = arith.constant 0 : index
    %c0_1 = arith.constant 0 : index
    %3 = vector.load %arg2[%c0, %c0_1] : memref<16x32xbf16, #tpu.memory_space<vmem>>, vector<16x32xbf16>
    %c0_2 = arith.constant 0 : index
    %c0_3 = arith.constant 0 : index
    %4 = vector.load %arg3[%c0_2, %c0_3] : memref<32x64xbf16, #tpu.memory_space<vmem>>, vector<32x64xbf16>
    %cst = arith.constant dense<0.000000e+00> : vector<16x64xf32>
    %5 = tpu.matmul %3, %4, %cst {dimension_numbers = #tpu.dot_dimension_numbers<[1], [0], [0], [1], [0, 0, 1, 1], [], []>} : vector<16x32xbf16>, vector<32x64xbf16>, vector<16x64xf32> -> vector<16x64xf32>
    %c0_4 = arith.constant 0 : index
    %c0_5 = arith.constant 0 : index
    %6 = vector.load %arg4[%c0_4, %c0_5] : memref<1x64xf32, #tpu.memory_space<vmem>>, vector<1x64xf32>
    %7 = vector.broadcast %6 : vector<1x64xf32> to vector<16x64xf32>
    %8 = arith.addf %5, %7 : vector<16x64xf32>
    %cst_6 = arith.constant 0.000000e+00 : f32
    %9 = vector.broadcast %cst_6 : f32 to vector<16x64xf32>
    %10 = arith.maximumf %8, %9 : vector<16x64xf32>
    %11 = arith.truncf %10 : vector<16x64xf32> to vector<16x64xbf16>
    %c0_7 = arith.constant 0 : index
    %c0_8 = arith.constant 0 : index
    %12 = vector.load %arg11[%c0_7, %c0_8] : memref<16x32xf32, #tpu.memory_space<vmem>>, vector<16x32xf32>
    %c0_9 = arith.constant 0 : index
    %c0_10 = arith.constant 0 : index
    %13 = vector.load %arg5[%c0_9, %c0_10] : memref<64x32xbf16, #tpu.memory_space<vmem>>, vector<64x32xbf16>
    %cst_11 = arith.constant dense<0.000000e+00> : vector<16x32xf32>
    %14 = tpu.matmul %11, %13, %cst_11 {dimension_numbers = #tpu.dot_dimension_numbers<[1], [0], [0], [1], [0, 0, 1, 1], [], []>} : vector<16x64xbf16>, vector<64x32xbf16>, vector<16x32xf32> -> vector<16x32xf32>
    %15 = arith.addf %12, %14 : vector<16x32xf32>
    %c0_12 = arith.constant 0 : index
    %c0_13 = arith.constant 0 : index
    %16 = vector.load %arg11[%c0_12, %c0_13] : memref<16x32xf32, #tpu.memory_space<vmem>>, vector<16x32xf32>
    tpu.vector_store %arg11[%c0_12, %c0_13], %15 {strides = array<i32>} : memref<16x32xf32, #tpu.memory_space<vmem>>, vector<16x32xf32>,
    %c0_i32_14 = arith.constant 0 : i32
    %17 = arith.cmpi eq, %arg1, %c0_i32_14 : i32
    %18 = arith.extui %17 : i1 to i32
    %c0_i32_15 = arith.constant 0 : i32
    %19 = arith.cmpi ne, %18, %c0_i32_15 : i32
    scf.if %19 {
      %c0_16 = arith.constant 0 : index
      %c0_17 = arith.constant 0 : index
      %20 = vector.load %arg11[%c0_16, %c0_17] : memref<16x32xf32, #tpu.memory_space<vmem>>, vector<16x32xf32>
      %c0_18 = arith.constant 0 : index
      %c0_19 = arith.constant 0 : index
      %21 = vector.load %arg6[%c0_18, %c0_19] : memref<1x32xf32, #tpu.memory_space<vmem>>, vector<1x32xf32>
      %22 = vector.broadcast %21 : vector<1x32xf32> to vector<16x32xf32>
      %23 = arith.addf %20, %22 : vector<16x32xf32>
      %c0_20 = arith.constant 0 : index
      %c0_21 = arith.constant 0 : index
      %24 = vector.load %arg7[%c0_20, %c0_21] : memref<16x32xbf16, #tpu.memory_space<vmem>>, vector<16x32xbf16>
      %25 = arith.extf %24 : vector<16x32xbf16> to vector<16x32xf32>
      %26 = arith.addf %23, %25 : vector<16x32xf32>
      %cst_22 = arith.constant dense<0.000000e+00> : vector<16xf32>
      %27 = vector.multi_reduction <add>, %26, %cst_22 [1] : vector<16x32xf32> to vector<16xf32>
      %28 = vector.shape_cast %27 : vector<16xf32> to vector<16x1xf32>
      %cst_23 = arith.constant 3.200000e+01 : f32
      %29 = vector.broadcast %cst_23 : f32 to vector<16x1xf32>
      %30 = arith.divf %28, %29 : vector<16x1xf32>
      %31 = vector.broadcast %30 : vector<16x1xf32> to vector<16x32xf32>
      %32 = arith.subf %26, %31 : vector<16x32xf32>
      %33 = arith.mulf %32, %32 : vector<16x32xf32>
      %cst_24 = arith.constant dense<0.000000e+00> : vector<16xf32>
      %34 = vector.multi_reduction <add>, %33, %cst_24 [1] : vector<16x32xf32> to vector<16xf32>
      %35 = vector.shape_cast %34 : vector<16xf32> to vector<16x1xf32>
      %cst_25 = arith.constant 3.200000e+01 : f32
      %36 = vector.broadcast %cst_25 : f32 to vector<16x1xf32>
      %37 = arith.divf %35, %36 : vector<16x1xf32>
      %38 = vector.broadcast %30 : vector<16x1xf32> to vector<16x32xf32>
      %39 = arith.subf %26, %38 : vector<16x32xf32>
      %cst_26 = arith.constant 9.99999996E-13 : f32
      %40 = vector.broadcast %cst_26 : f32 to vector<16x1xf32>
      %41 = arith.addf %37, %40 : vector<16x1xf32>
      %42 = math.rsqrt %41 : vector<16x1xf32>
      %43 = vector.broadcast %42 : vector<16x1xf32> to vector<16x32xf32>
      %44 = arith.mulf %39, %43 : vector<16x32xf32>
      %c0_27 = arith.constant 0 : index
      %c0_28 = arith.constant 0 : index
      %45 = vector.load %arg8[%c0_27, %c0_28] : memref<1x32xf32, #tpu.memory_space<vmem>>, vector<1x32xf32>
      %46 = vector.broadcast %45 : vector<1x32xf32> to vector<16x32xf32>
      %47 = arith.mulf %44, %46 : vector<16x32xf32>
      %c0_29 = arith.constant 0 : index
      %c0_30 = arith.constant 0 : index
      %48 = vector.load %arg9[%c0_29, %c0_30] : memref<1x32xf32, #tpu.memory_space<vmem>>, vector<1x32xf32>
      %49 = vector.broadcast %48 : vector<1x32xf32> to vector<16x32xf32>
      %50 = arith.addf %47, %49 : vector<16x32xf32>
      %51 = arith.truncf %50 : vector<16x32xf32> to vector<16x32xbf16>
      %c0_31 = arith.constant 0 : index
      %c0_32 = arith.constant 0 : index
      %52 = vector.load %arg10[%c0_31, %c0_32] : memref<16x32xbf16, #tpu.memory_space<vmem>>, vector<16x32xbf16>
      tpu.vector_store %arg10[%c0_31, %c0_32], %51 {strides = array<i32>} : memref<16x32xbf16, #tpu.memory_space<vmem>>, vector<16x32xbf16>,
    } else {
    }
    return
  }
  func.func @transform_0(%arg0: i32, %arg1: i32) -> (i32, i32) {
    %c0_i32 = arith.constant 0 : i32
    %c0_i32_0 = arith.constant 0 : i32
    return %arg0, %c0_i32 : i32, i32
  }
  func.func @transform_1(%arg0: i32, %arg1: i32) -> (i32, i32) {
    %c0_i32 = arith.constant 0 : i32
    %c0_i32_0 = arith.constant 0 : i32
    return %c0_i32, %arg1 : i32, i32
  }
  func.func @transform_2(%arg0: i32, %arg1: i32) -> (i32, i32) {
    %c0_i32 = arith.constant 0 : i32
    %c0_i32_0 = arith.constant 0 : i32
    return %c0_i32, %arg1 : i32, i32
  }
  func.func @transform_3(%arg0: i32, %arg1: i32) -> (i32, i32) {
    %c0_i32 = arith.constant 0 : i32
    %c0_i32_0 = arith.constant 0 : i32
    return %arg1, %c0_i32 : i32, i32
  }
  func.func @transform_4(%arg0: i32, %arg1: i32) -> (i32, i32) {
    %c0_i32 = arith.constant 0 : i32
    %c0_i32_0 = arith.constant 0 : i32
    %c0_i32_1 = arith.constant 0 : i32
    return %c0_i32, %c0_i32_0 : i32, i32
  }
  func.func @transform_5(%arg0: i32, %arg1: i32) -> (i32, i32) {
    %c0_i32 = arith.constant 0 : i32
    %c0_i32_0 = arith.constant 0 : i32
    return %arg0, %c0_i32 : i32, i32
  }
  func.func @transform_6(%arg0: i32, %arg1: i32) -> (i32, i32) {
    %c0_i32 = arith.constant 0 : i32
    %c0_i32_0 = arith.constant 0 : i32
    %c0_i32_1 = arith.constant 0 : i32
    return %c0_i32, %c0_i32_0 : i32, i32
  }
  func.func @transform_7(%arg0: i32, %arg1: i32) -> (i32, i32) {
    %c0_i32 = arith.constant 0 : i32
    %c0_i32_0 = arith.constant 0 : i32
    %c0_i32_1 = arith.constant 0 : i32
    return %c0_i32, %c0_i32_0 : i32, i32
  }
  func.func @transform_8(%arg0: i32, %arg1: i32) -> (i32, i32) {
    %c0_i32 = arith.constant 0 : i32
    %c0_i32_0 = arith.constant 0 : i32
    return %arg0, %c0_i32 : i32, i32
  }
}

module attributes {stable_mosaic.version = 11 : i64} {
  func.func @_attn_kernel(%arg0: i32, %arg1: i32, %arg2: i32, %arg3: memref<1x8x32xbf16, #tpu.memory_space<vmem>>, %arg4: memref<1x8x64xbf16, #tpu.memory_space<vmem>>, %arg5: memref<1x1x8xf32, #tpu.memory_space<vmem>>, %arg6: memref<1x8x1xf32, #tpu.memory_space<vmem>>, %arg7: memref<1x8x32xbf16, #tpu.memory_space<vmem>>, %arg8: memref<4x8x1xf32, #tpu.memory_space<vmem>>, %arg9: memref<4x8x1xf32, #tpu.memory_space<vmem>>, %arg10: memref<4x8x8xf32, #tpu.memory_space<vmem>>, %arg11: memref<8x32xf32, #tpu.memory_space<vmem>>, %arg12: memref<8x32xbf16, #tpu.memory_space<vmem>>) attributes {dimension_semantics = [#tpu.dimension_semantics<parallel>, #tpu.dimension_semantics<parallel>, #tpu.dimension_semantics<arbitrary>], iteration_bounds = array<i64: 2, 1, 1>, scalar_prefetch = 0 : i64, scratch_operands = 5 : i64, tpu.core_type = #tpu.core_type<tc>, window_params = [{transform_indices = @transform_0, window_bounds = array<i64: 1, 8, 32>}, {transform_indices = @transform_1, window_bounds = array<i64: 1, 8, 64>}, {transform_indices = @transform_2, window_bounds = array<i64: 1, 1, 8>}, {transform_indices = @transform_3, window_bounds = array<i64: 1, 8, 1>}, {transform_indices = @transform_4, window_bounds = array<i64: 1, 8, 32>}]} {
    %c0_i32 = arith.constant 0 : i32
    %0 = arith.cmpi eq, %arg2, %c0_i32 : i32
    %1 = arith.extui %0 : i1 to i32
    %c0_i32_0 = arith.constant 0 : i32
    %2 = arith.cmpi ne, %1, %c0_i32_0 : i32
    scf.if %2 {
      %cst_107 = arith.constant 0xFF800000 : f32
      %181 = vector.broadcast %cst_107 : f32 to vector<4x8x1xf32>
      %c0_108 = arith.constant 0 : index
      %c0_109 = arith.constant 0 : index
      %c0_110 = arith.constant 0 : index
      %182 = vector.load %arg8[%c0_108, %c0_109, %c0_110] : memref<4x8x1xf32, #tpu.memory_space<vmem>>, vector<4x8x1xf32>
      tpu.vector_store %arg8[%c0_108, %c0_109, %c0_110], %181 {strides = array<i32>} : memref<4x8x1xf32, #tpu.memory_space<vmem>>, vector<4x8x1xf32>,
      %cst_111 = arith.constant 0.000000e+00 : f32
      %183 = vector.broadcast %cst_111 : f32 to vector<4x8x1xf32>
      %c0_112 = arith.constant 0 : index
      %c0_113 = arith.constant 0 : index
      %c0_114 = arith.constant 0 : index
      %184 = vector.load %arg9[%c0_112, %c0_113, %c0_114] : memref<4x8x1xf32, #tpu.memory_space<vmem>>, vector<4x8x1xf32>
      tpu.vector_store %arg9[%c0_112, %c0_113, %c0_114], %183 {strides = array<i32>} : memref<4x8x1xf32, #tpu.memory_space<vmem>>, vector<4x8x1xf32>,
      %cst_115 = arith.constant 0.000000e+00 : f32
      %185 = vector.broadcast %cst_115 : f32 to vector<4x8x8xf32>
      %c0_116 = arith.constant 0 : index
      %c0_117 = arith.constant 0 : index
      %c0_118 = arith.constant 0 : index
      %186 = vector.load %arg10[%c0_116, %c0_117, %c0_118] : memref<4x8x8xf32, #tpu.memory_space<vmem>>, vector<4x8x8xf32>
      tpu.vector_store %arg10[%c0_116, %c0_117, %c0_118], %185 {strides = array<i32>} : memref<4x8x8xf32, #tpu.memory_space<vmem>>, vector<4x8x8xf32>,
      %c0_119 = arith.constant 0 : index
      %c0_120 = arith.constant 0 : index
      %c0_121 = arith.constant 0 : index
      %187 = vector.load %arg3[%c0_119, %c0_120, %c0_121] : memref<1x8x32xbf16, #tpu.memory_space<vmem>>, vector<1x8x32xbf16>
      %188 = vector.shape_cast %187 : vector<1x8x32xbf16> to vector<8x32xbf16>
      %189 = arith.extf %188 : vector<8x32xbf16> to vector<8x32xf32>
      %cst_122 = arith.constant 0.353553385 : f32
      %190 = vector.broadcast %cst_122 : f32 to vector<8x32xf32>
      %191 = arith.mulf %189, %190 : vector<8x32xf32>
      %192 = arith.truncf %191 : vector<8x32xf32> to vector<8x32xbf16>
      %c0_123 = arith.constant 0 : index
      %c0_124 = arith.constant 0 : index
      %193 = vector.load %arg12[%c0_123, %c0_124] : memref<8x32xbf16, #tpu.memory_space<vmem>>, vector<8x32xbf16>
      tpu.vector_store %arg12[%c0_123, %c0_124], %192 {strides = array<i32>} : memref<8x32xbf16, #tpu.memory_space<vmem>>, vector<8x32xbf16>,
    } else {
    }
    %c0 = arith.constant 0 : index
    %c0_1 = arith.constant 0 : index
    %c0_2 = arith.constant 0 : index
    %3 = vector.load %arg5[%c0, %c0_1, %c0_2] : memref<1x1x8xf32, #tpu.memory_space<vmem>>, vector<1x1x8xf32>
    %4 = vector.shape_cast %3 : vector<1x1x8xf32> to vector<1x8xf32>
    %cst = arith.constant 0.000000e+00 : f32
    %5 = vector.broadcast %cst : f32 to vector<1x8xf32>
    %6 = arith.cmpf one, %4, %5 : vector<1x8xf32>
    %c0_3 = arith.constant 0 : index
    %c0_4 = arith.constant 0 : index
    %c0_5 = arith.constant 0 : index
    %7 = vector.load %arg6[%c0_3, %c0_4, %c0_5] : memref<1x8x1xf32, #tpu.memory_space<vmem>>, vector<1x8x1xf32>
    %8 = vector.shape_cast %7 : vector<1x8x1xf32> to vector<8x1xf32>
    %cst_6 = arith.constant 0.000000e+00 : f32
    %9 = vector.broadcast %cst_6 : f32 to vector<8x1xf32>
    %10 = arith.cmpf one, %8, %9 : vector<8x1xf32>
    %11 = vector.broadcast %6 : vector<1x8xi1> to vector<8x8xi1>
    %12 = vector.broadcast %10 : vector<8x1xi1> to vector<8x8xi1>
    %13 = arith.andi %11, %12 : vector<8x8xi1>
    %c8_i32 = arith.constant 8 : i32
    %14 = arith.muli %arg1, %c8_i32 : i32
    %15 = tpu.iota {dimensions = array<i32: 0>} : vector<8x8xi32>
    %16 = vector.broadcast %14 : i32 to vector<8x8xi32>
    %17 = arith.addi %16, %15 : vector<8x8xi32>
    %c8_i32_7 = arith.constant 8 : i32
    %18 = arith.muli %arg2, %c8_i32_7 : i32
    %19 = tpu.iota {dimensions = array<i32: 1>} : vector<8x8xi32>
    %20 = vector.broadcast %18 : i32 to vector<8x8xi32>
    %21 = arith.addi %20, %19 : vector<8x8xi32>
    %22 = arith.cmpi sle, %21, %17 : vector<8x8xi32>
    %23 = arith.andi %13, %22 : vector<8x8xi1>
    %c0_8 = arith.constant 0 : index
    %c0_9 = arith.constant 0 : index
    %c0_10 = arith.constant 0 : index
    %24 = vector.load %arg4[%c0_8, %c0_9, %c0_10] : memref<1x8x64xbf16, #tpu.memory_space<vmem>>, vector<1x8x64xbf16>
    %25 = vector.shape_cast %24 : vector<1x8x64xbf16> to vector<8x64xbf16>
    %c0_11 = arith.constant 0 : index
    %c0_12 = arith.constant 0 : index
    %26 = vector.load %arg12[%c0_11, %c0_12] : memref<8x32xbf16, #tpu.memory_space<vmem>>, vector<8x8xbf16>
    %27 = vector.extract_strided_slice %25 {offsets = [0, 0], sizes = [8, 8], strides = [1, 1]} : vector<8x64xbf16> to vector<8x8xbf16>
    %28 = vector.extract_strided_slice %25 {offsets = [0, 32], sizes = [8, 8], strides = [1, 1]} : vector<8x64xbf16> to vector<8x8xbf16>
    %cst_13 = arith.constant dense<0.000000e+00> : vector<8x8xf32>
    %29 = tpu.matmul %26, %27, %cst_13 {dimension_numbers = #tpu.dot_dimension_numbers<[1], [1], [0], [0], [0, 0, 1, 0], [], []>} : vector<8x8xbf16>, vector<8x8xbf16>, vector<8x8xf32> -> vector<8x8xf32>
    %cst_14 = arith.constant -1.000000e+04 : f32
    %30 = vector.broadcast %cst_14 : f32 to vector<8x8xf32>
    %31 = arith.select %23, %29, %30 : vector<8x8xi1>, vector<8x8xf32>
    %c0_15 = arith.constant 0 : index
    %c0_16 = arith.constant 0 : index
    %c0_17 = arith.constant 0 : index
    %32 = vector.load %arg8[%c0_15, %c0_16, %c0_17] : memref<4x8x1xf32, #tpu.memory_space<vmem>>, vector<1x8x1xf32>
    %33 = vector.shape_cast %32 : vector<1x8x1xf32> to vector<8x1xf32>
    %cst_18 = arith.constant dense<0xFF800000> : vector<8xf32>
    %34 = vector.multi_reduction <maximumf>, %31, %cst_18 [1] : vector<8x8xf32> to vector<8xf32>
    %35 = vector.shape_cast %34 : vector<8xf32> to vector<8x1xf32>
    %36 = arith.maximumf %33, %35 : vector<8x1xf32>
    %37 = arith.subf %33, %36 : vector<8x1xf32>
    %38 = math.exp %37 : vector<8x1xf32>
    %39 = vector.broadcast %36 : vector<8x1xf32> to vector<8x8xf32>
    %40 = arith.subf %31, %39 : vector<8x8xf32>
    %41 = math.exp %40 : vector<8x8xf32>
    %c0_19 = arith.constant 0 : index
    %c0_20 = arith.constant 0 : index
    %c0_21 = arith.constant 0 : index
    %42 = vector.load %arg9[%c0_19, %c0_20, %c0_21] : memref<4x8x1xf32, #tpu.memory_space<vmem>>, vector<1x8x1xf32>
    %43 = vector.shape_cast %42 : vector<1x8x1xf32> to vector<8x1xf32>
    %44 = arith.mulf %38, %43 : vector<8x1xf32>
    %cst_22 = arith.constant dense<0.000000e+00> : vector<8xf32>
    %45 = vector.multi_reduction <add>, %41, %cst_22 [1] : vector<8x8xf32> to vector<8xf32>
    %46 = vector.shape_cast %45 : vector<8xf32> to vector<8x1xf32>
    %47 = arith.addf %44, %46 : vector<8x1xf32>
    %c0_23 = arith.constant 0 : index
    %c0_24 = arith.constant 0 : index
    %c0_25 = arith.constant 0 : index
    %48 = vector.load %arg9[%c0_23, %c0_24, %c0_25] : memref<4x8x1xf32, #tpu.memory_space<vmem>>, vector<1x8x1xf32>
    %49 = vector.shape_cast %48 : vector<1x8x1xf32> to vector<8x1xf32>
    %50 = vector.shape_cast %47 : vector<8x1xf32> to vector<1x8x1xf32>
    tpu.vector_store %arg9[%c0_23, %c0_24, %c0_25], %50 {strides = array<i32>} : memref<4x8x1xf32, #tpu.memory_space<vmem>>, vector<1x8x1xf32>,
    %c0_26 = arith.constant 0 : index
    %c0_27 = arith.constant 0 : index
    %c0_28 = arith.constant 0 : index
    %51 = vector.load %arg10[%c0_26, %c0_27, %c0_28] : memref<4x8x8xf32, #tpu.memory_space<vmem>>, vector<1x8x8xf32>
    %52 = vector.shape_cast %51 : vector<1x8x8xf32> to vector<8x8xf32>
    %53 = vector.broadcast %38 : vector<8x1xf32> to vector<8x8xf32>
    %54 = arith.mulf %53, %52 : vector<8x8xf32>
    %55 = arith.truncf %41 : vector<8x8xf32> to vector<8x8xbf16>
    %cst_29 = arith.constant dense<0.000000e+00> : vector<8x8xf32>
    %56 = tpu.matmul %55, %28, %cst_29 {dimension_numbers = #tpu.dot_dimension_numbers<[1], [0], [0], [1], [0, 0, 1, 1], [], []>} : vector<8x8xbf16>, vector<8x8xbf16>, vector<8x8xf32> -> vector<8x8xf32>
    %57 = arith.addf %54, %56 : vector<8x8xf32>
    %c0_30 = arith.constant 0 : index
    %c0_31 = arith.constant 0 : index
    %c0_32 = arith.constant 0 : index
    %58 = vector.load %arg10[%c0_30, %c0_31, %c0_32] : memref<4x8x8xf32, #tpu.memory_space<vmem>>, vector<1x8x8xf32>
    %59 = vector.shape_cast %58 : vector<1x8x8xf32> to vector<8x8xf32>
    %60 = vector.shape_cast %57 : vector<8x8xf32> to vector<1x8x8xf32>
    tpu.vector_store %arg10[%c0_30, %c0_31, %c0_32], %60 {strides = array<i32>} : memref<4x8x8xf32, #tpu.memory_space<vmem>>, vector<1x8x8xf32>,
    %c0_33 = arith.constant 0 : index
    %c0_34 = arith.constant 0 : index
    %c0_35 = arith.constant 0 : index
    %61 = vector.load %arg8[%c0_33, %c0_34, %c0_35] : memref<4x8x1xf32, #tpu.memory_space<vmem>>, vector<1x8x1xf32>
    %62 = vector.shape_cast %61 : vector<1x8x1xf32> to vector<8x1xf32>
    %63 = vector.shape_cast %36 : vector<8x1xf32> to vector<1x8x1xf32>
    tpu.vector_store %arg8[%c0_33, %c0_34, %c0_35], %63 {strides = array<i32>} : memref<4x8x1xf32, #tpu.memory_space<vmem>>, vector<1x8x1xf32>,
    %c0_36 = arith.constant 0 : index
    %c8 = arith.constant 8 : index
    %64 = vector.load %arg12[%c0_36, %c8] : memref<8x32xbf16, #tpu.memory_space<vmem>>, vector<8x8xbf16>
    %65 = vector.extract_strided_slice %25 {offsets = [0, 8], sizes = [8, 8], strides = [1, 1]} : vector<8x64xbf16> to vector<8x8xbf16>
    %66 = vector.extract_strided_slice %25 {offsets = [0, 40], sizes = [8, 8], strides = [1, 1]} : vector<8x64xbf16> to vector<8x8xbf16>
    %cst_37 = arith.constant dense<0.000000e+00> : vector<8x8xf32>
    %67 = tpu.matmul %64, %65, %cst_37 {dimension_numbers = #tpu.dot_dimension_numbers<[1], [1], [0], [0], [0, 0, 1, 0], [], []>} : vector<8x8xbf16>, vector<8x8xbf16>, vector<8x8xf32> -> vector<8x8xf32>
    %cst_38 = arith.constant -1.000000e+04 : f32
    %68 = vector.broadcast %cst_38 : f32 to vector<8x8xf32>
    %69 = arith.select %23, %67, %68 : vector<8x8xi1>, vector<8x8xf32>
    %c1 = arith.constant 1 : index
    %c0_39 = arith.constant 0 : index
    %c0_40 = arith.constant 0 : index
    %70 = vector.load %arg8[%c1, %c0_39, %c0_40] : memref<4x8x1xf32, #tpu.memory_space<vmem>>, vector<1x8x1xf32>
    %71 = vector.shape_cast %70 : vector<1x8x1xf32> to vector<8x1xf32>
    %cst_41 = arith.constant dense<0xFF800000> : vector<8xf32>
    %72 = vector.multi_reduction <maximumf>, %69, %cst_41 [1] : vector<8x8xf32> to vector<8xf32>
    %73 = vector.shape_cast %72 : vector<8xf32> to vector<8x1xf32>
    %74 = arith.maximumf %71, %73 : vector<8x1xf32>
    %75 = arith.subf %71, %74 : vector<8x1xf32>
    %76 = math.exp %75 : vector<8x1xf32>
    %77 = vector.broadcast %74 : vector<8x1xf32> to vector<8x8xf32>
    %78 = arith.subf %69, %77 : vector<8x8xf32>
    %79 = math.exp %78 : vector<8x8xf32>
    %c1_42 = arith.constant 1 : index
    %c0_43 = arith.constant 0 : index
    %c0_44 = arith.constant 0 : index
    %80 = vector.load %arg9[%c1_42, %c0_43, %c0_44] : memref<4x8x1xf32, #tpu.memory_space<vmem>>, vector<1x8x1xf32>
    %81 = vector.shape_cast %80 : vector<1x8x1xf32> to vector<8x1xf32>
    %82 = arith.mulf %76, %81 : vector<8x1xf32>
    %cst_45 = arith.constant dense<0.000000e+00> : vector<8xf32>
    %83 = vector.multi_reduction <add>, %79, %cst_45 [1] : vector<8x8xf32> to vector<8xf32>
    %84 = vector.shape_cast %83 : vector<8xf32> to vector<8x1xf32>
    %85 = arith.addf %82, %84 : vector<8x1xf32>
    %c1_46 = arith.constant 1 : index
    %c0_47 = arith.constant 0 : index
    %c0_48 = arith.constant 0 : index
    %86 = vector.load %arg9[%c1_46, %c0_47, %c0_48] : memref<4x8x1xf32, #tpu.memory_space<vmem>>, vector<1x8x1xf32>
    %87 = vector.shape_cast %86 : vector<1x8x1xf32> to vector<8x1xf32>
    %88 = vector.shape_cast %85 : vector<8x1xf32> to vector<1x8x1xf32>
    tpu.vector_store %arg9[%c1_46, %c0_47, %c0_48], %88 {strides = array<i32>} : memref<4x8x1xf32, #tpu.memory_space<vmem>>, vector<1x8x1xf32>,
    %c1_49 = arith.constant 1 : index
    %c0_50 = arith.constant 0 : index
    %c0_51 = arith.constant 0 : index
    %89 = vector.load %arg10[%c1_49, %c0_50, %c0_51] : memref<4x8x8xf32, #tpu.memory_space<vmem>>, vector<1x8x8xf32>
    %90 = vector.shape_cast %89 : vector<1x8x8xf32> to vector<8x8xf32>
    %91 = vector.broadcast %76 : vector<8x1xf32> to vector<8x8xf32>
    %92 = arith.mulf %91, %90 : vector<8x8xf32>
    %93 = arith.truncf %79 : vector<8x8xf32> to vector<8x8xbf16>
    %cst_52 = arith.constant dense<0.000000e+00> : vector<8x8xf32>
    %94 = tpu.matmul %93, %66, %cst_52 {dimension_numbers = #tpu.dot_dimension_numbers<[1], [0], [0], [1], [0, 0, 1, 1], [], []>} : vector<8x8xbf16>, vector<8x8xbf16>, vector<8x8xf32> -> vector<8x8xf32>
    %95 = arith.addf %92, %94 : vector<8x8xf32>
    %c1_53 = arith.constant 1 : index
    %c0_54 = arith.constant 0 : index
    %c0_55 = arith.constant 0 : index
    %96 = vector.load %arg10[%c1_53, %c0_54, %c0_55] : memref<4x8x8xf32, #tpu.memory_space<vmem>>, vector<1x8x8xf32>
    %97 = vector.shape_cast %96 : vector<1x8x8xf32> to vector<8x8xf32>
    %98 = vector.shape_cast %95 : vector<8x8xf32> to vector<1x8x8xf32>
    tpu.vector_store %arg10[%c1_53, %c0_54, %c0_55], %98 {strides = array<i32>} : memref<4x8x8xf32, #tpu.memory_space<vmem>>, vector<1x8x8xf32>,
    %c1_56 = arith.constant 1 : index
    %c0_57 = arith.constant 0 : index
    %c0_58 = arith.constant 0 : index
    %99 = vector.load %arg8[%c1_56, %c0_57, %c0_58] : memref<4x8x1xf32, #tpu.memory_space<vmem>>, vector<1x8x1xf32>
    %100 = vector.shape_cast %99 : vector<1x8x1xf32> to vector<8x1xf32>
    %101 = vector.shape_cast %74 : vector<8x1xf32> to vector<1x8x1xf32>
    tpu.vector_store %arg8[%c1_56, %c0_57, %c0_58], %101 {strides = array<i32>} : memref<4x8x1xf32, #tpu.memory_space<vmem>>, vector<1x8x1xf32>,
    %c0_59 = arith.constant 0 : index
    %c16 = arith.constant 16 : index
    %102 = vector.load %arg12[%c0_59, %c16] : memref<8x32xbf16, #tpu.memory_space<vmem>>, vector<8x8xbf16>
    %103 = vector.extract_strided_slice %25 {offsets = [0, 16], sizes = [8, 8], strides = [1, 1]} : vector<8x64xbf16> to vector<8x8xbf16>
    %104 = vector.extract_strided_slice %25 {offsets = [0, 48], sizes = [8, 8], strides = [1, 1]} : vector<8x64xbf16> to vector<8x8xbf16>
    %cst_60 = arith.constant dense<0.000000e+00> : vector<8x8xf32>
    %105 = tpu.matmul %102, %103, %cst_60 {dimension_numbers = #tpu.dot_dimension_numbers<[1], [1], [0], [0], [0, 0, 1, 0], [], []>} : vector<8x8xbf16>, vector<8x8xbf16>, vector<8x8xf32> -> vector<8x8xf32>
    %cst_61 = arith.constant -1.000000e+04 : f32
    %106 = vector.broadcast %cst_61 : f32 to vector<8x8xf32>
    %107 = arith.select %23, %105, %106 : vector<8x8xi1>, vector<8x8xf32>
    %c2 = arith.constant 2 : index
    %c0_62 = arith.constant 0 : index
    %c0_63 = arith.constant 0 : index
    %108 = vector.load %arg8[%c2, %c0_62, %c0_63] : memref<4x8x1xf32, #tpu.memory_space<vmem>>, vector<1x8x1xf32>
    %109 = vector.shape_cast %108 : vector<1x8x1xf32> to vector<8x1xf32>
    %cst_64 = arith.constant dense<0xFF800000> : vector<8xf32>
    %110 = vector.multi_reduction <maximumf>, %107, %cst_64 [1] : vector<8x8xf32> to vector<8xf32>
    %111 = vector.shape_cast %110 : vector<8xf32> to vector<8x1xf32>
    %112 = arith.maximumf %109, %111 : vector<8x1xf32>
    %113 = arith.subf %109, %112 : vector<8x1xf32>
    %114 = math.exp %113 : vector<8x1xf32>
    %115 = vector.broadcast %112 : vector<8x1xf32> to vector<8x8xf32>
    %116 = arith.subf %107, %115 : vector<8x8xf32>
    %117 = math.exp %116 : vector<8x8xf32>
    %c2_65 = arith.constant 2 : index
    %c0_66 = arith.constant 0 : index
    %c0_67 = arith.constant 0 : index
    %118 = vector.load %arg9[%c2_65, %c0_66, %c0_67] : memref<4x8x1xf32, #tpu.memory_space<vmem>>, vector<1x8x1xf32>
    %119 = vector.shape_cast %118 : vector<1x8x1xf32> to vector<8x1xf32>
    %120 = arith.mulf %114, %119 : vector<8x1xf32>
    %cst_68 = arith.constant dense<0.000000e+00> : vector<8xf32>
    %121 = vector.multi_reduction <add>, %117, %cst_68 [1] : vector<8x8xf32> to vector<8xf32>
    %122 = vector.shape_cast %121 : vector<8xf32> to vector<8x1xf32>
    %123 = arith.addf %120, %122 : vector<8x1xf32>
    %c2_69 = arith.constant 2 : index
    %c0_70 = arith.constant 0 : index
    %c0_71 = arith.constant 0 : index
    %124 = vector.load %arg9[%c2_69, %c0_70, %c0_71] : memref<4x8x1xf32, #tpu.memory_space<vmem>>, vector<1x8x1xf32>
    %125 = vector.shape_cast %124 : vector<1x8x1xf32> to vector<8x1xf32>
    %126 = vector.shape_cast %123 : vector<8x1xf32> to vector<1x8x1xf32>
    tpu.vector_store %arg9[%c2_69, %c0_70, %c0_71], %126 {strides = array<i32>} : memref<4x8x1xf32, #tpu.memory_space<vmem>>, vector<1x8x1xf32>,
    %c2_72 = arith.constant 2 : index
    %c0_73 = arith.constant 0 : index
    %c0_74 = arith.constant 0 : index
    %127 = vector.load %arg10[%c2_72, %c0_73, %c0_74] : memref<4x8x8xf32, #tpu.memory_space<vmem>>, vector<1x8x8xf32>
    %128 = vector.shape_cast %127 : vector<1x8x8xf32> to vector<8x8xf32>
    %129 = vector.broadcast %114 : vector<8x1xf32> to vector<8x8xf32>
    %130 = arith.mulf %129, %128 : vector<8x8xf32>
    %131 = arith.truncf %117 : vector<8x8xf32> to vector<8x8xbf16>
    %cst_75 = arith.constant dense<0.000000e+00> : vector<8x8xf32>
    %132 = tpu.matmul %131, %104, %cst_75 {dimension_numbers = #tpu.dot_dimension_numbers<[1], [0], [0], [1], [0, 0, 1, 1], [], []>} : vector<8x8xbf16>, vector<8x8xbf16>, vector<8x8xf32> -> vector<8x8xf32>
    %133 = arith.addf %130, %132 : vector<8x8xf32>
    %c2_76 = arith.constant 2 : index
    %c0_77 = arith.constant 0 : index
    %c0_78 = arith.constant 0 : index
    %134 = vector.load %arg10[%c2_76, %c0_77, %c0_78] : memref<4x8x8xf32, #tpu.memory_space<vmem>>, vector<1x8x8xf32>
    %135 = vector.shape_cast %134 : vector<1x8x8xf32> to vector<8x8xf32>
    %136 = vector.shape_cast %133 : vector<8x8xf32> to vector<1x8x8xf32>
    tpu.vector_store %arg10[%c2_76, %c0_77, %c0_78], %136 {strides = array<i32>} : memref<4x8x8xf32, #tpu.memory_space<vmem>>, vector<1x8x8xf32>,
    %c2_79 = arith.constant 2 : index
    %c0_80 = arith.constant 0 : index
    %c0_81 = arith.constant 0 : index
    %137 = vector.load %arg8[%c2_79, %c0_80, %c0_81] : memref<4x8x1xf32, #tpu.memory_space<vmem>>, vector<1x8x1xf32>
    %138 = vector.shape_cast %137 : vector<1x8x1xf32> to vector<8x1xf32>
    %139 = vector.shape_cast %112 : vector<8x1xf32> to vector<1x8x1xf32>
    tpu.vector_store %arg8[%c2_79, %c0_80, %c0_81], %139 {strides = array<i32>} : memref<4x8x1xf32, #tpu.memory_space<vmem>>, vector<1x8x1xf32>,
    %c0_82 = arith.constant 0 : index
    %c24 = arith.constant 24 : index
    %140 = vector.load %arg12[%c0_82, %c24] : memref<8x32xbf16, #tpu.memory_space<vmem>>, vector<8x8xbf16>
    %141 = vector.extract_strided_slice %25 {offsets = [0, 24], sizes = [8, 8], strides = [1, 1]} : vector<8x64xbf16> to vector<8x8xbf16>
    %142 = vector.extract_strided_slice %25 {offsets = [0, 56], sizes = [8, 8], strides = [1, 1]} : vector<8x64xbf16> to vector<8x8xbf16>
    %cst_83 = arith.constant dense<0.000000e+00> : vector<8x8xf32>
    %143 = tpu.matmul %140, %141, %cst_83 {dimension_numbers = #tpu.dot_dimension_numbers<[1], [1], [0], [0], [0, 0, 1, 0], [], []>} : vector<8x8xbf16>, vector<8x8xbf16>, vector<8x8xf32> -> vector<8x8xf32>
    %cst_84 = arith.constant -1.000000e+04 : f32
    %144 = vector.broadcast %cst_84 : f32 to vector<8x8xf32>
    %145 = arith.select %23, %143, %144 : vector<8x8xi1>, vector<8x8xf32>
    %c3 = arith.constant 3 : index
    %c0_85 = arith.constant 0 : index
    %c0_86 = arith.constant 0 : index
    %146 = vector.load %arg8[%c3, %c0_85, %c0_86] : memref<4x8x1xf32, #tpu.memory_space<vmem>>, vector<1x8x1xf32>
    %147 = vector.shape_cast %146 : vector<1x8x1xf32> to vector<8x1xf32>
    %cst_87 = arith.constant dense<0xFF800000> : vector<8xf32>
    %148 = vector.multi_reduction <maximumf>, %145, %cst_87 [1] : vector<8x8xf32> to vector<8xf32>
    %149 = vector.shape_cast %148 : vector<8xf32> to vector<8x1xf32>
    %150 = arith.maximumf %147, %149 : vector<8x1xf32>
    %151 = arith.subf %147, %150 : vector<8x1xf32>
    %152 = math.exp %151 : vector<8x1xf32>
    %153 = vector.broadcast %150 : vector<8x1xf32> to vector<8x8xf32>
    %154 = arith.subf %145, %153 : vector<8x8xf32>
    %155 = math.exp %154 : vector<8x8xf32>
    %c3_88 = arith.constant 3 : index
    %c0_89 = arith.constant 0 : index
    %c0_90 = arith.constant 0 : index
    %156 = vector.load %arg9[%c3_88, %c0_89, %c0_90] : memref<4x8x1xf32, #tpu.memory_space<vmem>>, vector<1x8x1xf32>
    %157 = vector.shape_cast %156 : vector<1x8x1xf32> to vector<8x1xf32>
    %158 = arith.mulf %152, %157 : vector<8x1xf32>
    %cst_91 = arith.constant dense<0.000000e+00> : vector<8xf32>
    %159 = vector.multi_reduction <add>, %155, %cst_91 [1] : vector<8x8xf32> to vector<8xf32>
    %160 = vector.shape_cast %159 : vector<8xf32> to vector<8x1xf32>
    %161 = arith.addf %158, %160 : vector<8x1xf32>
    %c3_92 = arith.constant 3 : index
    %c0_93 = arith.constant 0 : index
    %c0_94 = arith.constant 0 : index
    %162 = vector.load %arg9[%c3_92, %c0_93, %c0_94] : memref<4x8x1xf32, #tpu.memory_space<vmem>>, vector<1x8x1xf32>
    %163 = vector.shape_cast %162 : vector<1x8x1xf32> to vector<8x1xf32>
    %164 = vector.shape_cast %161 : vector<8x1xf32> to vector<1x8x1xf32>
    tpu.vector_store %arg9[%c3_92, %c0_93, %c0_94], %164 {strides = array<i32>} : memref<4x8x1xf32, #tpu.memory_space<vmem>>, vector<1x8x1xf32>,
    %c3_95 = arith.constant 3 : index
    %c0_96 = arith.constant 0 : index
    %c0_97 = arith.constant 0 : index
    %165 = vector.load %arg10[%c3_95, %c0_96, %c0_97] : memref<4x8x8xf32, #tpu.memory_space<vmem>>, vector<1x8x8xf32>
    %166 = vector.shape_cast %165 : vector<1x8x8xf32> to vector<8x8xf32>
    %167 = vector.broadcast %152 : vector<8x1xf32> to vector<8x8xf32>
    %168 = arith.mulf %167, %166 : vector<8x8xf32>
    %169 = arith.truncf %155 : vector<8x8xf32> to vector<8x8xbf16>
    %cst_98 = arith.constant dense<0.000000e+00> : vector<8x8xf32>
    %170 = tpu.matmul %169, %142, %cst_98 {dimension_numbers = #tpu.dot_dimension_numbers<[1], [0], [0], [1], [0, 0, 1, 1], [], []>} : vector<8x8xbf16>, vector<8x8xbf16>, vector<8x8xf32> -> vector<8x8xf32>
    %171 = arith.addf %168, %170 : vector<8x8xf32>
    %c3_99 = arith.constant 3 : index
    %c0_100 = arith.constant 0 : index
    %c0_101 = arith.constant 0 : index
    %172 = vector.load %arg10[%c3_99, %c0_100, %c0_101] : memref<4x8x8xf32, #tpu.memory_space<vmem>>, vector<1x8x8xf32>
    %173 = vector.shape_cast %172 : vector<1x8x8xf32> to vector<8x8xf32>
    %174 = vector.shape_cast %171 : vector<8x8xf32> to vector<1x8x8xf32>
    tpu.vector_store %arg10[%c3_99, %c0_100, %c0_101], %174 {strides = array<i32>} : memref<4x8x8xf32, #tpu.memory_space<vmem>>, vector<1x8x8xf32>,
    %c3_102 = arith.constant 3 : index
    %c0_103 = arith.constant 0 : index
    %c0_104 = arith.constant 0 : index
    %175 = vector.load %arg8[%c3_102, %c0_103, %c0_104] : memref<4x8x1xf32, #tpu.memory_space<vmem>>, vector<1x8x1xf32>
    %176 = vector.shape_cast %175 : vector<1x8x1xf32> to vector<8x1xf32>
    %177 = vector.shape_cast %150 : vector<8x1xf32> to vector<1x8x1xf32>
    tpu.vector_store %arg8[%c3_102, %c0_103, %c0_104], %177 {strides = array<i32>} : memref<4x8x1xf32, #tpu.memory_space<vmem>>, vector<1x8x1xf32>,
    %c0_i32_105 = arith.constant 0 : i32
    %178 = arith.cmpi eq, %arg2, %c0_i32_105 : i32
    %179 = arith.extui %178 : i1 to i32
    %c0_i32_106 = arith.constant 0 : i32
    %180 = arith.cmpi ne, %179, %c0_i32_106 : i32
    scf.if %180 {
      %c0_107 = arith.constant 0 : index
      %c0_108 = arith.constant 0 : index
      %c0_109 = arith.constant 0 : index
      %181 = vector.load %arg9[%c0_107, %c0_108, %c0_109] : memref<4x8x1xf32, #tpu.memory_space<vmem>>, vector<1x8x1xf32>
      %182 = vector.shape_cast %181 : vector<1x8x1xf32> to vector<8x1xf32>
      %183 = tpu.reciprocal %182 {approx = true} : vector<8x1xf32> -> vector<8x1xf32>
      %c0_110 = arith.constant 0 : index
      %c0_111 = arith.constant 0 : index
      %c0_112 = arith.constant 0 : index
      %184 = vector.load %arg10[%c0_110, %c0_111, %c0_112] : memref<4x8x8xf32, #tpu.memory_space<vmem>>, vector<1x8x8xf32>
      %185 = vector.shape_cast %184 : vector<1x8x8xf32> to vector<8x8xf32>
      %186 = vector.broadcast %183 : vector<8x1xf32> to vector<8x8xf32>
      %187 = arith.mulf %185, %186 : vector<8x8xf32>
      %c0_113 = arith.constant 0 : index
      %c0_114 = arith.constant 0 : index
      %188 = vector.load %arg11[%c0_113, %c0_114] : memref<8x32xf32, #tpu.memory_space<vmem>>, vector<8x8xf32>
      tpu.vector_store %arg11[%c0_113, %c0_114], %187 {strides = array<i32>} : memref<8x32xf32, #tpu.memory_space<vmem>>, vector<8x8xf32>,
      %c1_115 = arith.constant 1 : index
      %c0_116 = arith.constant 0 : index
      %c0_117 = arith.constant 0 : index
      %189 = vector.load %arg9[%c1_115, %c0_116, %c0_117] : memref<4x8x1xf32, #tpu.memory_space<vmem>>, vector<1x8x1xf32>
      %190 = vector.shape_cast %189 : vector<1x8x1xf32> to vector<8x1xf32>
      %191 = tpu.reciprocal %190 {approx = true} : vector<8x1xf32> -> vector<8x1xf32>
      %c1_118 = arith.constant 1 : index
      %c0_119 = arith.constant 0 : index
      %c0_120 = arith.constant 0 : index
      %192 = vector.load %arg10[%c1_118, %c0_119, %c0_120] : memref<4x8x8xf32, #tpu.memory_space<vmem>>, vector<1x8x8xf32>
      %193 = vector.shape_cast %192 : vector<1x8x8xf32> to vector<8x8xf32>
      %194 = vector.broadcast %191 : vector<8x1xf32> to vector<8x8xf32>
      %195 = arith.mulf %193, %194 : vector<8x8xf32>
      %c0_121 = arith.constant 0 : index
      %c8_122 = arith.constant 8 : index
      %196 = vector.load %arg11[%c0_121, %c8_122] : memref<8x32xf32, #tpu.memory_space<vmem>>, vector<8x8xf32>
      tpu.vector_store %arg11[%c0_121, %c8_122], %195 {strides = array<i32>} : memref<8x32xf32, #tpu.memory_space<vmem>>, vector<8x8xf32>,
      %c2_123 = arith.constant 2 : index
      %c0_124 = arith.constant 0 : index
      %c0_125 = arith.constant 0 : index
      %197 = vector.load %arg9[%c2_123, %c0_124, %c0_125] : memref<4x8x1xf32, #tpu.memory_space<vmem>>, vector<1x8x1xf32>
      %198 = vector.shape_cast %197 : vector<1x8x1xf32> to vector<8x1xf32>
      %199 = tpu.reciprocal %198 {approx = true} : vector<8x1xf32> -> vector<8x1xf32>
      %c2_126 = arith.constant 2 : index
      %c0_127 = arith.constant 0 : index
      %c0_128 = arith.constant 0 : index
      %200 = vector.load %arg10[%c2_126, %c0_127, %c0_128] : memref<4x8x8xf32, #tpu.memory_space<vmem>>, vector<1x8x8xf32>
      %201 = vector.shape_cast %200 : vector<1x8x8xf32> to vector<8x8xf32>
      %202 = vector.broadcast %199 : vector<8x1xf32> to vector<8x8xf32>
      %203 = arith.mulf %201, %202 : vector<8x8xf32>
      %c0_129 = arith.constant 0 : index
      %c16_130 = arith.constant 16 : index
      %204 = vector.load %arg11[%c0_129, %c16_130] : memref<8x32xf32, #tpu.memory_space<vmem>>, vector<8x8xf32>
      tpu.vector_store %arg11[%c0_129, %c16_130], %203 {strides = array<i32>} : memref<8x32xf32, #tpu.memory_space<vmem>>, vector<8x8xf32>,
      %c3_131 = arith.constant 3 : index
      %c0_132 = arith.constant 0 : index
      %c0_133 = arith.constant 0 : index
      %205 = vector.load %arg9[%c3_131, %c0_132, %c0_133] : memref<4x8x1xf32, #tpu.memory_space<vmem>>, vector<1x8x1xf32>
      %206 = vector.shape_cast %205 : vector<1x8x1xf32> to vector<8x1xf32>
      %207 = tpu.reciprocal %206 {approx = true} : vector<8x1xf32> -> vector<8x1xf32>
      %c3_134 = arith.constant 3 : index
      %c0_135 = arith.constant 0 : index
      %c0_136 = arith.constant 0 : index
      %208 = vector.load %arg10[%c3_134, %c0_135, %c0_136] : memref<4x8x8xf32, #tpu.memory_space<vmem>>, vector<1x8x8xf32>
      %209 = vector.shape_cast %208 : vector<1x8x8xf32> to vector<8x8xf32>
      %210 = vector.broadcast %207 : vector<8x1xf32> to vector<8x8xf32>
      %211 = arith.mulf %209, %210 : vector<8x8xf32>
      %c0_137 = arith.constant 0 : index
      %c24_138 = arith.constant 24 : index
      %212 = vector.load %arg11[%c0_137, %c24_138] : memref<8x32xf32, #tpu.memory_space<vmem>>, vector<8x8xf32>
      tpu.vector_store %arg11[%c0_137, %c24_138], %211 {strides = array<i32>} : memref<8x32xf32, #tpu.memory_space<vmem>>, vector<8x8xf32>,
      %c0_139 = arith.constant 0 : index
      %c0_140 = arith.constant 0 : index
      %213 = vector.load %arg11[%c0_139, %c0_140] : memref<8x32xf32, #tpu.memory_space<vmem>>, vector<8x32xf32>
      %214 = arith.truncf %213 : vector<8x32xf32> to vector<8x32xbf16>
      %c0_141 = arith.constant 0 : index
      %c0_142 = arith.constant 0 : index
      %c0_143 = arith.constant 0 : index
      %215 = vector.load %arg7[%c0_141, %c0_142, %c0_143] : memref<1x8x32xbf16, #tpu.memory_space<vmem>>, vector<1x8x32xbf16>
      %216 = vector.shape_cast %215 : vector<1x8x32xbf16> to vector<8x32xbf16>
      %217 = vector.shape_cast %214 : vector<8x32xbf16> to vector<1x8x32xbf16>
      tpu.vector_store %arg7[%c0_141, %c0_142, %c0_143], %217 {strides = array<i32>} : memref<1x8x32xbf16, #tpu.memory_space<vmem>>, vector<1x8x32xbf16>,
    } else {
    }
    return
  }
  func.func @transform_0(%arg0: i32, %arg1: i32, %arg2: i32) -> (i32, i32, i32) {
    %c0_i32 = arith.constant 0 : i32
    %c0_i32_0 = arith.constant 0 : i32
    return %arg0, %arg1, %c0_i32 : i32, i32, i32
  }
  func.func @transform_1(%arg0: i32, %arg1: i32, %arg2: i32) -> (i32, i32, i32) {
    %c0_i32 = arith.constant 0 : i32
    %c0_i32_0 = arith.constant 0 : i32
    return %arg0, %arg2, %c0_i32 : i32, i32, i32
  }
  func.func @transform_2(%arg0: i32, %arg1: i32, %arg2: i32) -> (i32, i32, i32) {
    %c0_i32 = arith.constant 0 : i32
    %c0_i32_0 = arith.constant 0 : i32
    return %arg0, %c0_i32, %arg2 : i32, i32, i32
  }
  func.func @transform_3(%arg0: i32, %arg1: i32, %arg2: i32) -> (i32, i32, i32) {
    %c0_i32 = arith.constant 0 : i32
    %c0_i32_0 = arith.constant 0 : i32
    return %arg0, %arg1, %c0_i32 : i32, i32, i32
  }
  func.func @transform_4(%arg0: i32, %arg1: i32, %arg2: i32) -> (i32, i32, i32) {
    %c0_i32 = arith.constant 0 : i32
    %c0_i32_0 = arith.constant 0 : i32
    return %arg0, %arg1, %c0_i32 : i32, i32, i32
  }
}

</mosaic_0001>

<llo_original>
// kernel: transformer_forward.29
$region0: #{transformer_forward.29}
  #allocation0 [shape = 'u32[]', space=smem, size = 0x4, offset = 0x4, fixed_abs, tag = 'smem constant byte address 0x4 - core index']
  #allocation1 [shape = 'u32[144,128]{1,0:T(1,128)}', space=vmem, size = 0x12000, scoped, tag = 'internal scratch']
  #allocation2 [shape = 'f32[16,32]{1,0:T(8,128)}', space=vmem, size = 0x2000, scoped, tag = 'scratch operand']
  %s0 = inlined_call_operand.vmem [shape: bf16[16,32], index: 0, kind: input, shape index: {}]
  %s1 = inlined_call_operand.vmem [shape: bf16[32,32], index: 1, kind: input, shape index: {}]
  %s2 = inlined_call_operand.vmem [shape: f32[1,32], index: 2, kind: input, shape index: {}]
  %s3 = inlined_call_operand.vmem [shape: bf16[16,32], index: 3, kind: output, shape index: {}]
  %s4 = sld [smem:[#allocation0]]
  $region30: #{transformer_forward.29} parent=0
    _
  %s6 = ssub.s32 1, %s4
  %s7 = scalar_select 0, %s6, %s4
  // Predicated region
  $region2: #{transformer_forward.29} parent=0 // pred_check
    _
  $region3: #{transformer_forward.29} parent=0 // pred_check_branch
    %9 = sbr.rel (0) target = $region5
  $region4: #{transformer_forward.29} parent=0 // pred_region
    _
  $region5: #{transformer_forward.29} parent=0 // pred_fallthru
    _
  // Predicated region
  $region6: #{transformer_forward.29} parent=0 // pred_check
    _
  $region7: #{transformer_forward.29} parent=0 // pred_check_branch
    %11 = sbr.rel (0) target = $region9
  $region8: #{transformer_forward.29} parent=0 // pred_region
    _
  $region9: #{transformer_forward.29} parent=0 // pred_fallthru
    _
  // Predicated region
  $region10: #{transformer_forward.29} parent=0 // pred_check
    _
  $region11: #{transformer_forward.29} parent=0 // pred_check_branch
    %13 = sbr.rel (0) target = $region13
  $region12: #{transformer_forward.29} parent=0 // pred_region
    _
  $region13: #{transformer_forward.29} parent=0 // pred_fallthru
    _
  %p15 = scmp.eq.s32.totalorder 0, 0
  // Predicated region
  $region14: #{transformer_forward.29} parent=0 // pred_check
    %p16 = pneg %p15
  $region15: #{transformer_forward.29} parent=0 // pred_check_branch
    %18 = sbr.rel (%p16) target = $region17
  $region16: #{transformer_forward.29} parent=0 // pred_region
    %vm19 = vcmask 261120
    %20 = vst.msk [vmem:[#allocation2] sm:$0xff] %vm19, 0.0
    %21 = vst.msk [vmem:[#allocation2 + $0x8] sm:$0xff] %vm19, 0.0
  $region17: #{transformer_forward.29} parent=0 // pred_fallthru
    _
  %v22 = vld [vmem:[#allocation2] sm:$0xff]
  %v23 = vld [vmem:[#allocation2 + $0x8] sm:$0xff]
  %v24 = vld [vmem:[%s0] sm:$0xf]
  %v25 = vld [vmem:[%s0 + $0x4] sm:$0xf]
  %v26 = vld [vmem:[%s1] sm:$0xf]
  %v27 = vld [vmem:[%s1 + $0x4] sm:$0xf]
  %v28 = vld [vmem:[%s1 + $0x8] sm:$0xf]
  %v29 = vld [vmem:[%s1 + $0xc] sm:$0xf]
  %v32 = vunpack.c.l.b16 %v24
  %v33 = vunpack.c.l.b16 %v25
  %v34 = vpack.c.b16 %v33, %v32
  %v39 = vunpack.c.l.b16 %v26
  %v40 = vunpack.c.l.b16 %v27
  %v41 = vunpack.c.l.b16 %v28
  %v42 = vunpack.c.l.b16 %v29
  %v43 = vpack.c.b16 %v40, %v39
  %v44 = vpack.c.b16 %v42, %v41
  %vm47 = vcmask 261120
  %v49 = vsel %vm47, %v34, 0
  %51 = vmatprep.subr.bf16.mxu0 0
  %52 = vmatpush1.bf16.msra.mxu0 %v43
  %53 = vmatprep.subr.bf16.mxu0 0
  %54 = vmatpush1.bf16.msra.mxu0 %v44
  %55 = vmatprep.subr.bf16.mxu0 0
  %56 = vmatpush1.bf16.msra.mxu0 0
  %57 = vmatprep.subr.bf16.mxu0 0
  %58 = vmatpush1.bf16.msra.mxu0 0
  %59 = vmatprep.subr.bf16.mxu0 0
  %60 = vmatpush1.bf16.msra.mxu0 0
  %61 = vmatprep.subr.bf16.mxu0 0
  %62 = vmatpush1.bf16.msra.mxu0 0
  %63 = vmatprep.subr.bf16.mxu0 0
  %64 = vmatpush1.bf16.msra.mxu0 0
  %65 = vmatprep.subr.bf16.mxu0 0
  %66 = vmatpush1.bf16.msra.mxu0 0
  %67 = vmatprep.subr.bf16.mxu0 0
  %68 = vmatpush1.bf16.msra.mxu0 0
  %69 = vmatprep.subr.bf16.mxu0 0
  %70 = vmatpush1.bf16.msra.mxu0 0
  %71 = vmatprep.subr.bf16.mxu0 0
  %72 = vmatpush1.bf16.msra.mxu0 0
  %73 = vmatprep.subr.bf16.mxu0 0
  %74 = vmatpush1.bf16.msra.mxu0 0
  %75 = vmatprep.subr.bf16.mxu0 0
  %76 = vmatpush1.bf16.msra.mxu0 0
  %77 = vmatprep.subr.bf16.mxu0 0
  %78 = vmatpush1.bf16.msra.mxu0 0
  %79 = vmatprep.subr.bf16.mxu0 0
  %80 = vmatpush1.bf16.msra.mxu0 0
  %81 = vmatprep.subr.bf16.mxu0 0
  %82 = vmatpush1.bf16.msra.mxu0 0
  %83 = vmatprep.mubr.bf16.mxu0 0
  %84 = vmatmul.mubr.bf16.gmra.mrb[0].mxu0 %v49
  %v85 = vpop.f32.mrb[0].mxu0
  %v86 = vadd.f32 0.0, %v85
  %v87 = vpop.f32.mrb[0].mxu0
  %v88 = vpop.f32.mrb[0].mxu0
  %v89 = vadd.f32 0.0, %v88
  %v90 = vpop.f32.mrb[0].mxu0
  %91 = vdwg.mxu0
  %v92 = vadd.f32 %v22, %v86
  %v93 = vadd.f32 %v23, %v89
  %94 = vst.msk [vmem:[#allocation2] sm:$0xff] %vm47, %v92
  %95 = vst.msk [vmem:[#allocation2 + $0x8] sm:$0xff] %vm47, %v93
  // Predicated region
  $region18: #{transformer_forward.29} parent=0 // pred_check
    %p96 = pneg %p15
  $region19: #{transformer_forward.29} parent=0 // pred_check_branch
    %98 = sbr.rel (%p96) target = $region21
  $region20: #{transformer_forward.29} parent=0 // pred_region
    %v99 = vld [vmem:[#allocation2] sm:$0xff]
    %v100 = vld [vmem:[#allocation2 + $0x8] sm:$0xff]
    %v101 = vld [vmem:[%s2] sm:$0x1]
    %v103 = vlaneseq
    %v104 = vshrl.u32 %v103, 7
    %v105 = vsub.s32 0, %v104
    %v106 = vrot.slane %v101, %v105
    %v108 = vadd.f32 %v99, %v106
    %v109 = vadd.f32 %v100, %v106
    %v110 = vpack.c.bf16 %v109, %v108
    %v112 = vunpack.c.l.b16 %v110
    %v113 = vunpack.c.h.b16 %v110
    %v114 = vpack.c.b16 %v112, %v112
    %v115 = vpack.c.b16 %v113, %v113
    %vm118 = vcmask 257024
    %119 = vst.msk [vmem:[%s3] sm:$0xf] %vm118, %v114
    %120 = vst.msk [vmem:[%s3 + $0x4] sm:$0xf] %vm118, %v115
  $region21: #{transformer_forward.29} parent=0 // pred_fallthru
    _
  // Predicated region
  $region22: #{transformer_forward.29} parent=0 // pred_check
    _
  $region23: #{transformer_forward.29} parent=0 // pred_check_branch
    %122 = sbr.rel (0) target = $region25
  $region24: #{transformer_forward.29} parent=0 // pred_region
    _
  $region25: #{transformer_forward.29} parent=0 // pred_fallthru
    _
  // Predicated region
  $region26: #{transformer_forward.29} parent=0 // pred_check
    _
  $region27: #{transformer_forward.29} parent=0 // pred_check_branch
    %124 = sbr.rel (0) target = $region29
  $region28: #{transformer_forward.29} parent=0 // pred_region
    _
  $region29: #{transformer_forward.29} parent=0 // pred_fallthru
    _

// kernel: transformer_forward.32
$region0: #{transformer_forward.32}
  #allocation0 [shape = 'u32[]', space=smem, size = 0x4, offset = 0x4, fixed_abs, tag = 'smem constant byte address 0x4 - core index']
  #allocation1 [shape = 'u32[144,128]{1,0:T(1,128)}', space=vmem, size = 0x12000, scoped, tag = 'internal scratch']
  #allocation2 [shape = 'f32[16,32]{1,0:T(8,128)}', space=vmem, size = 0x2000, scoped, tag = 'scratch operand']
  %s0 = inlined_call_operand.vmem [shape: bf16[16,32], index: 0, kind: input, shape index: {}]
  %s1 = inlined_call_operand.vmem [shape: bf16[32,32], index: 1, kind: input, shape index: {}]
  %s2 = inlined_call_operand.vmem [shape: f32[1,32], index: 2, kind: input, shape index: {}]
  %s3 = inlined_call_operand.vmem [shape: bf16[16,32], index: 3, kind: input, shape index: {}]
  %s4 = inlined_call_operand.vmem [shape: f32[1,32], index: 4, kind: input, shape index: {}]
  %s5 = inlined_call_operand.vmem [shape: f32[1,32], index: 5, kind: input, shape index: {}]
  %s6 = inlined_call_operand.vmem [shape: bf16[16,32], index: 6, kind: output, shape index: {}]
  %s7 = sld [smem:[#allocation0]]
  $region42: #{transformer_forward.32} parent=0
    _
  %s9 = ssub.s32 1, %s7
  %s10 = scalar_select 0, %s9, %s7
  // Predicated region
  $region2: #{transformer_forward.32} parent=0 // pred_check
    _
  $region3: #{transformer_forward.32} parent=0 // pred_check_branch
    %12 = sbr.rel (0) target = $region5
  $region4: #{transformer_forward.32} parent=0 // pred_region
    _
  $region5: #{transformer_forward.32} parent=0 // pred_fallthru
    _
  // Predicated region
  $region6: #{transformer_forward.32} parent=0 // pred_check
    _
  $region7: #{transformer_forward.32} parent=0 // pred_check_branch
    %14 = sbr.rel (0) target = $region9
  $region8: #{transformer_forward.32} parent=0 // pred_region
    _
  $region9: #{transformer_forward.32} parent=0 // pred_fallthru
    _
  // Predicated region
  $region10: #{transformer_forward.32} parent=0 // pred_check
    _
  $region11: #{transformer_forward.32} parent=0 // pred_check_branch
    %16 = sbr.rel (0) target = $region13
  $region12: #{transformer_forward.32} parent=0 // pred_region
    _
  $region13: #{transformer_forward.32} parent=0 // pred_fallthru
    _
  // Predicated region
  $region14: #{transformer_forward.32} parent=0 // pred_check
    _
  $region15: #{transformer_forward.32} parent=0 // pred_check_branch
    %18 = sbr.rel (0) target = $region17
  $region16: #{transformer_forward.32} parent=0 // pred_region
    _
  $region17: #{transformer_forward.32} parent=0 // pred_fallthru
    _
  // Predicated region
  $region18: #{transformer_forward.32} parent=0 // pred_check
    _
  $region19: #{transformer_forward.32} parent=0 // pred_check_branch
    %20 = sbr.rel (0) target = $region21
  $region20: #{transformer_forward.32} parent=0 // pred_region
    _
  $region21: #{transformer_forward.32} parent=0 // pred_fallthru
    _
  // Predicated region
  $region22: #{transformer_forward.32} parent=0 // pred_check
    _
  $region23: #{transformer_forward.32} parent=0 // pred_check_branch
    %22 = sbr.rel (0) target = $region25
  $region24: #{transformer_forward.32} parent=0 // pred_region
    _
  $region25: #{transformer_forward.32} parent=0 // pred_fallthru
    _
  %p24 = scmp.eq.s32.totalorder 0, 0
  // Predicated region
  $region26: #{transformer_forward.32} parent=0 // pred_check
    %p25 = pneg %p24
  $region27: #{transformer_forward.32} parent=0 // pred_check_branch
    %27 = sbr.rel (%p25) target = $region29
  $region28: #{transformer_forward.32} parent=0 // pred_region
    %vm28 = vcmask 261120
    %29 = vst.msk [vmem:[#allocation2] sm:$0xff] %vm28, 0.0
    %30 = vst.msk [vmem:[#allocation2 + $0x8] sm:$0xff] %vm28, 0.0
  $region29: #{transformer_forward.32} parent=0 // pred_fallthru
    _
  %v31 = vld [vmem:[#allocation2] sm:$0xff]
  %v32 = vld [vmem:[#allocation2 + $0x8] sm:$0xff]
  %v33 = vld [vmem:[%s0] sm:$0xf]
  %v34 = vld [vmem:[%s0 + $0x4] sm:$0xf]
  %v35 = vld [vmem:[%s1] sm:$0xf]
  %v36 = vld [vmem:[%s1 + $0x4] sm:$0xf]
  %v37 = vld [vmem:[%s1 + $0x8] sm:$0xf]
  %v38 = vld [vmem:[%s1 + $0xc] sm:$0xf]
  %v41 = vunpack.c.l.b16 %v33
  %v42 = vunpack.c.l.b16 %v34
  %v43 = vpack.c.b16 %v42, %v41
  %v48 = vunpack.c.l.b16 %v35
  %v49 = vunpack.c.l.b16 %v36
  %v50 = vunpack.c.l.b16 %v37
  %v51 = vunpack.c.l.b16 %v38
  %v52 = vpack.c.b16 %v49, %v48
  %v53 = vpack.c.b16 %v51, %v50
  %vm56 = vcmask 261120
  %v58 = vsel %vm56, %v43, 0
  %60 = vmatprep.subr.bf16.mxu0 0
  %61 = vmatpush1.bf16.msra.mxu0 %v52
  %62 = vmatprep.subr.bf16.mxu0 0
  %63 = vmatpush1.bf16.msra.mxu0 %v53
  %64 = vmatprep.subr.bf16.mxu0 0
  %65 = vmatpush1.bf16.msra.mxu0 0
  %66 = vmatprep.subr.bf16.mxu0 0
  %67 = vmatpush1.bf16.msra.mxu0 0
  %68 = vmatprep.subr.bf16.mxu0 0
  %69 = vmatpush1.bf16.msra.mxu0 0
  %70 = vmatprep.subr.bf16.mxu0 0
  %71 = vmatpush1.bf16.msra.mxu0 0
  %72 = vmatprep.subr.bf16.mxu0 0
  %73 = vmatpush1.bf16.msra.mxu0 0
  %74 = vmatprep.subr.bf16.mxu0 0
  %75 = vmatpush1.bf16.msra.mxu0 0
  %76 = vmatprep.subr.bf16.mxu0 0
  %77 = vmatpush1.bf16.msra.mxu0 0
  %78 = vmatprep.subr.bf16.mxu0 0
  %79 = vmatpush1.bf16.msra.mxu0 0
  %80 = vmatprep.subr.bf16.mxu0 0
  %81 = vmatpush1.bf16.msra.mxu0 0
  %82 = vmatprep.subr.bf16.mxu0 0
  %83 = vmatpush1.bf16.msra.mxu0 0
  %84 = vmatprep.subr.bf16.mxu0 0
  %85 = vmatpush1.bf16.msra.mxu0 0
  %86 = vmatprep.subr.bf16.mxu0 0
  %87 = vmatpush1.bf16.msra.mxu0 0
  %88 = vmatprep.subr.bf16.mxu0 0
  %89 = vmatpush1.bf16.msra.mxu0 0
  %90 = vmatprep.subr.bf16.mxu0 0
  %91 = vmatpush1.bf16.msra.mxu0 0
  %92 = vmatprep.mubr.bf16.mxu0 0
  %93 = vmatmul.mubr.bf16.gmra.mrb[0].mxu0 %v58
  %v94 = vpop.f32.mrb[0].mxu0
  %v95 = vadd.f32 0.0, %v94
  %v96 = vpop.f32.mrb[0].mxu0
  %v97 = vpop.f32.mrb[0].mxu0
  %v98 = vadd.f32 0.0, %v97
  %v99 = vpop.f32.mrb[0].mxu0
  %100 = vdwg.mxu0
  %v101 = vadd.f32 %v31, %v95
  %v102 = vadd.f32 %v32, %v98
  %103 = vst.msk [vmem:[#allocation2] sm:$0xff] %vm56, %v101
  %104 = vst.msk [vmem:[#allocation2 + $0x8] sm:$0xff] %vm56, %v102
  // Predicated region
  $region30: #{transformer_forward.32} parent=0 // pred_check
    %p105 = pneg %p24
  $region31: #{transformer_forward.32} parent=0 // pred_check_branch
    %107 = sbr.rel (%p105) target = $region33
  $region32: #{transformer_forward.32} parent=0 // pred_region
    %v108 = vld [vmem:[#allocation2] sm:$0xff]
    %v109 = vld [vmem:[#allocation2 + $0x8] sm:$0xff]
    %v110 = vld [vmem:[%s2] sm:$0x1]
    %v112 = vlaneseq
    %v113 = vshrl.u32 %v112, 7
    %v114 = vsub.s32 0, %v113
    %v115 = vrot.slane %v110, %v114
    %v117 = vadd.f32 %v108, %v115
    %v118 = vadd.f32 %v109, %v115
    %v119 = vld [vmem:[%s3] sm:$0xf]
    %v120 = vld [vmem:[%s3 + $0x4] sm:$0xf]
    %v121 = vunpack.c.l.bf16 %v119
    %v122 = vunpack.c.l.bf16 %v120
    %v123 = vadd.f32 %v117, %v121
    %v124 = vadd.f32 %v118, %v122
    %v125 = vsel %vm56, %v123, 0.0
    %126 = vadd.xlane.f32.xlu0 %v125
    %v127 = vpop.xlane.xlu0 %126
    %v128 = vsel %vm56, %v124, 0.0
    %129 = vadd.xlane.f32.xlu0 %v128
    %v130 = vpop.xlane.xlu0 %129
    %v131 = vrcp.pop 32.0
    %v132 = vmul.f32 %v127, %v131
    %v133 = vmul.f32 %v130, %v131
    %v134 = vsub.f32 %v123, %v132
    %v135 = vsub.f32 %v124, %v133
    %v136 = vmul.f32 %v134, %v134
    %v137 = vmul.f32 %v135, %v135
    %v138 = vsel %vm56, %v136, 0.0
    %139 = vadd.xlane.f32.xlu0 %v138
    %v140 = vpop.xlane.xlu0 %139
    %v141 = vsel %vm56, %v137, 0.0
    %142 = vadd.xlane.f32.xlu0 %v141
    %v143 = vpop.xlane.xlu0 %142
    %v144 = vmul.f32 %v140, %v131
    %v145 = vmul.f32 %v143, %v131
    %v146 = vadd.f32 %v144, 1e-12
    %v147 = vadd.f32 %v145, 1e-12
    %v148 = vrsqrt.pop %v146
    %v149 = vrsqrt.pop %v147
    %v150 = vmul.f32 %v134, %v148
    %v151 = vmul.f32 %v135, %v149
    %v152 = vld [vmem:[%s4] sm:$0x1]
    %v154 = vlaneseq
    %v155 = vshrl.u32 %v154, 7
    %v156 = vsub.s32 0, %v155
    %v157 = vrot.slane %v152, %v156
    %v159 = vmul.f32 %v150, %v157
    %v160 = vmul.f32 %v151, %v157
    %v161 = vld [vmem:[%s5] sm:$0x1]
    %v163 = vlaneseq
    %v164 = vshrl.u32 %v163, 7
    %v165 = vsub.s32 0, %v164
    %v166 = vrot.slane %v161, %v165
    %v168 = vadd.f32 %v159, %v166
    %v169 = vadd.f32 %v160, %v166
    %v170 = vpack.c.bf16 %v169, %v168
    %v172 = vunpack.c.l.b16 %v170
    %v173 = vunpack.c.h.b16 %v170
    %v174 = vpack.c.b16 %v172, %v172
    %v175 = vpack.c.b16 %v173, %v173
    %vm178 = vcmask 257024
    %179 = vst.msk [vmem:[%s6] sm:$0xf] %vm178, %v174
    %180 = vst.msk [vmem:[%s6 + $0x4] sm:$0xf] %vm178, %v175
  $region33: #{transformer_forward.32} parent=0 // pred_fallthru
    _
  // Predicated region
  $region34: #{transformer_forward.32} parent=0 // pred_check
    _
  $region35: #{transformer_forward.32} parent=0 // pred_check_branch
    %182 = sbr.rel (0) target = $region37
  $region36: #{transformer_forward.32} parent=0 // pred_region
    _
  $region37: #{transformer_forward.32} parent=0 // pred_fallthru
    _
  // Predicated region
  $region38: #{transformer_forward.32} parent=0 // pred_check
    _
  $region39: #{transformer_forward.32} parent=0 // pred_check_branch
    %184 = sbr.rel (0) target = $region41
  $region40: #{transformer_forward.32} parent=0 // pred_region
    _
  $region41: #{transformer_forward.32} parent=0 // pred_fallthru
    _

// kernel: transformer_forward.30
$region0: #{transformer_forward.30}
  #allocation0 [shape = 'u32[]', space=smem, size = 0x4, offset = 0x4, fixed_abs, tag = 'smem constant byte address 0x4 - core index']
  #allocation1 [shape = 'u32[144,128]{1,0:T(1,128)}', space=vmem, size = 0x12000, scoped, tag = 'internal scratch']
  #allocation2 [shape = 'f32[16,64]{1,0:T(8,128)}', space=vmem, size = 0x2000, scoped, tag = 'scratch operand']
  %s0 = inlined_call_operand.vmem [shape: bf16[16,32], index: 0, kind: input, shape index: {}]
  %s1 = inlined_call_operand.vmem [shape: bf16[32,64], index: 1, kind: input, shape index: {}]
  %s2 = inlined_call_operand.vmem [shape: f32[1,64], index: 2, kind: input, shape index: {}]
  %s3 = inlined_call_operand.vmem [shape: bf16[16,64], index: 3, kind: output, shape index: {}]
  %s4 = sld [smem:[#allocation0]]
  $region30: #{transformer_forward.30} parent=0
    _
  %s6 = ssub.s32 1, %s4
  %s7 = scalar_select 0, %s6, %s4
  // Predicated region
  $region2: #{transformer_forward.30} parent=0 // pred_check
    _
  $region3: #{transformer_forward.30} parent=0 // pred_check_branch
    %9 = sbr.rel (0) target = $region5
  $region4: #{transformer_forward.30} parent=0 // pred_region
    _
  $region5: #{transformer_forward.30} parent=0 // pred_fallthru
    _
  // Predicated region
  $region6: #{transformer_forward.30} parent=0 // pred_check
    _
  $region7: #{transformer_forward.30} parent=0 // pred_check_branch
    %11 = sbr.rel (0) target = $region9
  $region8: #{transformer_forward.30} parent=0 // pred_region
    _
  $region9: #{transformer_forward.30} parent=0 // pred_fallthru
    _
  // Predicated region
  $region10: #{transformer_forward.30} parent=0 // pred_check
    _
  $region11: #{transformer_forward.30} parent=0 // pred_check_branch
    %13 = sbr.rel (0) target = $region13
  $region12: #{transformer_forward.30} parent=0 // pred_region
    _
  $region13: #{transformer_forward.30} parent=0 // pred_fallthru
    _
  %p15 = scmp.eq.s32.totalorder 0, 0
  // Predicated region
  $region14: #{transformer_forward.30} parent=0 // pred_check
    %p16 = pneg %p15
  $region15: #{transformer_forward.30} parent=0 // pred_check_branch
    %18 = sbr.rel (%p16) target = $region17
  $region16: #{transformer_forward.30} parent=0 // pred_region
    %vm19 = vcmask 523264
    %20 = vst.msk [vmem:[#allocation2] sm:$0xff] %vm19, 0.0
    %21 = vst.msk [vmem:[#allocation2 + $0x8] sm:$0xff] %vm19, 0.0
  $region17: #{transformer_forward.30} parent=0 // pred_fallthru
    _
  %v22 = vld [vmem:[#allocation2] sm:$0xff]
  %v23 = vld [vmem:[#allocation2 + $0x8] sm:$0xff]
  %v24 = vld [vmem:[%s0] sm:$0xf]
  %v25 = vld [vmem:[%s0 + $0x4] sm:$0xf]
  %v26 = vld [vmem:[%s1] sm:$0xf]
  %v27 = vld [vmem:[%s1 + $0x4] sm:$0xf]
  %v28 = vld [vmem:[%s1 + $0x8] sm:$0xf]
  %v29 = vld [vmem:[%s1 + $0xc] sm:$0xf]
  %v32 = vunpack.c.l.b16 %v24
  %v33 = vunpack.c.l.b16 %v25
  %v34 = vpack.c.b16 %v33, %v32
  %v39 = vunpack.c.l.b16 %v26
  %v40 = vunpack.c.l.b16 %v27
  %v41 = vunpack.c.l.b16 %v28
  %v42 = vunpack.c.l.b16 %v29
  %v43 = vpack.c.b16 %v40, %v39
  %v44 = vpack.c.b16 %v42, %v41
  %vm47 = vcmask 261120
  %v49 = vsel %vm47, %v34, 0
  %51 = vmatprep.subr.bf16.mxu0 0
  %52 = vmatpush1.bf16.msra.mxu0 %v43
  %53 = vmatprep.subr.bf16.mxu0 0
  %54 = vmatpush1.bf16.msra.mxu0 %v44
  %55 = vmatprep.subr.bf16.mxu0 0
  %56 = vmatpush1.bf16.msra.mxu0 0
  %57 = vmatprep.subr.bf16.mxu0 0
  %58 = vmatpush1.bf16.msra.mxu0 0
  %59 = vmatprep.subr.bf16.mxu0 0
  %60 = vmatpush1.bf16.msra.mxu0 0
  %61 = vmatprep.subr.bf16.mxu0 0
  %62 = vmatpush1.bf16.msra.mxu0 0
  %63 = vmatprep.subr.bf16.mxu0 0
  %64 = vmatpush1.bf16.msra.mxu0 0
  %65 = vmatprep.subr.bf16.mxu0 0
  %66 = vmatpush1.bf16.msra.mxu0 0
  %67 = vmatprep.subr.bf16.mxu0 0
  %68 = vmatpush1.bf16.msra.mxu0 0
  %69 = vmatprep.subr.bf16.mxu0 0
  %70 = vmatpush1.bf16.msra.mxu0 0
  %71 = vmatprep.subr.bf16.mxu0 0
  %72 = vmatpush1.bf16.msra.mxu0 0
  %73 = vmatprep.subr.bf16.mxu0 0
  %74 = vmatpush1.bf16.msra.mxu0 0
  %75 = vmatprep.subr.bf16.mxu0 0
  %76 = vmatpush1.bf16.msra.mxu0 0
  %77 = vmatprep.subr.bf16.mxu0 0
  %78 = vmatpush1.bf16.msra.mxu0 0
  %79 = vmatprep.subr.bf16.mxu0 0
  %80 = vmatpush1.bf16.msra.mxu0 0
  %81 = vmatprep.subr.bf16.mxu0 0
  %82 = vmatpush1.bf16.msra.mxu0 0
  %83 = vmatprep.mubr.bf16.mxu0 0
  %84 = vmatmul.mubr.bf16.gmra.mrb[0].mxu0 %v49
  %v85 = vpop.f32.mrb[0].mxu0
  %v86 = vadd.f32 0.0, %v85
  %v87 = vpop.f32.mrb[0].mxu0
  %v88 = vpop.f32.mrb[0].mxu0
  %v89 = vadd.f32 0.0, %v88
  %v90 = vpop.f32.mrb[0].mxu0
  %91 = vdwg.mxu0
  %v92 = vadd.f32 %v22, %v86
  %v93 = vadd.f32 %v23, %v89
  %vm94 = vcmask 523264
  %95 = vst.msk [vmem:[#allocation2] sm:$0xff] %vm94, %v92
  %96 = vst.msk [vmem:[#allocation2 + $0x8] sm:$0xff] %vm94, %v93
  // Predicated region
  $region18: #{transformer_forward.30} parent=0 // pred_check
    %p97 = pneg %p15
  $region19: #{transformer_forward.30} parent=0 // pred_check_branch
    %99 = sbr.rel (%p97) target = $region21
  $region20: #{transformer_forward.30} parent=0 // pred_region
    %v100 = vld [vmem:[#allocation2] sm:$0xff]
    %v101 = vld [vmem:[#allocation2 + $0x8] sm:$0xff]
    %v102 = vld [vmem:[%s2] sm:$0x1]
    %v104 = vlaneseq
    %v105 = vshrl.u32 %v104, 7
    %v106 = vsub.s32 0, %v105
    %v107 = vrot.slane %v102, %v106
    %v109 = vadd.f32 %v100, %v107
    %v110 = vadd.f32 %v101, %v107
    %v111 = vpack.c.bf16 %v110, %v109
    %v113 = vunpack.c.l.b16 %v111
    %v114 = vunpack.c.h.b16 %v111
    %v115 = vpack.c.b16 %v113, %v113
    %v116 = vpack.c.b16 %v114, %v114
    %vm119 = vcmask 519168
    %120 = vst.msk [vmem:[%s3] sm:$0xf] %vm119, %v115
    %121 = vst.msk [vmem:[%s3 + $0x4] sm:$0xf] %vm119, %v116
  $region21: #{transformer_forward.30} parent=0 // pred_fallthru
    _
  // Predicated region
  $region22: #{transformer_forward.30} parent=0 // pred_check
    _
  $region23: #{transformer_forward.30} parent=0 // pred_check_branch
    %123 = sbr.rel (0) target = $region25
  $region24: #{transformer_forward.30} parent=0 // pred_region
    _
  $region25: #{transformer_forward.30} parent=0 // pred_fallthru
    _
  // Predicated region
  $region26: #{transformer_forward.30} parent=0 // pred_check
    _
  $region27: #{transformer_forward.30} parent=0 // pred_check_branch
    %125 = sbr.rel (0) target = $region29
  $region28: #{transformer_forward.30} parent=0 // pred_region
    _
  $region29: #{transformer_forward.30} parent=0 // pred_fallthru
    _

// kernel: transformer_forward.31
$region0: #{transformer_forward.31}
  #allocation0 [shape = 'u32[]', space=smem, size = 0x4, offset = 0x4, fixed_abs, tag = 'smem constant byte address 0x4 - core index']
  #allocation1 [shape = 'u32[144,128]{1,0:T(1,128)}', space=vmem, size = 0x12000, scoped, tag = 'internal scratch']
  #allocation2 [shape = 'f32[4,8,1]{2,1,0:T(8,128)}', space=vmem, size = 0x4000, scoped, tag = 'scratch operand']
  #allocation3 [shape = 'f32[4,8,1]{2,1,0:T(8,128)}', space=vmem, size = 0x4000, scoped, tag = 'scratch operand']
  #allocation4 [shape = 'f32[4,8,8]{2,1,0:T(8,128)}', space=vmem, size = 0x4000, scoped, tag = 'scratch operand']
  #allocation5 [shape = 'f32[8,32]{1,0:T(8,128)}', space=vmem, size = 0x1000, scoped, tag = 'scratch operand']
  #allocation6 [shape = 'bf16[8,32]{1,0:T(8,128)(2,1)}', space=vmem, size = 0x800, scoped, tag = 'scratch operand']
  %s0 = inlined_call_operand.vmem [shape: bf16[2,8,32], index: 0, kind: input, shape index: {}]
  %s1 = inlined_call_operand.vmem [shape: bf16[2,8,64], index: 1, kind: input, shape index: {}]
  %s2 = inlined_call_operand.vmem [shape: f32[2,1,8], index: 2, kind: input, shape index: {}]
  %s3 = inlined_call_operand.vmem [shape: f32[2,8,1], index: 3, kind: input, shape index: {}]
  %s4 = inlined_call_operand.vmem [shape: bf16[2,8,32], index: 4, kind: output, shape index: {}]
  %s5 = sld [smem:[#allocation0]]
  $region57: #{transformer_forward.31} parent=0
    _
  %s7 = ssub.s32 1, %s5
  %s8 = scalar_select 0, %s7, %s5
  loop: start=0, step=1, limit=4
  $region2: #{transformer_forward.31} parent=0 // loop_pre_header
    _
  $region3: #{transformer_forward.31} parent=0 // loop_header
    %s10 = sphi 0, %s14
    %p11 = scmp.ge.s32.totalorder %s10, 4
    %s17 = sphi 0, %s36
    %s18 = sphi 0, %s32
    %s19 = sphi 0, %s28
    %s20 = sphi 0, %s17
    %s21 = sphi 0, %s18
    %s22 = sphi 0, %s19
    %s23 = sphi 0, %s20
    %s24 = sphi 0, %s21
    %s25 = sphi 0, %s22
    %s41 = sphi 0, %s43
    %s44 = sphi 0, %s41
    %s45 = sphi 0, %s44
    %s61 = sphi 0, %s45
    %s69 = sphi 0, %s71
    %s72 = sphi 0, %s69
    %s73 = sphi 0, %s72
    %s89 = sphi 0, %s73
    %s97 = sphi 0, %s99
    %s100 = sphi 0, %s97
    %s101 = sphi 0, %s100
    %s117 = sphi 0, %s101
    %s125 = sphi 0, %s127
    %s128 = sphi 0, %s125
    %s129 = sphi 0, %s128
    %s145 = sphi 0, %s129
    %s153 = sphi 0, %s155
    %s156 = sphi 0, %s153
    %s157 = sphi 0, %s156
    %s173 = sphi 0, %s157
  $region4: #{transformer_forward.31} parent=0 // loop_header_branch
    %13 = sbr.rel (%p11) target = $region8
  $region5: #{transformer_forward.31} parent=0 // loop_body
    %s15 = ssub.s32 %s10, 1
    %s16 = ssub.s32 %s10, 2
    %s26 = sadd.s32 1, %s19
    %p27 = scmp.ge.s32.totalorder %s26, 1
    %s28 = scalar_select %p27, 0, %s26
    %s29 = sadd.s32 1, %s18
    %s30 = scalar_select %p27, %s29, %s18
    %p31 = scmp.ge.s32.totalorder %s30, 1
    %s32 = scalar_select %p31, 0, %s30
    %s33 = sadd.s32 1, %s17
    %s34 = scalar_select %p31, %s33, %s17
    %p35 = scmp.ge.s32.totalorder %s34, 2
    %s36 = scalar_select %p35, 0, %s34
    %s37 = ssub.s32 %s17, %s36
    %s38 = ssub.s32 %s18, %s32
    %s39 = sor.u32 %s37, %s38
    %p40 = scmp.eq.s32.totalorder %s39, 0
    %s42 = sadd.s32 %s41, 1
    %s43 = scalar_select %p40, %s41, %s42
    %p46 = pneg %p40
    %p47 = scmp.eq.s32.totalorder %s10, 1
    %p48 = por %p46, %p47
    %p49 = scmp.ne.s32.totalorder %s41, %s44
    %p50 = scmp.eq.s32.totalorder %s10, 0
    %p51 = por %p49, %p50
    %p52 = scmp.ne.s32.totalorder %s41, %s44
    %p53 = scmp.eq.s32.totalorder %s15, 1
    %p54 = por %p52, %p53
    %p55 = scmp.ne.s32.totalorder %s44, %s45
    %p56 = scmp.eq.s32.totalorder %s15, 0
    %p57 = por %p55, %p56
    %p58 = scmp.ne.s32.totalorder %s44, %s45
    %p59 = scmp.eq.s32.totalorder %s16, 1
    %p60 = por %p58, %p59
    %p62 = scmp.ne.s32.totalorder %s45, %s61
    %p63 = scmp.eq.s32.totalorder %s16, 0
    %p64 = por %p62, %p63
    %s65 = ssub.s32 %s17, %s36
    %s66 = ssub.s32 %s19, %s28
    %s67 = sor.u32 %s65, %s66
    %p68 = scmp.eq.s32.totalorder %s67, 0
    %s70 = sadd.s32 %s69, 1
    %s71 = scalar_select %p68, %s69, %s70
    %p74 = pneg %p68
    %p75 = scmp.eq.s32.totalorder %s10, 1
    %p76 = por %p74, %p75
    %p77 = scmp.ne.s32.totalorder %s69, %s72
    %p78 = scmp.eq.s32.totalorder %s10, 0
    %p79 = por %p77, %p78
    %p80 = scmp.ne.s32.totalorder %s69, %s72
    %p81 = scmp.eq.s32.totalorder %s15, 1
    %p82 = por %p80, %p81
    %p83 = scmp.ne.s32.totalorder %s72, %s73
    %p84 = scmp.eq.s32.totalorder %s15, 0
    %p85 = por %p83, %p84
    %p86 = scmp.ne.s32.totalorder %s72, %s73
    %p87 = scmp.eq.s32.totalorder %s16, 1
    %p88 = por %p86, %p87
    %p90 = scmp.ne.s32.totalorder %s73, %s89
    %p91 = scmp.eq.s32.totalorder %s16, 0
    %p92 = por %p90, %p91
    %s93 = ssub.s32 %s17, %s36
    %s94 = ssub.s32 %s19, %s28
    %s95 = sor.u32 %s93, %s94
    %p96 = scmp.eq.s32.totalorder %s95, 0
    %s98 = sadd.s32 %s97, 1
    %s99 = scalar_select %p96, %s97, %s98
    %p102 = pneg %p96
    %p103 = scmp.eq.s32.totalorder %s10, 1
    %p104 = por %p102, %p103
    %p105 = scmp.ne.s32.totalorder %s97, %s100
    %p106 = scmp.eq.s32.totalorder %s10, 0
    %p107 = por %p105, %p106
    %p108 = scmp.ne.s32.totalorder %s97, %s100
    %p109 = scmp.eq.s32.totalorder %s15, 1
    %p110 = por %p108, %p109
    %p111 = scmp.ne.s32.totalorder %s100, %s101
    %p112 = scmp.eq.s32.totalorder %s15, 0
    %p113 = por %p111, %p112
    %p114 = scmp.ne.s32.totalorder %s100, %s101
    %p115 = scmp.eq.s32.totalorder %s16, 1
    %p116 = por %p114, %p115
    %p118 = scmp.ne.s32.totalorder %s101, %s117
    %p119 = scmp.eq.s32.totalorder %s16, 0
    %p120 = por %p118, %p119
    %s121 = ssub.s32 %s17, %s36
    %s122 = ssub.s32 %s18, %s32
    %s123 = sor.u32 %s121, %s122
    %p124 = scmp.eq.s32.totalorder %s123, 0
    %s126 = sadd.s32 %s125, 1
    %s127 = scalar_select %p124, %s125, %s126
    %p130 = pneg %p124
    %p131 = scmp.eq.s32.totalorder %s10, 1
    %p132 = por %p130, %p131
    %p133 = scmp.ne.s32.totalorder %s125, %s128
    %p134 = scmp.eq.s32.totalorder %s10, 0
    %p135 = por %p133, %p134
    %p136 = scmp.ne.s32.totalorder %s125, %s128
    %p137 = scmp.eq.s32.totalorder %s15, 1
    %p138 = por %p136, %p137
    %p139 = scmp.ne.s32.totalorder %s128, %s129
    %p140 = scmp.eq.s32.totalorder %s15, 0
    %p141 = por %p139, %p140
    %p142 = scmp.ne.s32.totalorder %s128, %s129
    %p143 = scmp.eq.s32.totalorder %s16, 1
    %p144 = por %p142, %p143
    %p146 = scmp.ne.s32.totalorder %s129, %s145
    %p147 = scmp.eq.s32.totalorder %s16, 0
    %p148 = por %p146, %p147
    %s149 = ssub.s32 %s17, %s36
    %s150 = ssub.s32 %s18, %s32
    %s151 = sor.u32 %s149, %s150
    %p152 = scmp.eq.s32.totalorder %s151, 0
    %s154 = sadd.s32 %s153, 1
    %s155 = scalar_select %p152, %s153, %s154
    %p158 = pneg %p152
    %p159 = scmp.eq.s32.totalorder %s10, 1
    %p160 = por %p158, %p159
    %p161 = scmp.ne.s32.totalorder %s153, %s156
    %p162 = scmp.eq.s32.totalorder %s10, 0
    %p163 = por %p161, %p162
    %p164 = scmp.ne.s32.totalorder %s153, %s156
    %p165 = scmp.eq.s32.totalorder %s15, 1
    %p166 = por %p164, %p165
    %p167 = scmp.ne.s32.totalorder %s156, %s157
    %p168 = scmp.eq.s32.totalorder %s15, 0
    %p169 = por %p167, %p168
    %p170 = scmp.ne.s32.totalorder %s156, %s157
    %p171 = scmp.eq.s32.totalorder %s16, 1
    %p172 = por %p170, %p171
    %p174 = scmp.ne.s32.totalorder %s157, %s173
    %p175 = scmp.eq.s32.totalorder %s16, 0
    %p176 = por %p174, %p175
    %p177 = scmp.le.s32.totalorder 1, %s10
    %p178 = scmp.lt.s32.totalorder %s10, 3
    %p179 = pnand %p177, %p178
    %p180 = pneg %p179
    // Predicated region
    $region9: #{transformer_forward.31} parent=5 // pred_check
      _
    $region10: #{transformer_forward.31} parent=5 // pred_check_branch
      %182 = sbr.rel (%p179) target = $region12
    $region11: #{transformer_forward.31} parent=5 // pred_region
      %s183 = ssub.s32 %s10, 1
    $region12: #{transformer_forward.31} parent=5 // pred_fallthru
      _
    %p184 = scmp.lt.s32.totalorder %s10, 2
    // Predicated region
    $region13: #{transformer_forward.31} parent=5 // pred_check
      %p185 = pneg %p184
    $region14: #{transformer_forward.31} parent=5 // pred_check_branch
      %187 = sbr.rel (%p185) target = $region16
    $region15: #{transformer_forward.31} parent=5 // pred_region
      // Predicated region
      $region17: #{transformer_forward.31} parent=15 // pred_check
        %p188 = pneg %p51
      $region18: #{transformer_forward.31} parent=15 // pred_check_branch
        %190 = sbr.rel (%p188) target = $region20
      $region19: #{transformer_forward.31} parent=15 // pred_region
        %p191 = scmp.lt.s32.totalorder %s17, 1
        %s192 = scalar_select %p191, %s17, 1
        %p193 = scmp.lt.s32.totalorder %s18, 0
        %s194 = scalar_select %p193, %s18, 0
        %s195 = sadd.s32 %s194, %s192
        %s196 = smul.addr %s195, 4
        %s197 = scalar_lea.vmem %s0, %s196
      $region20: #{transformer_forward.31} parent=15 // pred_fallthru
        _
      // Predicated region
      $region21: #{transformer_forward.31} parent=15 // pred_check
        %p198 = pneg %p79
      $region22: #{transformer_forward.31} parent=15 // pred_check_branch
        %200 = sbr.rel (%p198) target = $region24
      $region23: #{transformer_forward.31} parent=15 // pred_region
        %p201 = scmp.lt.s32.totalorder %s17, 1
        %s202 = scalar_select %p201, %s17, 1
        %p203 = scmp.lt.s32.totalorder %s19, 0
        %s204 = scalar_select %p203, %s19, 0
        %s205 = sadd.s32 %s204, %s202
        %s206 = smul.addr %s205, 4
        %s207 = scalar_lea.vmem %s1, %s206
      $region24: #{transformer_forward.31} parent=15 // pred_fallthru
        _
      // Predicated region
      $region25: #{transformer_forward.31} parent=15 // pred_check
        %p208 = pneg %p107
      $region26: #{transformer_forward.31} parent=15 // pred_check_branch
        %210 = sbr.rel (%p208) target = $region28
      $region27: #{transformer_forward.31} parent=15 // pred_region
        %p211 = scmp.lt.s32.totalorder %s17, 1
        %s212 = scalar_select %p211, %s17, 1
        %p213 = scmp.lt.s32.totalorder %s19, 0
        %s214 = scalar_select %p213, %s19, 0
        %s215 = sadd.s32 %s214, %s212
        %s216 = scalar_lea.vmem %s2, %s215
      $region28: #{transformer_forward.31} parent=15 // pred_fallthru
        _
      // Predicated region
      $region29: #{transformer_forward.31} parent=15 // pred_check
        %p217 = pneg %p135
      $region30: #{transformer_forward.31} parent=15 // pred_check_branch
        %219 = sbr.rel (%p217) target = $region32
      $region31: #{transformer_forward.31} parent=15 // pred_region
        %p220 = scmp.lt.s32.totalorder %s17, 1
        %s221 = scalar_select %p220, %s17, 1
        %p222 = scmp.lt.s32.totalorder %s18, 0
        %s223 = scalar_select %p222, %s18, 0
        %s224 = sadd.s32 %s223, %s221
        %s225 = smul.addr %s224, 8
        %s226 = scalar_lea.vmem %s3, %s225
      $region32: #{transformer_forward.31} parent=15 // pred_fallthru
        _
    $region16: #{transformer_forward.31} parent=5 // pred_fallthru
      _
    %p227 = scmp.le.s32.totalorder 1, %s10
    %p228 = scmp.lt.s32.totalorder %s10, 3
    %p229 = pnand %p227, %p228
    %p230 = pneg %p229
    // Predicated region
    $region33: #{transformer_forward.31} parent=5 // pred_check
      _
    $region34: #{transformer_forward.31} parent=5 // pred_check_branch
      %232 = sbr.rel (%p229) target = $region36
    $region35: #{transformer_forward.31} parent=5 // pred_region
      %s233 = ssub.s32 %s10, 1
      %p234 = scmp.lt.s32.totalorder %s20, 1
      %s235 = scalar_select %p234, %s20, 1
      %p236 = scmp.lt.s32.totalorder %s21, 0
      %s237 = scalar_select %p236, %s21, 0
      %s238 = sadd.s32 %s237, %s235
      %s239 = smul.addr %s238, 4
      %s240 = scalar_lea.vmem %s0, %s239
      %p241 = pneg %p57
      %p242 = pneg %p54
      %p243 = scmp.lt.s32.totalorder %s20, 1
      %s244 = scalar_select %p243, %s20, 1
      %p245 = scmp.lt.s32.totalorder %s22, 0
      %s246 = scalar_select %p245, %s22, 0
      %s247 = sadd.s32 %s246, %s244
      %s248 = smul.addr %s247, 4
      %s249 = scalar_lea.vmem %s1, %s248
      %p250 = pneg %p85
      %p251 = pneg %p82
      %p252 = scmp.lt.s32.totalorder %s20, 1
      %s253 = scalar_select %p252, %s20, 1
      %p254 = scmp.lt.s32.totalorder %s22, 0
      %s255 = scalar_select %p254, %s22, 0
      %s256 = sadd.s32 %s255, %s253
      %s257 = scalar_lea.vmem %s2, %s256
      %p258 = pneg %p113
      %p259 = pneg %p110
      %p260 = scmp.lt.s32.totalorder %s20, 1
      %s261 = scalar_select %p260, %s20, 1
      %p262 = scmp.lt.s32.totalorder %s21, 0
      %s263 = scalar_select %p262, %s21, 0
      %s264 = sadd.s32 %s263, %s261
      %s265 = smul.addr %s264, 8
      %s266 = scalar_lea.vmem %s3, %s265
      %p267 = pneg %p141
      %p268 = pneg %p138
      %p269 = pneg %p169
      %p270 = pneg %p166
      %p271 = scmp.lt.s32.totalorder %s20, 1
      %s272 = scalar_select %p271, %s20, 1
      %p273 = scmp.lt.s32.totalorder %s21, 0
      %s274 = scalar_select %p273, %s21, 0
      %s275 = sadd.s32 %s274, %s272
      %s276 = smul.addr %s275, 4
      %s277 = scalar_lea.vmem %s4, %s276
      %p278 = scmp.lt.s32.totalorder %s20, 1
      %s279 = scalar_select %p278, %s20, 1
      %p280 = scmp.lt.s32.totalorder %s21, 0
      %s281 = scalar_select %p280, %s21, 0
      %s282 = sadd.s32 %s281, %s279
      %s283 = smul.addr %s282, 4
      %s284 = scalar_lea.vmem %s0, %s283
      %p285 = scmp.lt.s32.totalorder %s20, 1
      %s286 = scalar_select %p285, %s20, 1
      %p287 = scmp.lt.s32.totalorder %s22, 0
      %s288 = scalar_select %p287, %s22, 0
      %s289 = sadd.s32 %s288, %s286
      %s290 = smul.addr %s289, 4
      %s291 = scalar_lea.vmem %s1, %s290
      %p292 = scmp.lt.s32.totalorder %s20, 1
      %s293 = scalar_select %p292, %s20, 1
      %p294 = scmp.lt.s32.totalorder %s22, 0
      %s295 = scalar_select %p294, %s22, 0
      %s296 = sadd.s32 %s295, %s293
      %s297 = scalar_lea.vmem %s2, %s296
      %p298 = scmp.lt.s32.totalorder %s20, 1
      %s299 = scalar_select %p298, %s20, 1
      %p300 = scmp.lt.s32.totalorder %s21, 0
      %s301 = scalar_select %p300, %s21, 0
      %s302 = sadd.s32 %s301, %s299
      %s303 = smul.addr %s302, 8
      %s304 = scalar_lea.vmem %s3, %s303
      %p305 = scmp.lt.s32.totalorder %s20, 1
      %s306 = scalar_select %p305, %s20, 1
      %p307 = scmp.lt.s32.totalorder %s21, 0
      %s308 = scalar_select %p307, %s21, 0
      %s309 = sadd.s32 %s308, %s306
      %s310 = smul.addr %s309, 4
      %s311 = scalar_lea.vmem %s4, %s310
      %p313 = scmp.eq.s32.totalorder %s22, 0
      // Predicated region
      $region37: #{transformer_forward.31} parent=35 // pred_check
        %p314 = pneg %p313
      $region38: #{transformer_forward.31} parent=35 // pred_check_branch
        %316 = sbr.rel (%p314) target = $region40
      $region39: #{transformer_forward.31} parent=35 // pred_region
        %vm317 = vcmask 7168
        %318 = vst.msk [vmem:[#allocation2] sm:$0xff] %vm317, -inf
        %319 = vst.msk [vmem:[#allocation2 + $0x8] sm:$0xff] %vm317, -inf
        %320 = vst.msk [vmem:[#allocation2 + $0x10] sm:$0xff] %vm317, -inf
        %321 = vst.msk [vmem:[#allocation2 + $0x18] sm:$0xff] %vm317, -inf
        %322 = vst.msk [vmem:[#allocation3] sm:$0xff] %vm317, 0.0
        %323 = vst.msk [vmem:[#allocation3 + $0x8] sm:$0xff] %vm317, 0.0
        %324 = vst.msk [vmem:[#allocation3 + $0x10] sm:$0xff] %vm317, 0.0
        %325 = vst.msk [vmem:[#allocation3 + $0x18] sm:$0xff] %vm317, 0.0
        %vm326 = vcmask 64512
        %327 = vst.msk [vmem:[#allocation4] sm:$0xff] %vm326, 0.0
        %328 = vst.msk [vmem:[#allocation4 + $0x8] sm:$0xff] %vm326, 0.0
        %329 = vst.msk [vmem:[#allocation4 + $0x10] sm:$0xff] %vm326, 0.0
        %330 = vst.msk [vmem:[#allocation4 + $0x18] sm:$0xff] %vm326, 0.0
        %v331 = vld [vmem:[%s284] sm:$0xf]
        %v332 = vunpack.c.l.bf16 %v331
        %v333 = vmul.f32 %v332, 0.35355338
        %v334 = vpack.c.bf16 %v333, %v333
        %vm335 = vcmask 257024
        %336 = vst.msk [vmem:[#allocation6] sm:$0xf] %vm335, %v334
      $region40: #{transformer_forward.31} parent=35 // pred_fallthru
        _
      %v337 = vld [vmem:[%s297] sm:$0x1]
      %vm338 = vcmp.ne.f32.partialorder %v337, 0.0
      %v339 = vld [vmem:[%s304] sm:$0xff]
      %vm340 = vcmp.ne.f32.partialorder %v339, 0.0
      %v341 = vsel %vm338, 1, 0
      %v342 = vlaneseq
      %v343 = vshrl.u32 %v342, 7
      %v344 = vsub.s32 0, %v343
      %v345 = vrot.slane %v341, %v344
      %vm346 = vcmp.eq.s32.totalorder %v345, 1
      %v347 = vsel %vm340, 1, 0
      %348 = vset.pattern.permute.xlu0 0
      %349 = vperm.xlu0 %348, %v347
      %v350 = vpop.permute.xlu0 %349
      %vm351 = vcmp.eq.s32.totalorder %v350, 1
      %vm352 = vmand %vm346, %vm351
      %v353 = vld [vmem:[%s291] sm:$0xf]
      %v354 = vld [vmem:[#allocation6] sm:$0xf]
      %vm355 = vcmask 64512
      %v357 = vsel %vm355, %v354, 0
      %v360 = vsel %vm355, %v353, 0
      %362 = vmatprep.subr.bf16.mxu0 0
      %363 = vmatpush1.bf16.xpose.msra.mxu0 %v360
      %364 = vmatprep.subr.bf16.mxu0 0
      %365 = vmatpush1.bf16.xpose.msra.mxu0 0
      %366 = vmatprep.subr.bf16.mxu0 0
      %367 = vmatpush1.bf16.xpose.msra.mxu0 0
      %368 = vmatprep.subr.bf16.mxu0 0
      %369 = vmatpush1.bf16.xpose.msra.mxu0 0
      %370 = vmatprep.subr.bf16.mxu0 0
      %371 = vmatpush1.bf16.xpose.msra.mxu0 0
      %372 = vmatprep.subr.bf16.mxu0 0
      %373 = vmatpush1.bf16.xpose.msra.mxu0 0
      %374 = vmatprep.subr.bf16.mxu0 0
      %375 = vmatpush1.bf16.xpose.msra.mxu0 0
      %376 = vmatprep.subr.bf16.mxu0 0
      %377 = vmatpush1.bf16.xpose.msra.mxu0 0
      %378 = vmatprep.subr.bf16.mxu0 0
      %379 = vmatpush1.bf16.xpose.msra.mxu0 0
      %380 = vmatprep.subr.bf16.mxu0 0
      %381 = vmatpush1.bf16.xpose.msra.mxu0 0
      %382 = vmatprep.subr.bf16.mxu0 0
      %383 = vmatpush1.bf16.xpose.msra.mxu0 0
      %384 = vmatprep.subr.bf16.mxu0 0
      %385 = vmatpush1.bf16.xpose.msra.mxu0 0
      %386 = vmatprep.subr.bf16.mxu0 0
      %387 = vmatpush1.bf16.xpose.msra.mxu0 0
      %388 = vmatprep.subr.bf16.mxu0 0
      %389 = vmatpush1.bf16.xpose.msra.mxu0 0
      %390 = vmatprep.subr.bf16.mxu0 0
      %391 = vmatpush1.bf16.xpose.msra.mxu0 0
      %392 = vmatprep.subr.bf16.mxu0 0
      %393 = vmatpush1.bf16.xpose.msra.mxu0 0
      %394 = vmatprep.mubr.bf16.mxu0 0
      %395 = vmatmul.mubr.bf16.gmra.mrb[0].mxu0 %v357
      %v396 = vpop.f32.mrb[0].mxu0
      %v397 = vadd.f32 0.0, %v396
      %v398 = vpop.f32.mrb[0].mxu0
      %v399 = vpop.f32.mrb[0].mxu0
      %v400 = vpop.f32.mrb[0].mxu0
      %401 = vdwg.mxu0
      %v402 = vsel %vm352, %v397, -10000.0
      %v403 = vld [vmem:[#allocation2] sm:$0xff]
      %v404 = vsel %vm355, %v402, -inf
      %405 = vmax.xlane.f32.xlu0 %v404
      %v406 = vpop.xlane.xlu0 %405
      %v407 = vmax.f32 %v403, %v406
      %v408 = vsub.f32 %v403, %v407
      %v409 = vmul.f32 %v408, 1.442695
      %v410 = vpow.pop %v409
      %412 = vset.pattern.permute.xlu0 0
      %413 = vperm.xlu0 %412, %v407
      %v414 = vpop.permute.xlu0 %413
      %v416 = vsub.f32 %v402, %v414
      %v417 = vmul.f32 %v416, 1.442695
      %v418 = vpow.pop %v417
      %v419 = vld [vmem:[#allocation3] sm:$0xff]
      %v420 = vmul.f32 %v410, %v419
      %v421 = vsel %vm355, %v418, 0.0
      %422 = vadd.xlane.f32.xlu0 %v421
      %v423 = vpop.xlane.xlu0 %422
      %v424 = vadd.f32 %v420, %v423
      %vm425 = vcmask 7168
      %426 = vst.msk [vmem:[#allocation3] sm:$0xff] %vm425, %v424
      %v427 = vld [vmem:[#allocation4] sm:$0xff]
      %429 = vset.pattern.permute.xlu0 0
      %430 = vperm.xlu0 %429, %v410
      %v431 = vpop.permute.xlu0 %430
      %v433 = vmul.f32 %v431, %v427
      %v434 = vpack.c.bf16 %v418, %v418
      %v436 = vunpack.c.l.b16 %v353
      %v437 = vpack.c.b16 %v436, %v436
      %438 = vrot.lane.b32.xlu0 %v437, 96
      %v439 = vpop.permute.xlu0 %438
      %v441 = vsel %vm355, %v434, 0
      %vm443 = vcmask 1043456
      %v445 = vsel %vm443, %v439, 0
      %447 = vmatprep.subr.bf16.mxu0 0
      %448 = vmatpush1.bf16.msra.mxu0 %v445
      %449 = vmatprep.subr.bf16.mxu0 0
      %450 = vmatpush1.bf16.msra.mxu0 0
      %451 = vmatprep.subr.bf16.mxu0 0
      %452 = vmatpush1.bf16.msra.mxu0 0
      %453 = vmatprep.subr.bf16.mxu0 0
      %454 = vmatpush1.bf16.msra.mxu0 0
      %455 = vmatprep.subr.bf16.mxu0 0
      %456 = vmatpush1.bf16.msra.mxu0 0
      %457 = vmatprep.subr.bf16.mxu0 0
      %458 = vmatpush1.bf16.msra.mxu0 0
      %459 = vmatprep.subr.bf16.mxu0 0
      %460 = vmatpush1.bf16.msra.mxu0 0
      %461 = vmatprep.subr.bf16.mxu0 0
      %462 = vmatpush1.bf16.msra.mxu0 0
      %463 = vmatprep.subr.bf16.mxu0 0
      %464 = vmatpush1.bf16.msra.mxu0 0
      %465 = vmatprep.subr.bf16.mxu0 0
      %466 = vmatpush1.bf16.msra.mxu0 0
      %467 = vmatprep.subr.bf16.mxu0 0
      %468 = vmatpush1.bf16.msra.mxu0 0
      %469 = vmatprep.subr.bf16.mxu0 0
      %470 = vmatpush1.bf16.msra.mxu0 0
      %471 = vmatprep.subr.bf16.mxu0 0
      %472 = vmatpush1.bf16.msra.mxu0 0
      %473 = vmatprep.subr.bf16.mxu0 0
      %474 = vmatpush1.bf16.msra.mxu0 0
      %475 = vmatprep.subr.bf16.mxu0 0
      %476 = vmatpush1.bf16.msra.mxu0 0
      %477 = vmatprep.subr.bf16.mxu0 0
      %478 = vmatpush1.bf16.msra.mxu0 0
      %479 = vmatprep.mubr.bf16.mxu0 0
      %480 = vmatmul.mubr.bf16.gmra.mrb[0].mxu0 %v441
      %v481 = vpop.f32.mrb[0].mxu0
      %v482 = vadd.f32 0.0, %v481
      %v483 = vpop.f32.mrb[0].mxu0
      %v484 = vpop.f32.mrb[0].mxu0
      %v485 = vpop.f32.mrb[0].mxu0
      %486 = vdwg.mxu0
      %v487 = vadd.f32 %v433, %v482
      %488 = vst.msk [vmem:[#allocation4] sm:$0xff] %vm355, %v487
      %489 = vst.msk [vmem:[#allocation2] sm:$0xff] %vm425, %v407
      %v490 = vld [vmem:[#allocation6] sm:$0xf]
      %v492 = vunpack.c.l.b16 %v490
      %v493 = vpack.c.b16 %v492, %v492
      %494 = vrot.lane.b32.xlu0 %v493, 120
      %v495 = vpop.permute.xlu0 %494
      %496 = vrot.lane.b32.xlu0 %v437, 120
      %v497 = vpop.permute.xlu0 %496
      %v499 = vsel %vm355, %v495, 0
      %v502 = vsel %vm355, %v497, 0
      %504 = vmatprep.subr.bf16.mxu0 0
      %505 = vmatpush1.bf16.xpose.msra.mxu0 %v502
      %506 = vmatprep.subr.bf16.mxu0 0
      %507 = vmatpush1.bf16.xpose.msra.mxu0 0
      %508 = vmatprep.subr.bf16.mxu0 0
      %509 = vmatpush1.bf16.xpose.msra.mxu0 0
      %510 = vmatprep.subr.bf16.mxu0 0
      %511 = vmatpush1.bf16.xpose.msra.mxu0 0
      %512 = vmatprep.subr.bf16.mxu0 0
      %513 = vmatpush1.bf16.xpose.msra.mxu0 0
      %514 = vmatprep.subr.bf16.mxu0 0
      %515 = vmatpush1.bf16.xpose.msra.mxu0 0
      %516 = vmatprep.subr.bf16.mxu0 0
      %517 = vmatpush1.bf16.xpose.msra.mxu0 0
      %518 = vmatprep.subr.bf16.mxu0 0
      %519 = vmatpush1.bf16.xpose.msra.mxu0 0
      %520 = vmatprep.subr.bf16.mxu0 0
      %521 = vmatpush1.bf16.xpose.msra.mxu0 0
      %522 = vmatprep.subr.bf16.mxu0 0
      %523 = vmatpush1.bf16.xpose.msra.mxu0 0
      %524 = vmatprep.subr.bf16.mxu0 0
      %525 = vmatpush1.bf16.xpose.msra.mxu0 0
      %526 = vmatprep.subr.bf16.mxu0 0
      %527 = vmatpush1.bf16.xpose.msra.mxu0 0
      %528 = vmatprep.subr.bf16.mxu0 0
      %529 = vmatpush1.bf16.xpose.msra.mxu0 0
      %530 = vmatprep.subr.bf16.mxu0 0
      %531 = vmatpush1.bf16.xpose.msra.mxu0 0
      %532 = vmatprep.subr.bf16.mxu0 0
      %533 = vmatpush1.bf16.xpose.msra.mxu0 0
      %534 = vmatprep.subr.bf16.mxu0 0
      %535 = vmatpush1.bf16.xpose.msra.mxu0 0
      %536 = vmatprep.mubr.bf16.mxu0 0
      %537 = vmatmul.mubr.bf16.gmra.mrb[0].mxu0 %v499
      %v538 = vpop.f32.mrb[0].mxu0
      %v539 = vadd.f32 0.0, %v538
      %v540 = vpop.f32.mrb[0].mxu0
      %v541 = vpop.f32.mrb[0].mxu0
      %v542 = vpop.f32.mrb[0].mxu0
      %543 = vdwg.mxu0
      %v544 = vsel %vm352, %v539, -10000.0
      %s545 = scalar_lea.vmem [#allocation2], 8
      %v546 = vld [vmem:[%s545] sm:$0xff]
      %v547 = vsel %vm355, %v544, -inf
      %548 = vmax.xlane.f32.xlu0 %v547
      %v549 = vpop.xlane.xlu0 %548
      %v550 = vmax.f32 %v546, %v549
      %v551 = vsub.f32 %v546, %v550
      %v552 = vmul.f32 %v551, 1.442695
      %v553 = vpow.pop %v552
      %555 = vset.pattern.permute.xlu0 0
      %556 = vperm.xlu0 %555, %v550
      %v557 = vpop.permute.xlu0 %556
      %v559 = vsub.f32 %v544, %v557
      %v560 = vmul.f32 %v559, 1.442695
      %v561 = vpow.pop %v560
      %s562 = scalar_lea.vmem [#allocation3], 8
      %v563 = vld [vmem:[%s562] sm:$0xff]
      %v564 = vmul.f32 %v553, %v563
      %v565 = vsel %vm355, %v561, 0.0
      %566 = vadd.xlane.f32.xlu0 %v565
      %v567 = vpop.xlane.xlu0 %566
      %v568 = vadd.f32 %v564, %v567
      %569 = vst.msk [vmem:[%s562] sm:$0xff] %vm425, %v568
      %s570 = scalar_lea.vmem [#allocation4], 8
      %v571 = vld [vmem:[%s570] sm:$0xff]
      %573 = vset.pattern.permute.xlu0 0
      %574 = vperm.xlu0 %573, %v553
      %v575 = vpop.permute.xlu0 %574
      %v577 = vmul.f32 %v575, %v571
      %v578 = vpack.c.bf16 %v561, %v561
      %579 = vrot.lane.b32.xlu0 %v437, 88
      %v580 = vpop.permute.xlu0 %579
      %v582 = vsel %vm355, %v578, 0
      %v585 = vsel %vm443, %v580, 0
      %587 = vmatprep.subr.bf16.mxu0 0
      %588 = vmatpush1.bf16.msra.mxu0 %v585
      %589 = vmatprep.subr.bf16.mxu0 0
      %590 = vmatpush1.bf16.msra.mxu0 0
      %591 = vmatprep.subr.bf16.mxu0 0
      %592 = vmatpush1.bf16.msra.mxu0 0
      %593 = vmatprep.subr.bf16.mxu0 0
      %594 = vmatpush1.bf16.msra.mxu0 0
      %595 = vmatprep.subr.bf16.mxu0 0
      %596 = vmatpush1.bf16.msra.mxu0 0
      %597 = vmatprep.subr.bf16.mxu0 0
      %598 = vmatpush1.bf16.msra.mxu0 0
      %599 = vmatprep.subr.bf16.mxu0 0
      %600 = vmatpush1.bf16.msra.mxu0 0
      %601 = vmatprep.subr.bf16.mxu0 0
      %602 = vmatpush1.bf16.msra.mxu0 0
      %603 = vmatprep.subr.bf16.mxu0 0
      %604 = vmatpush1.bf16.msra.mxu0 0
      %605 = vmatprep.subr.bf16.mxu0 0
      %606 = vmatpush1.bf16.msra.mxu0 0
      %607 = vmatprep.subr.bf16.mxu0 0
      %608 = vmatpush1.bf16.msra.mxu0 0
      %609 = vmatprep.subr.bf16.mxu0 0
      %610 = vmatpush1.bf16.msra.mxu0 0
      %611 = vmatprep.subr.bf16.mxu0 0
      %612 = vmatpush1.bf16.msra.mxu0 0
      %613 = vmatprep.subr.bf16.mxu0 0
      %614 = vmatpush1.bf16.msra.mxu0 0
      %615 = vmatprep.subr.bf16.mxu0 0
      %616 = vmatpush1.bf16.msra.mxu0 0
      %617 = vmatprep.subr.bf16.mxu0 0
      %618 = vmatpush1.bf16.msra.mxu0 0
      %619 = vmatprep.mubr.bf16.mxu0 0
      %620 = vmatmul.mubr.bf16.gmra.mrb[0].mxu0 %v582
      %v621 = vpop.f32.mrb[0].mxu0
      %v622 = vadd.f32 0.0, %v621
      %v623 = vpop.f32.mrb[0].mxu0
      %v624 = vpop.f32.mrb[0].mxu0
      %v625 = vpop.f32.mrb[0].mxu0
      %626 = vdwg.mxu0
      %v627 = vadd.f32 %v577, %v622
      %628 = vst.msk [vmem:[%s570] sm:$0xff] %vm355, %v627
      %629 = vst.msk [vmem:[%s545] sm:$0xff] %vm425, %v550
      %v630 = vld [vmem:[#allocation6] sm:$0xf]
      %v632 = vunpack.c.l.b16 %v630
      %v633 = vpack.c.b16 %v632, %v632
      %634 = vrot.lane.b32.xlu0 %v633, 112
      %v635 = vpop.permute.xlu0 %634
      %636 = vrot.lane.b32.xlu0 %v437, 112
      %v637 = vpop.permute.xlu0 %636
      %v639 = vsel %vm355, %v635, 0
      %v642 = vsel %vm355, %v637, 0
      %644 = vmatprep.subr.bf16.mxu0 0
      %645 = vmatpush1.bf16.xpose.msra.mxu0 %v642
      %646 = vmatprep.subr.bf16.mxu0 0
      %647 = vmatpush1.bf16.xpose.msra.mxu0 0
      %648 = vmatprep.subr.bf16.mxu0 0
      %649 = vmatpush1.bf16.xpose.msra.mxu0 0
      %650 = vmatprep.subr.bf16.mxu0 0
      %651 = vmatpush1.bf16.xpose.msra.mxu0 0
      %652 = vmatprep.subr.bf16.mxu0 0
      %653 = vmatpush1.bf16.xpose.msra.mxu0 0
      %654 = vmatprep.subr.bf16.mxu0 0
      %655 = vmatpush1.bf16.xpose.msra.mxu0 0
      %656 = vmatprep.subr.bf16.mxu0 0
      %657 = vmatpush1.bf16.xpose.msra.mxu0 0
      %658 = vmatprep.subr.bf16.mxu0 0
      %659 = vmatpush1.bf16.xpose.msra.mxu0 0
      %660 = vmatprep.subr.bf16.mxu0 0
      %661 = vmatpush1.bf16.xpose.msra.mxu0 0
      %662 = vmatprep.subr.bf16.mxu0 0
      %663 = vmatpush1.bf16.xpose.msra.mxu0 0
      %664 = vmatprep.subr.bf16.mxu0 0
      %665 = vmatpush1.bf16.xpose.msra.mxu0 0
      %666 = vmatprep.subr.bf16.mxu0 0
      %667 = vmatpush1.bf16.xpose.msra.mxu0 0
      %668 = vmatprep.subr.bf16.mxu0 0
      %669 = vmatpush1.bf16.xpose.msra.mxu0 0
      %670 = vmatprep.subr.bf16.mxu0 0
      %671 = vmatpush1.bf16.xpose.msra.mxu0 0
      %672 = vmatprep.subr.bf16.mxu0 0
      %673 = vmatpush1.bf16.xpose.msra.mxu0 0
      %674 = vmatprep.subr.bf16.mxu0 0
      %675 = vmatpush1.bf16.xpose.msra.mxu0 0
      %676 = vmatprep.mubr.bf16.mxu0 0
      %677 = vmatmul.mubr.bf16.gmra.mrb[0].mxu0 %v639
      %v678 = vpop.f32.mrb[0].mxu0
      %v679 = vadd.f32 0.0, %v678
      %v680 = vpop.f32.mrb[0].mxu0
      %v681 = vpop.f32.mrb[0].mxu0
      %v682 = vpop.f32.mrb[0].mxu0
      %683 = vdwg.mxu0
      %v684 = vsel %vm352, %v679, -10000.0
      %s685 = scalar_lea.vmem [#allocation2], 16
      %v686 = vld [vmem:[%s685] sm:$0xff]
      %v687 = vsel %vm355, %v684, -inf
      %688 = vmax.xlane.f32.xlu0 %v687
      %v689 = vpop.xlane.xlu0 %688
      %v690 = vmax.f32 %v686, %v689
      %v691 = vsub.f32 %v686, %v690
      %v692 = vmul.f32 %v691, 1.442695
      %v693 = vpow.pop %v692
      %695 = vset.pattern.permute.xlu0 0
      %696 = vperm.xlu0 %695, %v690
      %v697 = vpop.permute.xlu0 %696
      %v699 = vsub.f32 %v684, %v697
      %v700 = vmul.f32 %v699, 1.442695
      %v701 = vpow.pop %v700
      %s702 = scalar_lea.vmem [#allocation3], 16
      %v703 = vld [vmem:[%s702] sm:$0xff]
      %v704 = vmul.f32 %v693, %v703
      %v705 = vsel %vm355, %v701, 0.0
      %706 = vadd.xlane.f32.xlu0 %v705
      %v707 = vpop.xlane.xlu0 %706
      %v708 = vadd.f32 %v704, %v707
      %709 = vst.msk [vmem:[%s702] sm:$0xff] %vm425, %v708
      %s710 = scalar_lea.vmem [#allocation4], 16
      %v711 = vld [vmem:[%s710] sm:$0xff]
      %713 = vset.pattern.permute.xlu0 0
      %714 = vperm.xlu0 %713, %v693
      %v715 = vpop.permute.xlu0 %714
      %v717 = vmul.f32 %v715, %v711
      %v718 = vpack.c.bf16 %v701, %v701
      %719 = vrot.lane.b32.xlu0 %v437, 80
      %v720 = vpop.permute.xlu0 %719
      %v722 = vsel %vm355, %v718, 0
      %v725 = vsel %vm443, %v720, 0
      %727 = vmatprep.subr.bf16.mxu0 0
      %728 = vmatpush1.bf16.msra.mxu0 %v725
      %729 = vmatprep.subr.bf16.mxu0 0
      %730 = vmatpush1.bf16.msra.mxu0 0
      %731 = vmatprep.subr.bf16.mxu0 0
      %732 = vmatpush1.bf16.msra.mxu0 0
      %733 = vmatprep.subr.bf16.mxu0 0
      %734 = vmatpush1.bf16.msra.mxu0 0
      %735 = vmatprep.subr.bf16.mxu0 0
      %736 = vmatpush1.bf16.msra.mxu0 0
      %737 = vmatprep.subr.bf16.mxu0 0
      %738 = vmatpush1.bf16.msra.mxu0 0
      %739 = vmatprep.subr.bf16.mxu0 0
      %740 = vmatpush1.bf16.msra.mxu0 0
      %741 = vmatprep.subr.bf16.mxu0 0
      %742 = vmatpush1.bf16.msra.mxu0 0
      %743 = vmatprep.subr.bf16.mxu0 0
      %744 = vmatpush1.bf16.msra.mxu0 0
      %745 = vmatprep.subr.bf16.mxu0 0
      %746 = vmatpush1.bf16.msra.mxu0 0
      %747 = vmatprep.subr.bf16.mxu0 0
      %748 = vmatpush1.bf16.msra.mxu0 0
      %749 = vmatprep.subr.bf16.mxu0 0
      %750 = vmatpush1.bf16.msra.mxu0 0
      %751 = vmatprep.subr.bf16.mxu0 0
      %752 = vmatpush1.bf16.msra.mxu0 0
      %753 = vmatprep.subr.bf16.mxu0 0
      %754 = vmatpush1.bf16.msra.mxu0 0
      %755 = vmatprep.subr.bf16.mxu0 0
      %756 = vmatpush1.bf16.msra.mxu0 0
      %757 = vmatprep.subr.bf16.mxu0 0
      %758 = vmatpush1.bf16.msra.mxu0 0
      %759 = vmatprep.mubr.bf16.mxu0 0
      %760 = vmatmul.mubr.bf16.gmra.mrb[0].mxu0 %v722
      %v761 = vpop.f32.mrb[0].mxu0
      %v762 = vadd.f32 0.0, %v761
      %v763 = vpop.f32.mrb[0].mxu0
      %v764 = vpop.f32.mrb[0].mxu0
      %v765 = vpop.f32.mrb[0].mxu0
      %766 = vdwg.mxu0
      %v767 = vadd.f32 %v717, %v762
      %768 = vst.msk [vmem:[%s710] sm:$0xff] %vm355, %v767
      %769 = vst.msk [vmem:[%s685] sm:$0xff] %vm425, %v690
      %v770 = vld [vmem:[#allocation6] sm:$0xf]
      %v772 = vunpack.c.l.b16 %v770
      %v773 = vpack.c.b16 %v772, %v772
      %774 = vrot.lane.b32.xlu0 %v773, 104
      %v775 = vpop.permute.xlu0 %774
      %776 = vrot.lane.b32.xlu0 %v437, 104
      %v777 = vpop.permute.xlu0 %776
      %v779 = vsel %vm355, %v775, 0
      %v782 = vsel %vm355, %v777, 0
      %784 = vmatprep.subr.bf16.mxu0 0
      %785 = vmatpush1.bf16.xpose.msra.mxu0 %v782
      %786 = vmatprep.subr.bf16.mxu0 0
      %787 = vmatpush1.bf16.xpose.msra.mxu0 0
      %788 = vmatprep.subr.bf16.mxu0 0
      %789 = vmatpush1.bf16.xpose.msra.mxu0 0
      %790 = vmatprep.subr.bf16.mxu0 0
      %791 = vmatpush1.bf16.xpose.msra.mxu0 0
      %792 = vmatprep.subr.bf16.mxu0 0
      %793 = vmatpush1.bf16.xpose.msra.mxu0 0
      %794 = vmatprep.subr.bf16.mxu0 0
      %795 = vmatpush1.bf16.xpose.msra.mxu0 0
      %796 = vmatprep.subr.bf16.mxu0 0
      %797 = vmatpush1.bf16.xpose.msra.mxu0 0
      %798 = vmatprep.subr.bf16.mxu0 0
      %799 = vmatpush1.bf16.xpose.msra.mxu0 0
      %800 = vmatprep.subr.bf16.mxu0 0
      %801 = vmatpush1.bf16.xpose.msra.mxu0 0
      %802 = vmatprep.subr.bf16.mxu0 0
      %803 = vmatpush1.bf16.xpose.msra.mxu0 0
      %804 = vmatprep.subr.bf16.mxu0 0
      %805 = vmatpush1.bf16.xpose.msra.mxu0 0
      %806 = vmatprep.subr.bf16.mxu0 0
      %807 = vmatpush1.bf16.xpose.msra.mxu0 0
      %808 = vmatprep.subr.bf16.mxu0 0
      %809 = vmatpush1.bf16.xpose.msra.mxu0 0
      %810 = vmatprep.subr.bf16.mxu0 0
      %811 = vmatpush1.bf16.xpose.msra.mxu0 0
      %812 = vmatprep.subr.bf16.mxu0 0
      %813 = vmatpush1.bf16.xpose.msra.mxu0 0
      %814 = vmatprep.subr.bf16.mxu0 0
      %815 = vmatpush1.bf16.xpose.msra.mxu0 0
      %816 = vmatprep.mubr.bf16.mxu0 0
      %817 = vmatmul.mubr.bf16.gmra.mrb[0].mxu0 %v779
      %v818 = vpop.f32.mrb[0].mxu0
      %v819 = vadd.f32 0.0, %v818
      %v820 = vpop.f32.mrb[0].mxu0
      %v821 = vpop.f32.mrb[0].mxu0
      %v822 = vpop.f32.mrb[0].mxu0
      %823 = vdwg.mxu0
      %v824 = vsel %vm352, %v819, -10000.0
      %s825 = scalar_lea.vmem [#allocation2], 24
      %v826 = vld [vmem:[%s825] sm:$0xff]
      %v827 = vsel %vm355, %v824, -inf
      %828 = vmax.xlane.f32.xlu0 %v827
      %v829 = vpop.xlane.xlu0 %828
      %v830 = vmax.f32 %v826, %v829
      %v831 = vsub.f32 %v826, %v830
      %v832 = vmul.f32 %v831, 1.442695
      %v833 = vpow.pop %v832
      %835 = vset.pattern.permute.xlu0 0
      %836 = vperm.xlu0 %835, %v830
      %v837 = vpop.permute.xlu0 %836
      %v839 = vsub.f32 %v824, %v837
      %v840 = vmul.f32 %v839, 1.442695
      %v841 = vpow.pop %v840
      %s842 = scalar_lea.vmem [#allocation3], 24
      %v843 = vld [vmem:[%s842] sm:$0xff]
      %v844 = vmul.f32 %v833, %v843
      %v845 = vsel %vm355, %v841, 0.0
      %846 = vadd.xlane.f32.xlu0 %v845
      %v847 = vpop.xlane.xlu0 %846
      %v848 = vadd.f32 %v844, %v847
      %849 = vst.msk [vmem:[%s842] sm:$0xff] %vm425, %v848
      %s850 = scalar_lea.vmem [#allocation4], 24
      %v851 = vld [vmem:[%s850] sm:$0xff]
      %853 = vset.pattern.permute.xlu0 0
      %854 = vperm.xlu0 %853, %v833
      %v855 = vpop.permute.xlu0 %854
      %v857 = vmul.f32 %v855, %v851
      %v858 = vpack.c.bf16 %v841, %v841
      %859 = vrot.lane.b32.xlu0 %v437, 72
      %v860 = vpop.permute.xlu0 %859
      %v862 = vsel %vm355, %v858, 0
      %v865 = vsel %vm443, %v860, 0
      %867 = vmatprep.subr.bf16.mxu0 0
      %868 = vmatpush1.bf16.msra.mxu0 %v865
      %869 = vmatprep.subr.bf16.mxu0 0
      %870 = vmatpush1.bf16.msra.mxu0 0
      %871 = vmatprep.subr.bf16.mxu0 0
      %872 = vmatpush1.bf16.msra.mxu0 0
      %873 = vmatprep.subr.bf16.mxu0 0
      %874 = vmatpush1.bf16.msra.mxu0 0
      %875 = vmatprep.subr.bf16.mxu0 0
      %876 = vmatpush1.bf16.msra.mxu0 0
      %877 = vmatprep.subr.bf16.mxu0 0
      %878 = vmatpush1.bf16.msra.mxu0 0
      %879 = vmatprep.subr.bf16.mxu0 0
      %880 = vmatpush1.bf16.msra.mxu0 0
      %881 = vmatprep.subr.bf16.mxu0 0
      %882 = vmatpush1.bf16.msra.mxu0 0
      %883 = vmatprep.subr.bf16.mxu0 0
      %884 = vmatpush1.bf16.msra.mxu0 0
      %885 = vmatprep.subr.bf16.mxu0 0
      %886 = vmatpush1.bf16.msra.mxu0 0
      %887 = vmatprep.subr.bf16.mxu0 0
      %888 = vmatpush1.bf16.msra.mxu0 0
      %889 = vmatprep.subr.bf16.mxu0 0
      %890 = vmatpush1.bf16.msra.mxu0 0
      %891 = vmatprep.subr.bf16.mxu0 0
      %892 = vmatpush1.bf16.msra.mxu0 0
      %893 = vmatprep.subr.bf16.mxu0 0
      %894 = vmatpush1.bf16.msra.mxu0 0
      %895 = vmatprep.subr.bf16.mxu0 0
      %896 = vmatpush1.bf16.msra.mxu0 0
      %897 = vmatprep.subr.bf16.mxu0 0
      %898 = vmatpush1.bf16.msra.mxu0 0
      %899 = vmatprep.mubr.bf16.mxu0 0
      %900 = vmatmul.mubr.bf16.gmra.mrb[0].mxu0 %v862
      %v901 = vpop.f32.mrb[0].mxu0
      %v902 = vadd.f32 0.0, %v901
      %v903 = vpop.f32.mrb[0].mxu0
      %v904 = vpop.f32.mrb[0].mxu0
      %v905 = vpop.f32.mrb[0].mxu0
      %906 = vdwg.mxu0
      %v907 = vadd.f32 %v857, %v902
      %908 = vst.msk [vmem:[%s850] sm:$0xff] %vm355, %v907
      %909 = vst.msk [vmem:[%s825] sm:$0xff] %vm425, %v830
      // Predicated region
      $region41: #{transformer_forward.31} parent=35 // pred_check
        %p910 = pneg %p313
      $region42: #{transformer_forward.31} parent=35 // pred_check_branch
        %912 = sbr.rel (%p910) target = $region44
      $region43: #{transformer_forward.31} parent=35 // pred_region
        %v913 = vld [vmem:[#allocation3] sm:$0xff]
        %v914 = vrcp.pop %v913
        %v915 = vld [vmem:[#allocation4] sm:$0xff]
        %917 = vset.pattern.permute.xlu0 0
        %918 = vperm.xlu0 %917, %v914
        %v919 = vpop.permute.xlu0 %918
        %v921 = vmul.f32 %v915, %v919
        %922 = vst.msk [vmem:[#allocation5] sm:$0xff] %vm355, %v921
        %v923 = vld [vmem:[%s562] sm:$0xff]
        %v924 = vrcp.pop %v923
        %v925 = vld [vmem:[%s570] sm:$0xff]
        %927 = vset.pattern.permute.xlu0 0
        %928 = vperm.xlu0 %927, %v924
        %v929 = vpop.permute.xlu0 %928
        %v931 = vmul.f32 %v925, %v929
        %933 = vrot.lane.b32.xlu0 %v931, 8
        %v934 = vpop.permute.xlu0 %933
        %vm936 = vcmask 130112
        %937 = vst.msk [vmem:[#allocation5] sm:$0xff] %vm936, %v934
        %v938 = vld [vmem:[%s702] sm:$0xff]
        %v939 = vrcp.pop %v938
        %v940 = vld [vmem:[%s710] sm:$0xff]
        %942 = vset.pattern.permute.xlu0 0
        %943 = vperm.xlu0 %942, %v939
        %v944 = vpop.permute.xlu0 %943
        %v946 = vmul.f32 %v940, %v944
        %948 = vrot.lane.b32.xlu0 %v946, 16
        %v949 = vpop.permute.xlu0 %948
        %vm951 = vcmask 195712
        %952 = vst.msk [vmem:[#allocation5] sm:$0xff] %vm951, %v949
        %v953 = vld [vmem:[%s842] sm:$0xff]
        %v954 = vrcp.pop %v953
        %v955 = vld [vmem:[%s850] sm:$0xff]
        %957 = vset.pattern.permute.xlu0 0
        %958 = vperm.xlu0 %957, %v954
        %v959 = vpop.permute.xlu0 %958
        %v961 = vmul.f32 %v955, %v959
        %963 = vrot.lane.b32.xlu0 %v961, 24
        %v964 = vpop.permute.xlu0 %963
        %vm966 = vcmask 261312
        %967 = vst.msk [vmem:[#allocation5] sm:$0xff] %vm966, %v964
        %v968 = vld [vmem:[#allocation5] sm:$0xff]
        %v969 = vpack.c.bf16 %v968, %v968
        %vm970 = vcmask 257024
        %971 = vst.msk [vmem:[%s311] sm:$0xf] %vm970, %v969
      $region44: #{transformer_forward.31} parent=35 // pred_fallthru
        _
      %p972 = scmp.lt.s32.totalorder %s20, 1
      %s973 = scalar_select %p972, %s20, 1
      %p974 = scmp.lt.s32.totalorder %s21, 0
      %s975 = scalar_select %p974, %s21, 0
      %s976 = sadd.s32 %s975, %s973
      %s977 = smul.addr %s976, 4
      %s978 = scalar_lea.vmem %s4, %s977
      // Predicated region
      $region45: #{transformer_forward.31} parent=35 // pred_check
        %p979 = pneg %p166
      $region46: #{transformer_forward.31} parent=35 // pred_check_branch
        %981 = sbr.rel (%p979) target = $region48
      $region47: #{transformer_forward.31} parent=35 // pred_region
        _
      $region48: #{transformer_forward.31} parent=35 // pred_fallthru
        _
    $region36: #{transformer_forward.31} parent=5 // pred_fallthru
      _
    %p982 = scmp.le.s32.totalorder 2, %s10
    // Predicated region
    $region49: #{transformer_forward.31} parent=5 // pred_check
      %p983 = pneg %p982
    $region50: #{transformer_forward.31} parent=5 // pred_check_branch
      %985 = sbr.rel (%p983) target = $region52
    $region51: #{transformer_forward.31} parent=5 // pred_region
      %s986 = ssub.s32 %s10, 2
      // Predicated region
      $region53: #{transformer_forward.31} parent=51 // pred_check
        %p987 = pneg %p172
      $region54: #{transformer_forward.31} parent=51 // pred_check_branch
        %989 = sbr.rel (%p987) target = $region56
      $region55: #{transformer_forward.31} parent=51 // pred_region
        %p990 = scmp.lt.s32.totalorder %s23, 1
        %s991 = scalar_select %p990, %s23, 1
        %p992 = scmp.lt.s32.totalorder %s24, 0
        %s993 = scalar_select %p992, %s24, 0
        %s994 = sadd.s32 %s993, %s991
        %s995 = smul.addr %s994, 4
        %s996 = scalar_lea.vmem %s4, %s995
      $region56: #{transformer_forward.31} parent=51 // pred_fallthru
        _
    $region52: #{transformer_forward.31} parent=5 // pred_fallthru
      _
  $region6: #{transformer_forward.31} parent=0 // loop_footer
    %s14 = sadd.s32 1, %s10
  $region7: #{transformer_forward.31} parent=0 // loop_footer_branch
    %9 = sbr.rel target = $region3
  $region8: #{transformer_forward.31} parent=0 // loop_exit
    _

// kernel: transformer_forward.57
$region0: #{transformer_forward.57}
  #allocation0 [shape = 'u32[]', space=smem, size = 0x4, offset = 0x4, fixed_abs, tag = 'smem constant byte address 0x4 - core index']
  #allocation1 [shape = 'u32[144,128]{1,0:T(1,128)}', space=vmem, size = 0x12000, scoped, tag = 'internal scratch']
  #allocation2 [shape = 'f32[16,128]{1,0:T(8,128)}', space=vmem, size = 0x2000, scoped, tag = 'scratch operand']
  %s0 = inlined_call_operand.vmem [shape: bf16[16,32], index: 0, kind: input, shape index: {}]
  %s1 = inlined_call_operand.vmem [shape: bf16[32,128], index: 1, kind: input, shape index: {}]
  %s2 = inlined_call_operand.vmem [shape: f32[1,128], index: 2, kind: input, shape index: {}]
  %s3 = inlined_call_operand.vmem [shape: f32[16,128], index: 3, kind: output, shape index: {}]
  %s4 = sld [smem:[#allocation0]]
  $region30: #{transformer_forward.57} parent=0
    _
  %s6 = ssub.s32 1, %s4
  %s7 = scalar_select 0, %s6, %s4
  // Predicated region
  $region2: #{transformer_forward.57} parent=0 // pred_check
    _
  $region3: #{transformer_forward.57} parent=0 // pred_check_branch
    %9 = sbr.rel (0) target = $region5
  $region4: #{transformer_forward.57} parent=0 // pred_region
    _
  $region5: #{transformer_forward.57} parent=0 // pred_fallthru
    _
  // Predicated region
  $region6: #{transformer_forward.57} parent=0 // pred_check
    _
  $region7: #{transformer_forward.57} parent=0 // pred_check_branch
    %11 = sbr.rel (0) target = $region9
  $region8: #{transformer_forward.57} parent=0 // pred_region
    _
  $region9: #{transformer_forward.57} parent=0 // pred_fallthru
    _
  // Predicated region
  $region10: #{transformer_forward.57} parent=0 // pred_check
    _
  $region11: #{transformer_forward.57} parent=0 // pred_check_branch
    %13 = sbr.rel (0) target = $region13
  $region12: #{transformer_forward.57} parent=0 // pred_region
    _
  $region13: #{transformer_forward.57} parent=0 // pred_fallthru
    _
  %p15 = scmp.eq.s32.totalorder 0, 0
  // Predicated region
  $region14: #{transformer_forward.57} parent=0 // pred_check
    %p16 = pneg %p15
  $region15: #{transformer_forward.57} parent=0 // pred_check_branch
    %18 = sbr.rel (%p16) target = $region17
  $region16: #{transformer_forward.57} parent=0 // pred_region
    %19 = vst [vmem:[#allocation2] sm:$0xff] 0.0
    %20 = vst [vmem:[#allocation2 + $0x8] sm:$0xff] 0.0
  $region17: #{transformer_forward.57} parent=0 // pred_fallthru
    _
  %v21 = vld [vmem:[#allocation2] sm:$0xff]
  %v22 = vld [vmem:[#allocation2 + $0x8] sm:$0xff]
  %v23 = vld [vmem:[%s0] sm:$0xf]
  %v24 = vld [vmem:[%s0 + $0x4] sm:$0xf]
  %v25 = vld [vmem:[%s1] sm:$0xf]
  %v26 = vld [vmem:[%s1 + $0x4] sm:$0xf]
  %v27 = vld [vmem:[%s1 + $0x8] sm:$0xf]
  %v28 = vld [vmem:[%s1 + $0xc] sm:$0xf]
  %v31 = vunpack.c.l.b16 %v23
  %v32 = vunpack.c.l.b16 %v24
  %v33 = vpack.c.b16 %v32, %v31
  %v38 = vunpack.c.l.b16 %v25
  %v39 = vunpack.c.l.b16 %v26
  %v40 = vunpack.c.l.b16 %v27
  %v41 = vunpack.c.l.b16 %v28
  %v42 = vpack.c.b16 %v39, %v38
  %v43 = vpack.c.b16 %v41, %v40
  %vm46 = vcmask 261120
  %v48 = vsel %vm46, %v33, 0
  %50 = vmatprep.subr.bf16.mxu0 0
  %51 = vmatpush1.bf16.msra.mxu0 %v42
  %52 = vmatprep.subr.bf16.mxu0 0
  %53 = vmatpush1.bf16.msra.mxu0 %v43
  %54 = vmatprep.subr.bf16.mxu0 0
  %55 = vmatpush1.bf16.msra.mxu0 0
  %56 = vmatprep.subr.bf16.mxu0 0
  %57 = vmatpush1.bf16.msra.mxu0 0
  %58 = vmatprep.subr.bf16.mxu0 0
  %59 = vmatpush1.bf16.msra.mxu0 0
  %60 = vmatprep.subr.bf16.mxu0 0
  %61 = vmatpush1.bf16.msra.mxu0 0
  %62 = vmatprep.subr.bf16.mxu0 0
  %63 = vmatpush1.bf16.msra.mxu0 0
  %64 = vmatprep.subr.bf16.mxu0 0
  %65 = vmatpush1.bf16.msra.mxu0 0
  %66 = vmatprep.subr.bf16.mxu0 0
  %67 = vmatpush1.bf16.msra.mxu0 0
  %68 = vmatprep.subr.bf16.mxu0 0
  %69 = vmatpush1.bf16.msra.mxu0 0
  %70 = vmatprep.subr.bf16.mxu0 0
  %71 = vmatpush1.bf16.msra.mxu0 0
  %72 = vmatprep.subr.bf16.mxu0 0
  %73 = vmatpush1.bf16.msra.mxu0 0
  %74 = vmatprep.subr.bf16.mxu0 0
  %75 = vmatpush1.bf16.msra.mxu0 0
  %76 = vmatprep.subr.bf16.mxu0 0
  %77 = vmatpush1.bf16.msra.mxu0 0
  %78 = vmatprep.subr.bf16.mxu0 0
  %79 = vmatpush1.bf16.msra.mxu0 0
  %80 = vmatprep.subr.bf16.mxu0 0
  %81 = vmatpush1.bf16.msra.mxu0 0
  %82 = vmatprep.mubr.bf16.mxu0 0
  %83 = vmatmul.mubr.bf16.gmra.mrb[0].mxu0 %v48
  %v84 = vpop.f32.mrb[0].mxu0
  %v85 = vadd.f32 0.0, %v84
  %v86 = vpop.f32.mrb[0].mxu0
  %v87 = vpop.f32.mrb[0].mxu0
  %v88 = vadd.f32 0.0, %v87
  %v89 = vpop.f32.mrb[0].mxu0
  %90 = vdwg.mxu0
  %v91 = vadd.f32 %v21, %v85
  %v92 = vadd.f32 %v22, %v88
  %93 = vst [vmem:[#allocation2] sm:$0xff] %v91
  %94 = vst [vmem:[#allocation2 + $0x8] sm:$0xff] %v92
  // Predicated region
  $region18: #{transformer_forward.57} parent=0 // pred_check
    %p95 = pneg %p15
  $region19: #{transformer_forward.57} parent=0 // pred_check_branch
    %97 = sbr.rel (%p95) target = $region21
  $region20: #{transformer_forward.57} parent=0 // pred_region
    %v98 = vld [vmem:[#allocation2] sm:$0xff]
    %v99 = vld [vmem:[#allocation2 + $0x8] sm:$0xff]
    %v100 = vld [vmem:[%s2] sm:$0x1]
    %v102 = vlaneseq
    %v103 = vshrl.u32 %v102, 7
    %v104 = vsub.s32 0, %v103
    %v105 = vrot.slane %v100, %v104
    %v107 = vadd.f32 %v98, %v105
    %v108 = vadd.f32 %v99, %v105
    %109 = vst [vmem:[%s3] sm:$0xff] %v107
    %110 = vst [vmem:[%s3 + $0x8] sm:$0xff] %v108
  $region21: #{transformer_forward.57} parent=0 // pred_fallthru
    _
  // Predicated region
  $region22: #{transformer_forward.57} parent=0 // pred_check
    _
  $region23: #{transformer_forward.57} parent=0 // pred_check_branch
    %112 = sbr.rel (0) target = $region25
  $region24: #{transformer_forward.57} parent=0 // pred_region
    _
  $region25: #{transformer_forward.57} parent=0 // pred_fallthru
    _
  // Predicated region
  $region26: #{transformer_forward.57} parent=0 // pred_check
    _
  $region27: #{transformer_forward.57} parent=0 // pred_check_branch
    %114 = sbr.rel (0) target = $region29
  $region28: #{transformer_forward.57} parent=0 // pred_region
    _
  $region29: #{transformer_forward.57} parent=0 // pred_fallthru
    _

// kernel: transformer_forward.33
$region0: #{transformer_forward.33}
  #allocation0 [shape = 'u32[]', space=smem, size = 0x4, offset = 0x4, fixed_abs, tag = 'smem constant byte address 0x4 - core index']
  #allocation1 [shape = 'u32[144,128]{1,0:T(1,128)}', space=vmem, size = 0x12000, scoped, tag = 'internal scratch']
  #allocation2 [shape = 'f32[16,32]{1,0:T(8,128)}', space=vmem, size = 0x2000, scoped, tag = 'scratch operand']
  %s0 = inlined_call_operand.vmem [shape: bf16[16,32], index: 0, kind: input, shape index: {}, may-alias: {0,5}]
  %s1 = inlined_call_operand.vmem [shape: bf16[32,64], index: 1, kind: input, shape index: {}]
  %s2 = inlined_call_operand.vmem [shape: f32[1,64], index: 2, kind: input, shape index: {}]
  %s3 = inlined_call_operand.vmem [shape: bf16[64,32], index: 3, kind: input, shape index: {}]
  %s4 = inlined_call_operand.vmem [shape: f32[1,32], index: 4, kind: input, shape index: {}]
  %s5 = inlined_call_operand.vmem [shape: bf16[16,32], index: 5, kind: input, shape index: {}, may-alias: {0,5}]
  %s6 = inlined_call_operand.vmem [shape: f32[1,32], index: 6, kind: input, shape index: {}]
  %s7 = inlined_call_operand.vmem [shape: f32[1,32], index: 7, kind: input, shape index: {}]
  %s8 = inlined_call_operand.vmem [shape: bf16[16,32], index: 8, kind: output, shape index: {}]
  %s9 = sld [smem:[#allocation0]]
  $region50: #{transformer_forward.33} parent=0
    _
  %s11 = ssub.s32 1, %s9
  %s12 = scalar_select 0, %s11, %s9
  // Predicated region
  $region2: #{transformer_forward.33} parent=0 // pred_check
    _
  $region3: #{transformer_forward.33} parent=0 // pred_check_branch
    %14 = sbr.rel (0) target = $region5
  $region4: #{transformer_forward.33} parent=0 // pred_region
    _
  $region5: #{transformer_forward.33} parent=0 // pred_fallthru
    _
  // Predicated region
  $region6: #{transformer_forward.33} parent=0 // pred_check
    _
  $region7: #{transformer_forward.33} parent=0 // pred_check_branch
    %16 = sbr.rel (0) target = $region9
  $region8: #{transformer_forward.33} parent=0 // pred_region
    _
  $region9: #{transformer_forward.33} parent=0 // pred_fallthru
    _
  // Predicated region
  $region10: #{transformer_forward.33} parent=0 // pred_check
    _
  $region11: #{transformer_forward.33} parent=0 // pred_check_branch
    %18 = sbr.rel (0) target = $region13
  $region12: #{transformer_forward.33} parent=0 // pred_region
    _
  $region13: #{transformer_forward.33} parent=0 // pred_fallthru
    _
  // Predicated region
  $region14: #{transformer_forward.33} parent=0 // pred_check
    _
  $region15: #{transformer_forward.33} parent=0 // pred_check_branch
    %20 = sbr.rel (0) target = $region17
  $region16: #{transformer_forward.33} parent=0 // pred_region
    _
  $region17: #{transformer_forward.33} parent=0 // pred_fallthru
    _
  // Predicated region
  $region18: #{transformer_forward.33} parent=0 // pred_check
    _
  $region19: #{transformer_forward.33} parent=0 // pred_check_branch
    %22 = sbr.rel (0) target = $region21
  $region20: #{transformer_forward.33} parent=0 // pred_region
    _
  $region21: #{transformer_forward.33} parent=0 // pred_fallthru
    _
  // Predicated region
  $region22: #{transformer_forward.33} parent=0 // pred_check
    _
  $region23: #{transformer_forward.33} parent=0 // pred_check_branch
    %24 = sbr.rel (0) target = $region25
  $region24: #{transformer_forward.33} parent=0 // pred_region
    _
  $region25: #{transformer_forward.33} parent=0 // pred_fallthru
    _
  // Predicated region
  $region26: #{transformer_forward.33} parent=0 // pred_check
    _
  $region27: #{transformer_forward.33} parent=0 // pred_check_branch
    %26 = sbr.rel (0) target = $region29
  $region28: #{transformer_forward.33} parent=0 // pred_region
    _
  $region29: #{transformer_forward.33} parent=0 // pred_fallthru
    _
  // Predicated region
  $region30: #{transformer_forward.33} parent=0 // pred_check
    _
  $region31: #{transformer_forward.33} parent=0 // pred_check_branch
    %28 = sbr.rel (0) target = $region33
  $region32: #{transformer_forward.33} parent=0 // pred_region
    _
  $region33: #{transformer_forward.33} parent=0 // pred_fallthru
    _
  %p30 = scmp.eq.s32.totalorder 0, 0
  // Predicated region
  $region34: #{transformer_forward.33} parent=0 // pred_check
    %p31 = pneg %p30
  $region35: #{transformer_forward.33} parent=0 // pred_check_branch
    %33 = sbr.rel (%p31) target = $region37
  $region36: #{transformer_forward.33} parent=0 // pred_region
    %vm34 = vcmask 261120
    %35 = vst.msk [vmem:[#allocation2] sm:$0xff] %vm34, 0.0
    %36 = vst.msk [vmem:[#allocation2 + $0x8] sm:$0xff] %vm34, 0.0
  $region37: #{transformer_forward.33} parent=0 // pred_fallthru
    _
  %v37 = vld [vmem:[%s0] sm:$0xf]
  %v38 = vld [vmem:[%s0 + $0x4] sm:$0xf]
  %v39 = vld [vmem:[%s1] sm:$0xf]
  %v40 = vld [vmem:[%s1 + $0x4] sm:$0xf]
  %v41 = vld [vmem:[%s1 + $0x8] sm:$0xf]
  %v42 = vld [vmem:[%s1 + $0xc] sm:$0xf]
  %v43 = vld [vmem:[%s2] sm:$0x1]
  %v45 = vlaneseq
  %v46 = vshrl.u32 %v45, 7
  %v47 = vsub.s32 0, %v46
  %v48 = vrot.slane %v43, %v47
  %v52 = vunpack.c.l.b16 %v37
  %v53 = vunpack.c.l.b16 %v38
  %v54 = vpack.c.b16 %v53, %v52
  %v59 = vunpack.c.l.b16 %v39
  %v60 = vunpack.c.l.b16 %v40
  %v61 = vunpack.c.l.b16 %v41
  %v62 = vunpack.c.l.b16 %v42
  %v63 = vpack.c.b16 %v60, %v59
  %v64 = vpack.c.b16 %v62, %v61
  %vm67 = vcmask 261120
  %v69 = vsel %vm67, %v54, 0
  %71 = vmatprep.subr.bf16.mxu0 0
  %72 = vmatpush1.bf16.msra.mxu0 %v63
  %73 = vmatprep.subr.bf16.mxu0 0
  %74 = vmatpush1.bf16.msra.mxu0 %v64
  %75 = vmatprep.subr.bf16.mxu0 0
  %76 = vmatpush1.bf16.msra.mxu0 0
  %77 = vmatprep.subr.bf16.mxu0 0
  %78 = vmatpush1.bf16.msra.mxu0 0
  %79 = vmatprep.subr.bf16.mxu0 0
  %80 = vmatpush1.bf16.msra.mxu0 0
  %81 = vmatprep.subr.bf16.mxu0 0
  %82 = vmatpush1.bf16.msra.mxu0 0
  %83 = vmatprep.subr.bf16.mxu0 0
  %84 = vmatpush1.bf16.msra.mxu0 0
  %85 = vmatprep.subr.bf16.mxu0 0
  %86 = vmatpush1.bf16.msra.mxu0 0
  %87 = vmatprep.subr.bf16.mxu0 0
  %88 = vmatpush1.bf16.msra.mxu0 0
  %89 = vmatprep.subr.bf16.mxu0 0
  %90 = vmatpush1.bf16.msra.mxu0 0
  %91 = vmatprep.subr.bf16.mxu0 0
  %92 = vmatpush1.bf16.msra.mxu0 0
  %93 = vmatprep.subr.bf16.mxu0 0
  %94 = vmatpush1.bf16.msra.mxu0 0
  %95 = vmatprep.subr.bf16.mxu0 0
  %96 = vmatpush1.bf16.msra.mxu0 0
  %97 = vmatprep.subr.bf16.mxu0 0
  %98 = vmatpush1.bf16.msra.mxu0 0
  %99 = vmatprep.subr.bf16.mxu0 0
  %100 = vmatpush1.bf16.msra.mxu0 0
  %101 = vmatprep.subr.bf16.mxu0 0
  %102 = vmatpush1.bf16.msra.mxu0 0
  %103 = vmatprep.mubr.bf16.mxu0 0
  %104 = vmatmul.mubr.bf16.gmra.mrb[0].mxu0 %v69
  %v105 = vpop.f32.mrb[0].mxu0
  %v106 = vadd.f32 %v48, %v105
  %v107 = vpop.f32.mrb[0].mxu0
  %v108 = vpop.f32.mrb[0].mxu0
  %v109 = vadd.f32 %v48, %v108
  %v110 = vpop.f32.mrb[0].mxu0
  %111 = vdwg.mxu0
  %v112 = vmax.f32 %v106, 0.0
  %v113 = vmax.f32 %v109, 0.0
  %v114 = vpack.c.bf16 %v113, %v112
  %v115 = vld [vmem:[#allocation2] sm:$0xff]
  %v116 = vld [vmem:[#allocation2 + $0x8] sm:$0xff]
  %v117 = vld [vmem:[%s3] sm:$0xf]
  %v118 = vld [vmem:[%s3 + $0x4] sm:$0xf]
  %v119 = vld [vmem:[%s3 + $0x8] sm:$0xf]
  %v120 = vld [vmem:[%s3 + $0xc] sm:$0xf]
  %v121 = vld [vmem:[%s3 + $0x10] sm:$0xf]
  %v122 = vld [vmem:[%s3 + $0x14] sm:$0xf]
  %v123 = vld [vmem:[%s3 + $0x18] sm:$0xf]
  %v124 = vld [vmem:[%s3 + $0x1c] sm:$0xf]
  %v133 = vunpack.c.l.b16 %v117
  %v134 = vunpack.c.l.b16 %v118
  %v135 = vunpack.c.l.b16 %v119
  %v136 = vunpack.c.l.b16 %v120
  %v137 = vunpack.c.l.b16 %v121
  %v138 = vunpack.c.l.b16 %v122
  %v139 = vunpack.c.l.b16 %v123
  %v140 = vunpack.c.l.b16 %v124
  %v141 = vpack.c.b16 %v134, %v133
  %v142 = vpack.c.b16 %v136, %v135
  %v143 = vpack.c.b16 %v138, %v137
  %v144 = vpack.c.b16 %v140, %v139
  %vm149 = vcmask 523264
  %v151 = vsel %vm149, %v114, 0
  %153 = vmatprep.subr.bf16.mxu0 0
  %154 = vmatpush1.bf16.msra.mxu0 %v141
  %155 = vmatprep.subr.bf16.mxu0 0
  %156 = vmatpush1.bf16.msra.mxu0 %v142
  %157 = vmatprep.subr.bf16.mxu0 0
  %158 = vmatpush1.bf16.msra.mxu0 %v143
  %159 = vmatprep.subr.bf16.mxu0 0
  %160 = vmatpush1.bf16.msra.mxu0 %v144
  %161 = vmatprep.subr.bf16.mxu0 0
  %162 = vmatpush1.bf16.msra.mxu0 0
  %163 = vmatprep.subr.bf16.mxu0 0
  %164 = vmatpush1.bf16.msra.mxu0 0
  %165 = vmatprep.subr.bf16.mxu0 0
  %166 = vmatpush1.bf16.msra.mxu0 0
  %167 = vmatprep.subr.bf16.mxu0 0
  %168 = vmatpush1.bf16.msra.mxu0 0
  %169 = vmatprep.subr.bf16.mxu0 0
  %170 = vmatpush1.bf16.msra.mxu0 0
  %171 = vmatprep.subr.bf16.mxu0 0
  %172 = vmatpush1.bf16.msra.mxu0 0
  %173 = vmatprep.subr.bf16.mxu0 0
  %174 = vmatpush1.bf16.msra.mxu0 0
  %175 = vmatprep.subr.bf16.mxu0 0
  %176 = vmatpush1.bf16.msra.mxu0 0
  %177 = vmatprep.subr.bf16.mxu0 0
  %178 = vmatpush1.bf16.msra.mxu0 0
  %179 = vmatprep.subr.bf16.mxu0 0
  %180 = vmatpush1.bf16.msra.mxu0 0
  %181 = vmatprep.subr.bf16.mxu0 0
  %182 = vmatpush1.bf16.msra.mxu0 0
  %183 = vmatprep.subr.bf16.mxu0 0
  %184 = vmatpush1.bf16.msra.mxu0 0
  %185 = vmatprep.mubr.bf16.mxu0 0
  %186 = vmatmul.mubr.bf16.gmra.mrb[0].mxu0 %v151
  %v187 = vpop.f32.mrb[0].mxu0
  %v188 = vadd.f32 0.0, %v187
  %v189 = vpop.f32.mrb[0].mxu0
  %v190 = vpop.f32.mrb[0].mxu0
  %v191 = vadd.f32 0.0, %v190
  %v192 = vpop.f32.mrb[0].mxu0
  %193 = vdwg.mxu0
  %v194 = vadd.f32 %v115, %v188
  %v195 = vadd.f32 %v116, %v191
  %196 = vst.msk [vmem:[#allocation2] sm:$0xff] %vm67, %v194
  %197 = vst.msk [vmem:[#allocation2 + $0x8] sm:$0xff] %vm67, %v195
  // Predicated region
  $region38: #{transformer_forward.33} parent=0 // pred_check
    %p198 = pneg %p30
  $region39: #{transformer_forward.33} parent=0 // pred_check_branch
    %200 = sbr.rel (%p198) target = $region41
  $region40: #{transformer_forward.33} parent=0 // pred_region
    %v201 = vld [vmem:[#allocation2] sm:$0xff]
    %v202 = vld [vmem:[#allocation2 + $0x8] sm:$0xff]
    %v203 = vld [vmem:[%s4] sm:$0x1]
    %v205 = vlaneseq
    %v206 = vshrl.u32 %v205, 7
    %v207 = vsub.s32 0, %v206
    %v208 = vrot.slane %v203, %v207
    %v210 = vadd.f32 %v201, %v208
    %v211 = vadd.f32 %v202, %v208
    %v212 = vld [vmem:[%s5] sm:$0xf]
    %v213 = vld [vmem:[%s5 + $0x4] sm:$0xf]
    %v214 = vunpack.c.l.bf16 %v212
    %v215 = vunpack.c.l.bf16 %v213
    %v216 = vadd.f32 %v210, %v214
    %v217 = vadd.f32 %v211, %v215
    %v218 = vsel %vm67, %v216, 0.0
    %219 = vadd.xlane.f32.xlu0 %v218
    %v220 = vpop.xlane.xlu0 %219
    %v221 = vsel %vm67, %v217, 0.0
    %222 = vadd.xlane.f32.xlu0 %v221
    %v223 = vpop.xlane.xlu0 %222
    %v224 = vrcp.pop 32.0
    %v225 = vmul.f32 %v220, %v224
    %v226 = vmul.f32 %v223, %v224
    %v227 = vsub.f32 %v216, %v225
    %v228 = vsub.f32 %v217, %v226
    %v229 = vmul.f32 %v227, %v227
    %v230 = vmul.f32 %v228, %v228
    %v231 = vsel %vm67, %v229, 0.0
    %232 = vadd.xlane.f32.xlu0 %v231
    %v233 = vpop.xlane.xlu0 %232
    %v234 = vsel %vm67, %v230, 0.0
    %235 = vadd.xlane.f32.xlu0 %v234
    %v236 = vpop.xlane.xlu0 %235
    %v237 = vmul.f32 %v233, %v224
    %v238 = vmul.f32 %v236, %v224
    %v239 = vadd.f32 %v237, 1e-12
    %v240 = vadd.f32 %v238, 1e-12
    %v241 = vrsqrt.pop %v239
    %v242 = vrsqrt.pop %v240
    %v243 = vmul.f32 %v227, %v241
    %v244 = vmul.f32 %v228, %v242
    %v245 = vld [vmem:[%s6] sm:$0x1]
    %v247 = vlaneseq
    %v248 = vshrl.u32 %v247, 7
    %v249 = vsub.s32 0, %v248
    %v250 = vrot.slane %v245, %v249
    %v252 = vmul.f32 %v243, %v250
    %v253 = vmul.f32 %v244, %v250
    %v254 = vld [vmem:[%s7] sm:$0x1]
    %v256 = vlaneseq
    %v257 = vshrl.u32 %v256, 7
    %v258 = vsub.s32 0, %v257
    %v259 = vrot.slane %v254, %v258
    %v261 = vadd.f32 %v252, %v259
    %v262 = vadd.f32 %v253, %v259
    %v263 = vpack.c.bf16 %v262, %v261
    %v265 = vunpack.c.l.b16 %v263
    %v266 = vunpack.c.h.b16 %v263
    %v267 = vpack.c.b16 %v265, %v265
    %v268 = vpack.c.b16 %v266, %v266
    %vm271 = vcmask 257024
    %272 = vst.msk [vmem:[%s8] sm:$0xf] %vm271, %v267
    %273 = vst.msk [vmem:[%s8 + $0x4] sm:$0xf] %vm271, %v268
  $region41: #{transformer_forward.33} parent=0 // pred_fallthru
    _
  // Predicated region
  $region42: #{transformer_forward.33} parent=0 // pred_check
    _
  $region43: #{transformer_forward.33} parent=0 // pred_check_branch
    %275 = sbr.rel (0) target = $region45
  $region44: #{transformer_forward.33} parent=0 // pred_region
    _
  $region45: #{transformer_forward.33} parent=0 // pred_fallthru
    _
  // Predicated region
  $region46: #{transformer_forward.33} parent=0 // pred_check
    _
  $region47: #{transformer_forward.33} parent=0 // pred_check_branch
    %277 = sbr.rel (0) target = $region49
  $region48: #{transformer_forward.33} parent=0 // pred_region
    _
  $region49: #{transformer_forward.33} parent=0 // pred_fallthru
    _

// kernel: transformer_forward.41
$region0: #{transformer_forward.41}
  #allocation0 [shape = 'u32[]', space=smem, size = 0x4, offset = 0x4, fixed_abs, tag = 'smem constant byte address 0x4 - core index']
  #allocation1 [shape = 'u32[144,128]{1,0:T(1,128)}', space=vmem, size = 0x12000, scoped, tag = 'internal scratch']
  #allocation2 [shape = 'f32[4,8,1]{2,1,0:T(8,128)}', space=vmem, size = 0x4000, scoped, tag = 'scratch operand']
  #allocation3 [shape = 'f32[4,8,1]{2,1,0:T(8,128)}', space=vmem, size = 0x4000, scoped, tag = 'scratch operand']
  #allocation4 [shape = 'f32[4,8,8]{2,1,0:T(8,128)}', space=vmem, size = 0x4000, scoped, tag = 'scratch operand']
  #allocation5 [shape = 'f32[8,32]{1,0:T(8,128)}', space=vmem, size = 0x1000, scoped, tag = 'scratch operand']
  #allocation6 [shape = 'bf16[8,32]{1,0:T(8,128)(2,1)}', space=vmem, size = 0x800, scoped, tag = 'scratch operand']
  %s0 = inlined_call_operand.vmem [shape: bf16[2,8,32], index: 0, kind: input, shape index: {}]
  %s1 = inlined_call_operand.vmem [shape: bf16[2,8,64], index: 1, kind: input, shape index: {}]
  %s2 = inlined_call_operand.vmem [shape: f32[2,1,8], index: 2, kind: input, shape index: {}]
  %s3 = inlined_call_operand.vmem [shape: f32[2,8,1], index: 3, kind: input, shape index: {}]
  %s4 = inlined_call_operand.vmem [shape: bf16[2,8,32], index: 4, kind: output, shape index: {}]
  %s5 = sld [smem:[#allocation0]]
  $region57: #{transformer_forward.41} parent=0
    _
  %s7 = ssub.s32 1, %s5
  %s8 = scalar_select 0, %s7, %s5
  loop: start=0, step=1, limit=4
  $region2: #{transformer_forward.41} parent=0 // loop_pre_header
    _
  $region3: #{transformer_forward.41} parent=0 // loop_header
    %s10 = sphi 0, %s14
    %p11 = scmp.ge.s32.totalorder %s10, 4
    %s17 = sphi 0, %s36
    %s18 = sphi 0, %s32
    %s19 = sphi 0, %s28
    %s20 = sphi 0, %s17
    %s21 = sphi 0, %s18
    %s22 = sphi 0, %s19
    %s23 = sphi 0, %s20
    %s24 = sphi 0, %s21
    %s25 = sphi 0, %s22
    %s41 = sphi 0, %s43
    %s44 = sphi 0, %s41
    %s45 = sphi 0, %s44
    %s61 = sphi 0, %s45
    %s69 = sphi 0, %s71
    %s72 = sphi 0, %s69
    %s73 = sphi 0, %s72
    %s89 = sphi 0, %s73
    %s97 = sphi 0, %s99
    %s100 = sphi 0, %s97
    %s101 = sphi 0, %s100
    %s117 = sphi 0, %s101
    %s125 = sphi 0, %s127
    %s128 = sphi 0, %s125
    %s129 = sphi 0, %s128
    %s145 = sphi 0, %s129
    %s153 = sphi 0, %s155
    %s156 = sphi 0, %s153
    %s157 = sphi 0, %s156
    %s173 = sphi 0, %s157
  $region4: #{transformer_forward.41} parent=0 // loop_header_branch
    %13 = sbr.rel (%p11) target = $region8
  $region5: #{transformer_forward.41} parent=0 // loop_body
    %s15 = ssub.s32 %s10, 1
    %s16 = ssub.s32 %s10, 2
    %s26 = sadd.s32 1, %s19
    %p27 = scmp.ge.s32.totalorder %s26, 1
    %s28 = scalar_select %p27, 0, %s26
    %s29 = sadd.s32 1, %s18
    %s30 = scalar_select %p27, %s29, %s18
    %p31 = scmp.ge.s32.totalorder %s30, 1
    %s32 = scalar_select %p31, 0, %s30
    %s33 = sadd.s32 1, %s17
    %s34 = scalar_select %p31, %s33, %s17
    %p35 = scmp.ge.s32.totalorder %s34, 2
    %s36 = scalar_select %p35, 0, %s34
    %s37 = ssub.s32 %s17, %s36
    %s38 = ssub.s32 %s18, %s32
    %s39 = sor.u32 %s37, %s38
    %p40 = scmp.eq.s32.totalorder %s39, 0
    %s42 = sadd.s32 %s41, 1
    %s43 = scalar_select %p40, %s41, %s42
    %p46 = pneg %p40
    %p47 = scmp.eq.s32.totalorder %s10, 1
    %p48 = por %p46, %p47
    %p49 = scmp.ne.s32.totalorder %s41, %s44
    %p50 = scmp.eq.s32.totalorder %s10, 0
    %p51 = por %p49, %p50
    %p52 = scmp.ne.s32.totalorder %s41, %s44
    %p53 = scmp.eq.s32.totalorder %s15, 1
    %p54 = por %p52, %p53
    %p55 = scmp.ne.s32.totalorder %s44, %s45
    %p56 = scmp.eq.s32.totalorder %s15, 0
    %p57 = por %p55, %p56
    %p58 = scmp.ne.s32.totalorder %s44, %s45
    %p59 = scmp.eq.s32.totalorder %s16, 1
    %p60 = por %p58, %p59
    %p62 = scmp.ne.s32.totalorder %s45, %s61
    %p63 = scmp.eq.s32.totalorder %s16, 0
    %p64 = por %p62, %p63
    %s65 = ssub.s32 %s17, %s36
    %s66 = ssub.s32 %s19, %s28
    %s67 = sor.u32 %s65, %s66
    %p68 = scmp.eq.s32.totalorder %s67, 0
    %s70 = sadd.s32 %s69, 1
    %s71 = scalar_select %p68, %s69, %s70
    %p74 = pneg %p68
    %p75 = scmp.eq.s32.totalorder %s10, 1
    %p76 = por %p74, %p75
    %p77 = scmp.ne.s32.totalorder %s69, %s72
    %p78 = scmp.eq.s32.totalorder %s10, 0
    %p79 = por %p77, %p78
    %p80 = scmp.ne.s32.totalorder %s69, %s72
    %p81 = scmp.eq.s32.totalorder %s15, 1
    %p82 = por %p80, %p81
    %p83 = scmp.ne.s32.totalorder %s72, %s73
    %p84 = scmp.eq.s32.totalorder %s15, 0
    %p85 = por %p83, %p84
    %p86 = scmp.ne.s32.totalorder %s72, %s73
    %p87 = scmp.eq.s32.totalorder %s16, 1
    %p88 = por %p86, %p87
    %p90 = scmp.ne.s32.totalorder %s73, %s89
    %p91 = scmp.eq.s32.totalorder %s16, 0
    %p92 = por %p90, %p91
    %s93 = ssub.s32 %s17, %s36
    %s94 = ssub.s32 %s19, %s28
    %s95 = sor.u32 %s93, %s94
    %p96 = scmp.eq.s32.totalorder %s95, 0
    %s98 = sadd.s32 %s97, 1
    %s99 = scalar_select %p96, %s97, %s98
    %p102 = pneg %p96
    %p103 = scmp.eq.s32.totalorder %s10, 1
    %p104 = por %p102, %p103
    %p105 = scmp.ne.s32.totalorder %s97, %s100
    %p106 = scmp.eq.s32.totalorder %s10, 0
    %p107 = por %p105, %p106
    %p108 = scmp.ne.s32.totalorder %s97, %s100
    %p109 = scmp.eq.s32.totalorder %s15, 1
    %p110 = por %p108, %p109
    %p111 = scmp.ne.s32.totalorder %s100, %s101
    %p112 = scmp.eq.s32.totalorder %s15, 0
    %p113 = por %p111, %p112
    %p114 = scmp.ne.s32.totalorder %s100, %s101
    %p115 = scmp.eq.s32.totalorder %s16, 1
    %p116 = por %p114, %p115
    %p118 = scmp.ne.s32.totalorder %s101, %s117
    %p119 = scmp.eq.s32.totalorder %s16, 0
    %p120 = por %p118, %p119
    %s121 = ssub.s32 %s17, %s36
    %s122 = ssub.s32 %s18, %s32
    %s123 = sor.u32 %s121, %s122
    %p124 = scmp.eq.s32.totalorder %s123, 0
    %s126 = sadd.s32 %s125, 1
    %s127 = scalar_select %p124, %s125, %s126
    %p130 = pneg %p124
    %p131 = scmp.eq.s32.totalorder %s10, 1
    %p132 = por %p130, %p131
    %p133 = scmp.ne.s32.totalorder %s125, %s128
    %p134 = scmp.eq.s32.totalorder %s10, 0
    %p135 = por %p133, %p134
    %p136 = scmp.ne.s32.totalorder %s125, %s128
    %p137 = scmp.eq.s32.totalorder %s15, 1
    %p138 = por %p136, %p137
    %p139 = scmp.ne.s32.totalorder %s128, %s129
    %p140 = scmp.eq.s32.totalorder %s15, 0
    %p141 = por %p139, %p140
    %p142 = scmp.ne.s32.totalorder %s128, %s129
    %p143 = scmp.eq.s32.totalorder %s16, 1
    %p144 = por %p142, %p143
    %p146 = scmp.ne.s32.totalorder %s129, %s145
    %p147 = scmp.eq.s32.totalorder %s16, 0
    %p148 = por %p146, %p147
    %s149 = ssub.s32 %s17, %s36
    %s150 = ssub.s32 %s18, %s32
    %s151 = sor.u32 %s149, %s150
    %p152 = scmp.eq.s32.totalorder %s151, 0
    %s154 = sadd.s32 %s153, 1
    %s155 = scalar_select %p152, %s153, %s154
    %p158 = pneg %p152
    %p159 = scmp.eq.s32.totalorder %s10, 1
    %p160 = por %p158, %p159
    %p161 = scmp.ne.s32.totalorder %s153, %s156
    %p162 = scmp.eq.s32.totalorder %s10, 0
    %p163 = por %p161, %p162
    %p164 = scmp.ne.s32.totalorder %s153, %s156
    %p165 = scmp.eq.s32.totalorder %s15, 1
    %p166 = por %p164, %p165
    %p167 = scmp.ne.s32.totalorder %s156, %s157
    %p168 = scmp.eq.s32.totalorder %s15, 0
    %p169 = por %p167, %p168
    %p170 = scmp.ne.s32.totalorder %s156, %s157
    %p171 = scmp.eq.s32.totalorder %s16, 1
    %p172 = por %p170, %p171
    %p174 = scmp.ne.s32.totalorder %s157, %s173
    %p175 = scmp.eq.s32.totalorder %s16, 0
    %p176 = por %p174, %p175
    %p177 = scmp.le.s32.totalorder 1, %s10
    %p178 = scmp.lt.s32.totalorder %s10, 3
    %p179 = pnand %p177, %p178
    %p180 = pneg %p179
    // Predicated region
    $region9: #{transformer_forward.41} parent=5 // pred_check
      _
    $region10: #{transformer_forward.41} parent=5 // pred_check_branch
      %182 = sbr.rel (%p179) target = $region12
    $region11: #{transformer_forward.41} parent=5 // pred_region
      %s183 = ssub.s32 %s10, 1
    $region12: #{transformer_forward.41} parent=5 // pred_fallthru
      _
    %p184 = scmp.lt.s32.totalorder %s10, 2
    // Predicated region
    $region13: #{transformer_forward.41} parent=5 // pred_check
      %p185 = pneg %p184
    $region14: #{transformer_forward.41} parent=5 // pred_check_branch
      %187 = sbr.rel (%p185) target = $region16
    $region15: #{transformer_forward.41} parent=5 // pred_region
      // Predicated region
      $region17: #{transformer_forward.41} parent=15 // pred_check
        %p188 = pneg %p51
      $region18: #{transformer_forward.41} parent=15 // pred_check_branch
        %190 = sbr.rel (%p188) target = $region20
      $region19: #{transformer_forward.41} parent=15 // pred_region
        %p191 = scmp.lt.s32.totalorder %s17, 1
        %s192 = scalar_select %p191, %s17, 1
        %p193 = scmp.lt.s32.totalorder %s18, 0
        %s194 = scalar_select %p193, %s18, 0
        %s195 = sadd.s32 %s194, %s192
        %s196 = smul.addr %s195, 4
        %s197 = scalar_lea.vmem %s0, %s196
      $region20: #{transformer_forward.41} parent=15 // pred_fallthru
        _
      // Predicated region
      $region21: #{transformer_forward.41} parent=15 // pred_check
        %p198 = pneg %p79
      $region22: #{transformer_forward.41} parent=15 // pred_check_branch
        %200 = sbr.rel (%p198) target = $region24
      $region23: #{transformer_forward.41} parent=15 // pred_region
        %p201 = scmp.lt.s32.totalorder %s17, 1
        %s202 = scalar_select %p201, %s17, 1
        %p203 = scmp.lt.s32.totalorder %s19, 0
        %s204 = scalar_select %p203, %s19, 0
        %s205 = sadd.s32 %s204, %s202
        %s206 = smul.addr %s205, 4
        %s207 = scalar_lea.vmem %s1, %s206
      $region24: #{transformer_forward.41} parent=15 // pred_fallthru
        _
      // Predicated region
      $region25: #{transformer_forward.41} parent=15 // pred_check
        %p208 = pneg %p107
      $region26: #{transformer_forward.41} parent=15 // pred_check_branch
        %210 = sbr.rel (%p208) target = $region28
      $region27: #{transformer_forward.41} parent=15 // pred_region
        %p211 = scmp.lt.s32.totalorder %s17, 1
        %s212 = scalar_select %p211, %s17, 1
        %p213 = scmp.lt.s32.totalorder %s19, 0
        %s214 = scalar_select %p213, %s19, 0
        %s215 = sadd.s32 %s214, %s212
        %s216 = scalar_lea.vmem %s2, %s215
      $region28: #{transformer_forward.41} parent=15 // pred_fallthru
        _
      // Predicated region
      $region29: #{transformer_forward.41} parent=15 // pred_check
        %p217 = pneg %p135
      $region30: #{transformer_forward.41} parent=15 // pred_check_branch
        %219 = sbr.rel (%p217) target = $region32
      $region31: #{transformer_forward.41} parent=15 // pred_region
        %p220 = scmp.lt.s32.totalorder %s17, 1
        %s221 = scalar_select %p220, %s17, 1
        %p222 = scmp.lt.s32.totalorder %s18, 0
        %s223 = scalar_select %p222, %s18, 0
        %s224 = sadd.s32 %s223, %s221
        %s225 = smul.addr %s224, 8
        %s226 = scalar_lea.vmem %s3, %s225
      $region32: #{transformer_forward.41} parent=15 // pred_fallthru
        _
    $region16: #{transformer_forward.41} parent=5 // pred_fallthru
      _
    %p227 = scmp.le.s32.totalorder 1, %s10
    %p228 = scmp.lt.s32.totalorder %s10, 3
    %p229 = pnand %p227, %p228
    %p230 = pneg %p229
    // Predicated region
    $region33: #{transformer_forward.41} parent=5 // pred_check
      _
    $region34: #{transformer_forward.41} parent=5 // pred_check_branch
      %232 = sbr.rel (%p229) target = $region36
    $region35: #{transformer_forward.41} parent=5 // pred_region
      %s233 = ssub.s32 %s10, 1
      %p234 = scmp.lt.s32.totalorder %s20, 1
      %s235 = scalar_select %p234, %s20, 1
      %p236 = scmp.lt.s32.totalorder %s21, 0
      %s237 = scalar_select %p236, %s21, 0
      %s238 = sadd.s32 %s237, %s235
      %s239 = smul.addr %s238, 4
      %s240 = scalar_lea.vmem %s0, %s239
      %p241 = pneg %p57
      %p242 = pneg %p54
      %p243 = scmp.lt.s32.totalorder %s20, 1
      %s244 = scalar_select %p243, %s20, 1
      %p245 = scmp.lt.s32.totalorder %s22, 0
      %s246 = scalar_select %p245, %s22, 0
      %s247 = sadd.s32 %s246, %s244
      %s248 = smul.addr %s247, 4
      %s249 = scalar_lea.vmem %s1, %s248
      %p250 = pneg %p85
      %p251 = pneg %p82
      %p252 = scmp.lt.s32.totalorder %s20, 1
      %s253 = scalar_select %p252, %s20, 1
      %p254 = scmp.lt.s32.totalorder %s22, 0
      %s255 = scalar_select %p254, %s22, 0
      %s256 = sadd.s32 %s255, %s253
      %s257 = scalar_lea.vmem %s2, %s256
      %p258 = pneg %p113
      %p259 = pneg %p110
      %p260 = scmp.lt.s32.totalorder %s20, 1
      %s261 = scalar_select %p260, %s20, 1
      %p262 = scmp.lt.s32.totalorder %s21, 0
      %s263 = scalar_select %p262, %s21, 0
      %s264 = sadd.s32 %s263, %s261
      %s265 = smul.addr %s264, 8
      %s266 = scalar_lea.vmem %s3, %s265
      %p267 = pneg %p141
      %p268 = pneg %p138
      %p269 = pneg %p169
      %p270 = pneg %p166
      %p271 = scmp.lt.s32.totalorder %s20, 1
      %s272 = scalar_select %p271, %s20, 1
      %p273 = scmp.lt.s32.totalorder %s21, 0
      %s274 = scalar_select %p273, %s21, 0
      %s275 = sadd.s32 %s274, %s272
      %s276 = smul.addr %s275, 4
      %s277 = scalar_lea.vmem %s4, %s276
      %p278 = scmp.lt.s32.totalorder %s20, 1
      %s279 = scalar_select %p278, %s20, 1
      %p280 = scmp.lt.s32.totalorder %s21, 0
      %s281 = scalar_select %p280, %s21, 0
      %s282 = sadd.s32 %s281, %s279
      %s283 = smul.addr %s282, 4
      %s284 = scalar_lea.vmem %s0, %s283
      %p285 = scmp.lt.s32.totalorder %s20, 1
      %s286 = scalar_select %p285, %s20, 1
      %p287 = scmp.lt.s32.totalorder %s22, 0
      %s288 = scalar_select %p287, %s22, 0
      %s289 = sadd.s32 %s288, %s286
      %s290 = smul.addr %s289, 4
      %s291 = scalar_lea.vmem %s1, %s290
      %p292 = scmp.lt.s32.totalorder %s20, 1
      %s293 = scalar_select %p292, %s20, 1
      %p294 = scmp.lt.s32.totalorder %s22, 0
      %s295 = scalar_select %p294, %s22, 0
      %s296 = sadd.s32 %s295, %s293
      %s297 = scalar_lea.vmem %s2, %s296
      %p298 = scmp.lt.s32.totalorder %s20, 1
      %s299 = scalar_select %p298, %s20, 1
      %p300 = scmp.lt.s32.totalorder %s21, 0
      %s301 = scalar_select %p300, %s21, 0
      %s302 = sadd.s32 %s301, %s299
      %s303 = smul.addr %s302, 8
      %s304 = scalar_lea.vmem %s3, %s303
      %p305 = scmp.lt.s32.totalorder %s20, 1
      %s306 = scalar_select %p305, %s20, 1
      %p307 = scmp.lt.s32.totalorder %s21, 0
      %s308 = scalar_select %p307, %s21, 0
      %s309 = sadd.s32 %s308, %s306
      %s310 = smul.addr %s309, 4
      %s311 = scalar_lea.vmem %s4, %s310
      %p313 = scmp.eq.s32.totalorder %s22, 0
      // Predicated region
      $region37: #{transformer_forward.41} parent=35 // pred_check
        %p314 = pneg %p313
      $region38: #{transformer_forward.41} parent=35 // pred_check_branch
        %316 = sbr.rel (%p314) target = $region40
      $region39: #{transformer_forward.41} parent=35 // pred_region
        %vm317 = vcmask 7168
        %318 = vst.msk [vmem:[#allocation2] sm:$0xff] %vm317, -inf
        %319 = vst.msk [vmem:[#allocation2 + $0x8] sm:$0xff] %vm317, -inf
        %320 = vst.msk [vmem:[#allocation2 + $0x10] sm:$0xff] %vm317, -inf
        %321 = vst.msk [vmem:[#allocation2 + $0x18] sm:$0xff] %vm317, -inf
        %322 = vst.msk [vmem:[#allocation3] sm:$0xff] %vm317, 0.0
        %323 = vst.msk [vmem:[#allocation3 + $0x8] sm:$0xff] %vm317, 0.0
        %324 = vst.msk [vmem:[#allocation3 + $0x10] sm:$0xff] %vm317, 0.0
        %325 = vst.msk [vmem:[#allocation3 + $0x18] sm:$0xff] %vm317, 0.0
        %vm326 = vcmask 64512
        %327 = vst.msk [vmem:[#allocation4] sm:$0xff] %vm326, 0.0
        %328 = vst.msk [vmem:[#allocation4 + $0x8] sm:$0xff] %vm326, 0.0
        %329 = vst.msk [vmem:[#allocation4 + $0x10] sm:$0xff] %vm326, 0.0
        %330 = vst.msk [vmem:[#allocation4 + $0x18] sm:$0xff] %vm326, 0.0
        %v331 = vld [vmem:[%s284] sm:$0xf]
        %v332 = vunpack.c.l.bf16 %v331
        %v333 = vmul.f32 %v332, 0.35355338
        %v334 = vpack.c.bf16 %v333, %v333
        %vm335 = vcmask 257024
        %336 = vst.msk [vmem:[#allocation6] sm:$0xf] %vm335, %v334
      $region40: #{transformer_forward.41} parent=35 // pred_fallthru
        _
      %v337 = vld [vmem:[%s297] sm:$0x1]
      %vm338 = vcmp.ne.f32.partialorder %v337, 0.0
      %v339 = vld [vmem:[%s304] sm:$0xff]
      %vm340 = vcmp.ne.f32.partialorder %v339, 0.0
      %v341 = vsel %vm338, 1, 0
      %v342 = vlaneseq
      %v343 = vshrl.u32 %v342, 7
      %v344 = vsub.s32 0, %v343
      %v345 = vrot.slane %v341, %v344
      %vm346 = vcmp.eq.s32.totalorder %v345, 1
      %v347 = vsel %vm340, 1, 0
      %348 = vset.pattern.permute.xlu0 0
      %349 = vperm.xlu0 %348, %v347
      %v350 = vpop.permute.xlu0 %349
      %vm351 = vcmp.eq.s32.totalorder %v350, 1
      %vm352 = vmand %vm346, %vm351
      %s353 = smul.u32 %s21, 8
      %v354 = vlaneseq
      %v355 = vshrl.u32 %v354, 7
      %v356 = vstv %s353
      %v357 = vadd.s32 %v356, %v355
      %s358 = smul.u32 %s22, 8
      %v359 = vlaneseq
      %v360 = vand.u32 %v359, 127
      %v361 = vstv %s358
      %v362 = vadd.s32 %v361, %v360
      %vm363 = vcmp.le.s32.totalorder %v362, %v357
      %vm364 = vmand %vm352, %vm363
      %v365 = vld [vmem:[%s291] sm:$0xf]
      %v366 = vld [vmem:[#allocation6] sm:$0xf]
      %vm367 = vcmask 64512
      %v369 = vsel %vm367, %v366, 0
      %v372 = vsel %vm367, %v365, 0
      %374 = vmatprep.subr.bf16.mxu0 0
      %375 = vmatpush1.bf16.xpose.msra.mxu0 %v372
      %376 = vmatprep.subr.bf16.mxu0 0
      %377 = vmatpush1.bf16.xpose.msra.mxu0 0
      %378 = vmatprep.subr.bf16.mxu0 0
      %379 = vmatpush1.bf16.xpose.msra.mxu0 0
      %380 = vmatprep.subr.bf16.mxu0 0
      %381 = vmatpush1.bf16.xpose.msra.mxu0 0
      %382 = vmatprep.subr.bf16.mxu0 0
      %383 = vmatpush1.bf16.xpose.msra.mxu0 0
      %384 = vmatprep.subr.bf16.mxu0 0
      %385 = vmatpush1.bf16.xpose.msra.mxu0 0
      %386 = vmatprep.subr.bf16.mxu0 0
      %387 = vmatpush1.bf16.xpose.msra.mxu0 0
      %388 = vmatprep.subr.bf16.mxu0 0
      %389 = vmatpush1.bf16.xpose.msra.mxu0 0
      %390 = vmatprep.subr.bf16.mxu0 0
      %391 = vmatpush1.bf16.xpose.msra.mxu0 0
      %392 = vmatprep.subr.bf16.mxu0 0
      %393 = vmatpush1.bf16.xpose.msra.mxu0 0
      %394 = vmatprep.subr.bf16.mxu0 0
      %395 = vmatpush1.bf16.xpose.msra.mxu0 0
      %396 = vmatprep.subr.bf16.mxu0 0
      %397 = vmatpush1.bf16.xpose.msra.mxu0 0
      %398 = vmatprep.subr.bf16.mxu0 0
      %399 = vmatpush1.bf16.xpose.msra.mxu0 0
      %400 = vmatprep.subr.bf16.mxu0 0
      %401 = vmatpush1.bf16.xpose.msra.mxu0 0
      %402 = vmatprep.subr.bf16.mxu0 0
      %403 = vmatpush1.bf16.xpose.msra.mxu0 0
      %404 = vmatprep.subr.bf16.mxu0 0
      %405 = vmatpush1.bf16.xpose.msra.mxu0 0
      %406 = vmatprep.mubr.bf16.mxu0 0
      %407 = vmatmul.mubr.bf16.gmra.mrb[0].mxu0 %v369
      %v408 = vpop.f32.mrb[0].mxu0
      %v409 = vadd.f32 0.0, %v408
      %v410 = vpop.f32.mrb[0].mxu0
      %v411 = vpop.f32.mrb[0].mxu0
      %v412 = vpop.f32.mrb[0].mxu0
      %413 = vdwg.mxu0
      %v414 = vsel %vm364, %v409, -10000.0
      %v415 = vld [vmem:[#allocation2] sm:$0xff]
      %v416 = vsel %vm367, %v414, -inf
      %417 = vmax.xlane.f32.xlu0 %v416
      %v418 = vpop.xlane.xlu0 %417
      %v419 = vmax.f32 %v415, %v418
      %v420 = vsub.f32 %v415, %v419
      %v421 = vmul.f32 %v420, 1.442695
      %v422 = vpow.pop %v421
      %424 = vset.pattern.permute.xlu0 0
      %425 = vperm.xlu0 %424, %v419
      %v426 = vpop.permute.xlu0 %425
      %v428 = vsub.f32 %v414, %v426
      %v429 = vmul.f32 %v428, 1.442695
      %v430 = vpow.pop %v429
      %v431 = vld [vmem:[#allocation3] sm:$0xff]
      %v432 = vmul.f32 %v422, %v431
      %v433 = vsel %vm367, %v430, 0.0
      %434 = vadd.xlane.f32.xlu0 %v433
      %v435 = vpop.xlane.xlu0 %434
      %v436 = vadd.f32 %v432, %v435
      %vm437 = vcmask 7168
      %438 = vst.msk [vmem:[#allocation3] sm:$0xff] %vm437, %v436
      %v439 = vld [vmem:[#allocation4] sm:$0xff]
      %441 = vset.pattern.permute.xlu0 0
      %442 = vperm.xlu0 %441, %v422
      %v443 = vpop.permute.xlu0 %442
      %v445 = vmul.f32 %v443, %v439
      %v446 = vpack.c.bf16 %v430, %v430
      %v448 = vunpack.c.l.b16 %v365
      %v449 = vpack.c.b16 %v448, %v448
      %450 = vrot.lane.b32.xlu0 %v449, 96
      %v451 = vpop.permute.xlu0 %450
      %v453 = vsel %vm367, %v446, 0
      %vm455 = vcmask 1043456
      %v457 = vsel %vm455, %v451, 0
      %459 = vmatprep.subr.bf16.mxu0 0
      %460 = vmatpush1.bf16.msra.mxu0 %v457
      %461 = vmatprep.subr.bf16.mxu0 0
      %462 = vmatpush1.bf16.msra.mxu0 0
      %463 = vmatprep.subr.bf16.mxu0 0
      %464 = vmatpush1.bf16.msra.mxu0 0
      %465 = vmatprep.subr.bf16.mxu0 0
      %466 = vmatpush1.bf16.msra.mxu0 0
      %467 = vmatprep.subr.bf16.mxu0 0
      %468 = vmatpush1.bf16.msra.mxu0 0
      %469 = vmatprep.subr.bf16.mxu0 0
      %470 = vmatpush1.bf16.msra.mxu0 0
      %471 = vmatprep.subr.bf16.mxu0 0
      %472 = vmatpush1.bf16.msra.mxu0 0
      %473 = vmatprep.subr.bf16.mxu0 0
      %474 = vmatpush1.bf16.msra.mxu0 0
      %475 = vmatprep.subr.bf16.mxu0 0
      %476 = vmatpush1.bf16.msra.mxu0 0
      %477 = vmatprep.subr.bf16.mxu0 0
      %478 = vmatpush1.bf16.msra.mxu0 0
      %479 = vmatprep.subr.bf16.mxu0 0
      %480 = vmatpush1.bf16.msra.mxu0 0
      %481 = vmatprep.subr.bf16.mxu0 0
      %482 = vmatpush1.bf16.msra.mxu0 0
      %483 = vmatprep.subr.bf16.mxu0 0
      %484 = vmatpush1.bf16.msra.mxu0 0
      %485 = vmatprep.subr.bf16.mxu0 0
      %486 = vmatpush1.bf16.msra.mxu0 0
      %487 = vmatprep.subr.bf16.mxu0 0
      %488 = vmatpush1.bf16.msra.mxu0 0
      %489 = vmatprep.subr.bf16.mxu0 0
      %490 = vmatpush1.bf16.msra.mxu0 0
      %491 = vmatprep.mubr.bf16.mxu0 0
      %492 = vmatmul.mubr.bf16.gmra.mrb[0].mxu0 %v453
      %v493 = vpop.f32.mrb[0].mxu0
      %v494 = vadd.f32 0.0, %v493
      %v495 = vpop.f32.mrb[0].mxu0
      %v496 = vpop.f32.mrb[0].mxu0
      %v497 = vpop.f32.mrb[0].mxu0
      %498 = vdwg.mxu0
      %v499 = vadd.f32 %v445, %v494
      %500 = vst.msk [vmem:[#allocation4] sm:$0xff] %vm367, %v499
      %501 = vst.msk [vmem:[#allocation2] sm:$0xff] %vm437, %v419
      %v502 = vld [vmem:[#allocation6] sm:$0xf]
      %v504 = vunpack.c.l.b16 %v502
      %v505 = vpack.c.b16 %v504, %v504
      %506 = vrot.lane.b32.xlu0 %v505, 120
      %v507 = vpop.permute.xlu0 %506
      %508 = vrot.lane.b32.xlu0 %v449, 120
      %v509 = vpop.permute.xlu0 %508
      %v511 = vsel %vm367, %v507, 0
      %v514 = vsel %vm367, %v509, 0
      %516 = vmatprep.subr.bf16.mxu0 0
      %517 = vmatpush1.bf16.xpose.msra.mxu0 %v514
      %518 = vmatprep.subr.bf16.mxu0 0
      %519 = vmatpush1.bf16.xpose.msra.mxu0 0
      %520 = vmatprep.subr.bf16.mxu0 0
      %521 = vmatpush1.bf16.xpose.msra.mxu0 0
      %522 = vmatprep.subr.bf16.mxu0 0
      %523 = vmatpush1.bf16.xpose.msra.mxu0 0
      %524 = vmatprep.subr.bf16.mxu0 0
      %525 = vmatpush1.bf16.xpose.msra.mxu0 0
      %526 = vmatprep.subr.bf16.mxu0 0
      %527 = vmatpush1.bf16.xpose.msra.mxu0 0
      %528 = vmatprep.subr.bf16.mxu0 0
      %529 = vmatpush1.bf16.xpose.msra.mxu0 0
      %530 = vmatprep.subr.bf16.mxu0 0
      %531 = vmatpush1.bf16.xpose.msra.mxu0 0
      %532 = vmatprep.subr.bf16.mxu0 0
      %533 = vmatpush1.bf16.xpose.msra.mxu0 0
      %534 = vmatprep.subr.bf16.mxu0 0
      %535 = vmatpush1.bf16.xpose.msra.mxu0 0
      %536 = vmatprep.subr.bf16.mxu0 0
      %537 = vmatpush1.bf16.xpose.msra.mxu0 0
      %538 = vmatprep.subr.bf16.mxu0 0
      %539 = vmatpush1.bf16.xpose.msra.mxu0 0
      %540 = vmatprep.subr.bf16.mxu0 0
      %541 = vmatpush1.bf16.xpose.msra.mxu0 0
      %542 = vmatprep.subr.bf16.mxu0 0
      %543 = vmatpush1.bf16.xpose.msra.mxu0 0
      %544 = vmatprep.subr.bf16.mxu0 0
      %545 = vmatpush1.bf16.xpose.msra.mxu0 0
      %546 = vmatprep.subr.bf16.mxu0 0
      %547 = vmatpush1.bf16.xpose.msra.mxu0 0
      %548 = vmatprep.mubr.bf16.mxu0 0
      %549 = vmatmul.mubr.bf16.gmra.mrb[0].mxu0 %v511
      %v550 = vpop.f32.mrb[0].mxu0
      %v551 = vadd.f32 0.0, %v550
      %v552 = vpop.f32.mrb[0].mxu0
      %v553 = vpop.f32.mrb[0].mxu0
      %v554 = vpop.f32.mrb[0].mxu0
      %555 = vdwg.mxu0
      %v556 = vsel %vm364, %v551, -10000.0
      %s557 = scalar_lea.vmem [#allocation2], 8
      %v558 = vld [vmem:[%s557] sm:$0xff]
      %v559 = vsel %vm367, %v556, -inf
      %560 = vmax.xlane.f32.xlu0 %v559
      %v561 = vpop.xlane.xlu0 %560
      %v562 = vmax.f32 %v558, %v561
      %v563 = vsub.f32 %v558, %v562
      %v564 = vmul.f32 %v563, 1.442695
      %v565 = vpow.pop %v564
      %567 = vset.pattern.permute.xlu0 0
      %568 = vperm.xlu0 %567, %v562
      %v569 = vpop.permute.xlu0 %568
      %v571 = vsub.f32 %v556, %v569
      %v572 = vmul.f32 %v571, 1.442695
      %v573 = vpow.pop %v572
      %s574 = scalar_lea.vmem [#allocation3], 8
      %v575 = vld [vmem:[%s574] sm:$0xff]
      %v576 = vmul.f32 %v565, %v575
      %v577 = vsel %vm367, %v573, 0.0
      %578 = vadd.xlane.f32.xlu0 %v577
      %v579 = vpop.xlane.xlu0 %578
      %v580 = vadd.f32 %v576, %v579
      %581 = vst.msk [vmem:[%s574] sm:$0xff] %vm437, %v580
      %s582 = scalar_lea.vmem [#allocation4], 8
      %v583 = vld [vmem:[%s582] sm:$0xff]
      %585 = vset.pattern.permute.xlu0 0
      %586 = vperm.xlu0 %585, %v565
      %v587 = vpop.permute.xlu0 %586
      %v589 = vmul.f32 %v587, %v583
      %v590 = vpack.c.bf16 %v573, %v573
      %591 = vrot.lane.b32.xlu0 %v449, 88
      %v592 = vpop.permute.xlu0 %591
      %v594 = vsel %vm367, %v590, 0
      %v597 = vsel %vm455, %v592, 0
      %599 = vmatprep.subr.bf16.mxu0 0
      %600 = vmatpush1.bf16.msra.mxu0 %v597
      %601 = vmatprep.subr.bf16.mxu0 0
      %602 = vmatpush1.bf16.msra.mxu0 0
      %603 = vmatprep.subr.bf16.mxu0 0
      %604 = vmatpush1.bf16.msra.mxu0 0
      %605 = vmatprep.subr.bf16.mxu0 0
      %606 = vmatpush1.bf16.msra.mxu0 0
      %607 = vmatprep.subr.bf16.mxu0 0
      %608 = vmatpush1.bf16.msra.mxu0 0
      %609 = vmatprep.subr.bf16.mxu0 0
      %610 = vmatpush1.bf16.msra.mxu0 0
      %611 = vmatprep.subr.bf16.mxu0 0
      %612 = vmatpush1.bf16.msra.mxu0 0
      %613 = vmatprep.subr.bf16.mxu0 0
      %614 = vmatpush1.bf16.msra.mxu0 0
      %615 = vmatprep.subr.bf16.mxu0 0
      %616 = vmatpush1.bf16.msra.mxu0 0
      %617 = vmatprep.subr.bf16.mxu0 0
      %618 = vmatpush1.bf16.msra.mxu0 0
      %619 = vmatprep.subr.bf16.mxu0 0
      %620 = vmatpush1.bf16.msra.mxu0 0
      %621 = vmatprep.subr.bf16.mxu0 0
      %622 = vmatpush1.bf16.msra.mxu0 0
      %623 = vmatprep.subr.bf16.mxu0 0
      %624 = vmatpush1.bf16.msra.mxu0 0
      %625 = vmatprep.subr.bf16.mxu0 0
      %626 = vmatpush1.bf16.msra.mxu0 0
      %627 = vmatprep.subr.bf16.mxu0 0
      %628 = vmatpush1.bf16.msra.mxu0 0
      %629 = vmatprep.subr.bf16.mxu0 0
      %630 = vmatpush1.bf16.msra.mxu0 0
      %631 = vmatprep.mubr.bf16.mxu0 0
      %632 = vmatmul.mubr.bf16.gmra.mrb[0].mxu0 %v594
      %v633 = vpop.f32.mrb[0].mxu0
      %v634 = vadd.f32 0.0, %v633
      %v635 = vpop.f32.mrb[0].mxu0
      %v636 = vpop.f32.mrb[0].mxu0
      %v637 = vpop.f32.mrb[0].mxu0
      %638 = vdwg.mxu0
      %v639 = vadd.f32 %v589, %v634
      %640 = vst.msk [vmem:[%s582] sm:$0xff] %vm367, %v639
      %641 = vst.msk [vmem:[%s557] sm:$0xff] %vm437, %v562
      %v642 = vld [vmem:[#allocation6] sm:$0xf]
      %v644 = vunpack.c.l.b16 %v642
      %v645 = vpack.c.b16 %v644, %v644
      %646 = vrot.lane.b32.xlu0 %v645, 112
      %v647 = vpop.permute.xlu0 %646
      %648 = vrot.lane.b32.xlu0 %v449, 112
      %v649 = vpop.permute.xlu0 %648
      %v651 = vsel %vm367, %v647, 0
      %v654 = vsel %vm367, %v649, 0
      %656 = vmatprep.subr.bf16.mxu0 0
      %657 = vmatpush1.bf16.xpose.msra.mxu0 %v654
      %658 = vmatprep.subr.bf16.mxu0 0
      %659 = vmatpush1.bf16.xpose.msra.mxu0 0
      %660 = vmatprep.subr.bf16.mxu0 0
      %661 = vmatpush1.bf16.xpose.msra.mxu0 0
      %662 = vmatprep.subr.bf16.mxu0 0
      %663 = vmatpush1.bf16.xpose.msra.mxu0 0
      %664 = vmatprep.subr.bf16.mxu0 0
      %665 = vmatpush1.bf16.xpose.msra.mxu0 0
      %666 = vmatprep.subr.bf16.mxu0 0
      %667 = vmatpush1.bf16.xpose.msra.mxu0 0
      %668 = vmatprep.subr.bf16.mxu0 0
      %669 = vmatpush1.bf16.xpose.msra.mxu0 0
      %670 = vmatprep.subr.bf16.mxu0 0
      %671 = vmatpush1.bf16.xpose.msra.mxu0 0
      %672 = vmatprep.subr.bf16.mxu0 0
      %673 = vmatpush1.bf16.xpose.msra.mxu0 0
      %674 = vmatprep.subr.bf16.mxu0 0
      %675 = vmatpush1.bf16.xpose.msra.mxu0 0
      %676 = vmatprep.subr.bf16.mxu0 0
      %677 = vmatpush1.bf16.xpose.msra.mxu0 0
      %678 = vmatprep.subr.bf16.mxu0 0
      %679 = vmatpush1.bf16.xpose.msra.mxu0 0
      %680 = vmatprep.subr.bf16.mxu0 0
      %681 = vmatpush1.bf16.xpose.msra.mxu0 0
      %682 = vmatprep.subr.bf16.mxu0 0
      %683 = vmatpush1.bf16.xpose.msra.mxu0 0
      %684 = vmatprep.subr.bf16.mxu0 0
      %685 = vmatpush1.bf16.xpose.msra.mxu0 0
      %686 = vmatprep.subr.bf16.mxu0 0
      %687 = vmatpush1.bf16.xpose.msra.mxu0 0
      %688 = vmatprep.mubr.bf16.mxu0 0
      %689 = vmatmul.mubr.bf16.gmra.mrb[0].mxu0 %v651
      %v690 = vpop.f32.mrb[0].mxu0
      %v691 = vadd.f32 0.0, %v690
      %v692 = vpop.f32.mrb[0].mxu0
      %v693 = vpop.f32.mrb[0].mxu0
      %v694 = vpop.f32.mrb[0].mxu0
      %695 = vdwg.mxu0
      %v696 = vsel %vm364, %v691, -10000.0
      %s697 = scalar_lea.vmem [#allocation2], 16
      %v698 = vld [vmem:[%s697] sm:$0xff]
      %v699 = vsel %vm367, %v696, -inf
      %700 = vmax.xlane.f32.xlu0 %v699
      %v701 = vpop.xlane.xlu0 %700
      %v702 = vmax.f32 %v698, %v701
      %v703 = vsub.f32 %v698, %v702
      %v704 = vmul.f32 %v703, 1.442695
      %v705 = vpow.pop %v704
      %707 = vset.pattern.permute.xlu0 0
      %708 = vperm.xlu0 %707, %v702
      %v709 = vpop.permute.xlu0 %708
      %v711 = vsub.f32 %v696, %v709
      %v712 = vmul.f32 %v711, 1.442695
      %v713 = vpow.pop %v712
      %s714 = scalar_lea.vmem [#allocation3], 16
      %v715 = vld [vmem:[%s714] sm:$0xff]
      %v716 = vmul.f32 %v705, %v715
      %v717 = vsel %vm367, %v713, 0.0
      %718 = vadd.xlane.f32.xlu0 %v717
      %v719 = vpop.xlane.xlu0 %718
      %v720 = vadd.f32 %v716, %v719
      %721 = vst.msk [vmem:[%s714] sm:$0xff] %vm437, %v720
      %s722 = scalar_lea.vmem [#allocation4], 16
      %v723 = vld [vmem:[%s722] sm:$0xff]
      %725 = vset.pattern.permute.xlu0 0
      %726 = vperm.xlu0 %725, %v705
      %v727 = vpop.permute.xlu0 %726
      %v729 = vmul.f32 %v727, %v723
      %v730 = vpack.c.bf16 %v713, %v713
      %731 = vrot.lane.b32.xlu0 %v449, 80
      %v732 = vpop.permute.xlu0 %731
      %v734 = vsel %vm367, %v730, 0
      %v737 = vsel %vm455, %v732, 0
      %739 = vmatprep.subr.bf16.mxu0 0
      %740 = vmatpush1.bf16.msra.mxu0 %v737
      %741 = vmatprep.subr.bf16.mxu0 0
      %742 = vmatpush1.bf16.msra.mxu0 0
      %743 = vmatprep.subr.bf16.mxu0 0
      %744 = vmatpush1.bf16.msra.mxu0 0
      %745 = vmatprep.subr.bf16.mxu0 0
      %746 = vmatpush1.bf16.msra.mxu0 0
      %747 = vmatprep.subr.bf16.mxu0 0
      %748 = vmatpush1.bf16.msra.mxu0 0
      %749 = vmatprep.subr.bf16.mxu0 0
      %750 = vmatpush1.bf16.msra.mxu0 0
      %751 = vmatprep.subr.bf16.mxu0 0
      %752 = vmatpush1.bf16.msra.mxu0 0
      %753 = vmatprep.subr.bf16.mxu0 0
      %754 = vmatpush1.bf16.msra.mxu0 0
      %755 = vmatprep.subr.bf16.mxu0 0
      %756 = vmatpush1.bf16.msra.mxu0 0
      %757 = vmatprep.subr.bf16.mxu0 0
      %758 = vmatpush1.bf16.msra.mxu0 0
      %759 = vmatprep.subr.bf16.mxu0 0
      %760 = vmatpush1.bf16.msra.mxu0 0
      %761 = vmatprep.subr.bf16.mxu0 0
      %762 = vmatpush1.bf16.msra.mxu0 0
      %763 = vmatprep.subr.bf16.mxu0 0
      %764 = vmatpush1.bf16.msra.mxu0 0
      %765 = vmatprep.subr.bf16.mxu0 0
      %766 = vmatpush1.bf16.msra.mxu0 0
      %767 = vmatprep.subr.bf16.mxu0 0
      %768 = vmatpush1.bf16.msra.mxu0 0
      %769 = vmatprep.subr.bf16.mxu0 0
      %770 = vmatpush1.bf16.msra.mxu0 0
      %771 = vmatprep.mubr.bf16.mxu0 0
      %772 = vmatmul.mubr.bf16.gmra.mrb[0].mxu0 %v734
      %v773 = vpop.f32.mrb[0].mxu0
      %v774 = vadd.f32 0.0, %v773
      %v775 = vpop.f32.mrb[0].mxu0
      %v776 = vpop.f32.mrb[0].mxu0
      %v777 = vpop.f32.mrb[0].mxu0
      %778 = vdwg.mxu0
      %v779 = vadd.f32 %v729, %v774
      %780 = vst.msk [vmem:[%s722] sm:$0xff] %vm367, %v779
      %781 = vst.msk [vmem:[%s697] sm:$0xff] %vm437, %v702
      %v782 = vld [vmem:[#allocation6] sm:$0xf]
      %v784 = vunpack.c.l.b16 %v782
      %v785 = vpack.c.b16 %v784, %v784
      %786 = vrot.lane.b32.xlu0 %v785, 104
      %v787 = vpop.permute.xlu0 %786
      %788 = vrot.lane.b32.xlu0 %v449, 104
      %v789 = vpop.permute.xlu0 %788
      %v791 = vsel %vm367, %v787, 0
      %v794 = vsel %vm367, %v789, 0
      %796 = vmatprep.subr.bf16.mxu0 0
      %797 = vmatpush1.bf16.xpose.msra.mxu0 %v794
      %798 = vmatprep.subr.bf16.mxu0 0
      %799 = vmatpush1.bf16.xpose.msra.mxu0 0
      %800 = vmatprep.subr.bf16.mxu0 0
      %801 = vmatpush1.bf16.xpose.msra.mxu0 0
      %802 = vmatprep.subr.bf16.mxu0 0
      %803 = vmatpush1.bf16.xpose.msra.mxu0 0
      %804 = vmatprep.subr.bf16.mxu0 0
      %805 = vmatpush1.bf16.xpose.msra.mxu0 0
      %806 = vmatprep.subr.bf16.mxu0 0
      %807 = vmatpush1.bf16.xpose.msra.mxu0 0
      %808 = vmatprep.subr.bf16.mxu0 0
      %809 = vmatpush1.bf16.xpose.msra.mxu0 0
      %810 = vmatprep.subr.bf16.mxu0 0
      %811 = vmatpush1.bf16.xpose.msra.mxu0 0
      %812 = vmatprep.subr.bf16.mxu0 0
      %813 = vmatpush1.bf16.xpose.msra.mxu0 0
      %814 = vmatprep.subr.bf16.mxu0 0
      %815 = vmatpush1.bf16.xpose.msra.mxu0 0
      %816 = vmatprep.subr.bf16.mxu0 0
      %817 = vmatpush1.bf16.xpose.msra.mxu0 0
      %818 = vmatprep.subr.bf16.mxu0 0
      %819 = vmatpush1.bf16.xpose.msra.mxu0 0
      %820 = vmatprep.subr.bf16.mxu0 0
      %821 = vmatpush1.bf16.xpose.msra.mxu0 0
      %822 = vmatprep.subr.bf16.mxu0 0
      %823 = vmatpush1.bf16.xpose.msra.mxu0 0
      %824 = vmatprep.subr.bf16.mxu0 0
      %825 = vmatpush1.bf16.xpose.msra.mxu0 0
      %826 = vmatprep.subr.bf16.mxu0 0
      %827 = vmatpush1.bf16.xpose.msra.mxu0 0
      %828 = vmatprep.mubr.bf16.mxu0 0
      %829 = vmatmul.mubr.bf16.gmra.mrb[0].mxu0 %v791
      %v830 = vpop.f32.mrb[0].mxu0
      %v831 = vadd.f32 0.0, %v830
      %v832 = vpop.f32.mrb[0].mxu0
      %v833 = vpop.f32.mrb[0].mxu0
      %v834 = vpop.f32.mrb[0].mxu0
      %835 = vdwg.mxu0
      %v836 = vsel %vm364, %v831, -10000.0
      %s837 = scalar_lea.vmem [#allocation2], 24
      %v838 = vld [vmem:[%s837] sm:$0xff]
      %v839 = vsel %vm367, %v836, -inf
      %840 = vmax.xlane.f32.xlu0 %v839
      %v841 = vpop.xlane.xlu0 %840
      %v842 = vmax.f32 %v838, %v841
      %v843 = vsub.f32 %v838, %v842
      %v844 = vmul.f32 %v843, 1.442695
      %v845 = vpow.pop %v844
      %847 = vset.pattern.permute.xlu0 0
      %848 = vperm.xlu0 %847, %v842
      %v849 = vpop.permute.xlu0 %848
      %v851 = vsub.f32 %v836, %v849
      %v852 = vmul.f32 %v851, 1.442695
      %v853 = vpow.pop %v852
      %s854 = scalar_lea.vmem [#allocation3], 24
      %v855 = vld [vmem:[%s854] sm:$0xff]
      %v856 = vmul.f32 %v845, %v855
      %v857 = vsel %vm367, %v853, 0.0
      %858 = vadd.xlane.f32.xlu0 %v857
      %v859 = vpop.xlane.xlu0 %858
      %v860 = vadd.f32 %v856, %v859
      %861 = vst.msk [vmem:[%s854] sm:$0xff] %vm437, %v860
      %s862 = scalar_lea.vmem [#allocation4], 24
      %v863 = vld [vmem:[%s862] sm:$0xff]
      %865 = vset.pattern.permute.xlu0 0
      %866 = vperm.xlu0 %865, %v845
      %v867 = vpop.permute.xlu0 %866
      %v869 = vmul.f32 %v867, %v863
      %v870 = vpack.c.bf16 %v853, %v853
      %871 = vrot.lane.b32.xlu0 %v449, 72
      %v872 = vpop.permute.xlu0 %871
      %v874 = vsel %vm367, %v870, 0
      %v877 = vsel %vm455, %v872, 0
      %879 = vmatprep.subr.bf16.mxu0 0
      %880 = vmatpush1.bf16.msra.mxu0 %v877
      %881 = vmatprep.subr.bf16.mxu0 0
      %882 = vmatpush1.bf16.msra.mxu0 0
      %883 = vmatprep.subr.bf16.mxu0 0
      %884 = vmatpush1.bf16.msra.mxu0 0
      %885 = vmatprep.subr.bf16.mxu0 0
      %886 = vmatpush1.bf16.msra.mxu0 0
      %887 = vmatprep.subr.bf16.mxu0 0
      %888 = vmatpush1.bf16.msra.mxu0 0
      %889 = vmatprep.subr.bf16.mxu0 0
      %890 = vmatpush1.bf16.msra.mxu0 0
      %891 = vmatprep.subr.bf16.mxu0 0
      %892 = vmatpush1.bf16.msra.mxu0 0
      %893 = vmatprep.subr.bf16.mxu0 0
      %894 = vmatpush1.bf16.msra.mxu0 0
      %895 = vmatprep.subr.bf16.mxu0 0
      %896 = vmatpush1.bf16.msra.mxu0 0
      %897 = vmatprep.subr.bf16.mxu0 0
      %898 = vmatpush1.bf16.msra.mxu0 0
      %899 = vmatprep.subr.bf16.mxu0 0
      %900 = vmatpush1.bf16.msra.mxu0 0
      %901 = vmatprep.subr.bf16.mxu0 0
      %902 = vmatpush1.bf16.msra.mxu0 0
      %903 = vmatprep.subr.bf16.mxu0 0
      %904 = vmatpush1.bf16.msra.mxu0 0
      %905 = vmatprep.subr.bf16.mxu0 0
      %906 = vmatpush1.bf16.msra.mxu0 0
      %907 = vmatprep.subr.bf16.mxu0 0
      %908 = vmatpush1.bf16.msra.mxu0 0
      %909 = vmatprep.subr.bf16.mxu0 0
      %910 = vmatpush1.bf16.msra.mxu0 0
      %911 = vmatprep.mubr.bf16.mxu0 0
      %912 = vmatmul.mubr.bf16.gmra.mrb[0].mxu0 %v874
      %v913 = vpop.f32.mrb[0].mxu0
      %v914 = vadd.f32 0.0, %v913
      %v915 = vpop.f32.mrb[0].mxu0
      %v916 = vpop.f32.mrb[0].mxu0
      %v917 = vpop.f32.mrb[0].mxu0
      %918 = vdwg.mxu0
      %v919 = vadd.f32 %v869, %v914
      %920 = vst.msk [vmem:[%s862] sm:$0xff] %vm367, %v919
      %921 = vst.msk [vmem:[%s837] sm:$0xff] %vm437, %v842
      // Predicated region
      $region41: #{transformer_forward.41} parent=35 // pred_check
        %p922 = pneg %p313
      $region42: #{transformer_forward.41} parent=35 // pred_check_branch
        %924 = sbr.rel (%p922) target = $region44
      $region43: #{transformer_forward.41} parent=35 // pred_region
        %v925 = vld [vmem:[#allocation3] sm:$0xff]
        %v926 = vrcp.pop %v925
        %v927 = vld [vmem:[#allocation4] sm:$0xff]
        %929 = vset.pattern.permute.xlu0 0
        %930 = vperm.xlu0 %929, %v926
        %v931 = vpop.permute.xlu0 %930
        %v933 = vmul.f32 %v927, %v931
        %934 = vst.msk [vmem:[#allocation5] sm:$0xff] %vm367, %v933
        %v935 = vld [vmem:[%s574] sm:$0xff]
        %v936 = vrcp.pop %v935
        %v937 = vld [vmem:[%s582] sm:$0xff]
        %939 = vset.pattern.permute.xlu0 0
        %940 = vperm.xlu0 %939, %v936
        %v941 = vpop.permute.xlu0 %940
        %v943 = vmul.f32 %v937, %v941
        %945 = vrot.lane.b32.xlu0 %v943, 8
        %v946 = vpop.permute.xlu0 %945
        %vm948 = vcmask 130112
        %949 = vst.msk [vmem:[#allocation5] sm:$0xff] %vm948, %v946
        %v950 = vld [vmem:[%s714] sm:$0xff]
        %v951 = vrcp.pop %v950
        %v952 = vld [vmem:[%s722] sm:$0xff]
        %954 = vset.pattern.permute.xlu0 0
        %955 = vperm.xlu0 %954, %v951
        %v956 = vpop.permute.xlu0 %955
        %v958 = vmul.f32 %v952, %v956
        %960 = vrot.lane.b32.xlu0 %v958, 16
        %v961 = vpop.permute.xlu0 %960
        %vm963 = vcmask 195712
        %964 = vst.msk [vmem:[#allocation5] sm:$0xff] %vm963, %v961
        %v965 = vld [vmem:[%s854] sm:$0xff]
        %v966 = vrcp.pop %v965
        %v967 = vld [vmem:[%s862] sm:$0xff]
        %969 = vset.pattern.permute.xlu0 0
        %970 = vperm.xlu0 %969, %v966
        %v971 = vpop.permute.xlu0 %970
        %v973 = vmul.f32 %v967, %v971
        %975 = vrot.lane.b32.xlu0 %v973, 24
        %v976 = vpop.permute.xlu0 %975
        %vm978 = vcmask 261312
        %979 = vst.msk [vmem:[#allocation5] sm:$0xff] %vm978, %v976
        %v980 = vld [vmem:[#allocation5] sm:$0xff]
        %v981 = vpack.c.bf16 %v980, %v980
        %vm982 = vcmask 257024
        %983 = vst.msk [vmem:[%s311] sm:$0xf] %vm982, %v981
      $region44: #{transformer_forward.41} parent=35 // pred_fallthru
        _
      %p984 = scmp.lt.s32.totalorder %s20, 1
      %s985 = scalar_select %p984, %s20, 1
      %p986 = scmp.lt.s32.totalorder %s21, 0
      %s987 = scalar_select %p986, %s21, 0
      %s988 = sadd.s32 %s987, %s985
      %s989 = smul.addr %s988, 4
      %s990 = scalar_lea.vmem %s4, %s989
      // Predicated region
      $region45: #{transformer_forward.41} parent=35 // pred_check
        %p991 = pneg %p166
      $region46: #{transformer_forward.41} parent=35 // pred_check_branch
        %993 = sbr.rel (%p991) target = $region48
      $region47: #{transformer_forward.41} parent=35 // pred_region
        _
      $region48: #{transformer_forward.41} parent=35 // pred_fallthru
        _
    $region36: #{transformer_forward.41} parent=5 // pred_fallthru
      _
    %p994 = scmp.le.s32.totalorder 2, %s10
    // Predicated region
    $region49: #{transformer_forward.41} parent=5 // pred_check
      %p995 = pneg %p994
    $region50: #{transformer_forward.41} parent=5 // pred_check_branch
      %997 = sbr.rel (%p995) target = $region52
    $region51: #{transformer_forward.41} parent=5 // pred_region
      %s998 = ssub.s32 %s10, 2
      // Predicated region
      $region53: #{transformer_forward.41} parent=51 // pred_check
        %p999 = pneg %p172
      $region54: #{transformer_forward.41} parent=51 // pred_check_branch
        %1001 = sbr.rel (%p999) target = $region56
      $region55: #{transformer_forward.41} parent=51 // pred_region
        %p1002 = scmp.lt.s32.totalorder %s23, 1
        %s1003 = scalar_select %p1002, %s23, 1
        %p1004 = scmp.lt.s32.totalorder %s24, 0
        %s1005 = scalar_select %p1004, %s24, 0
        %s1006 = sadd.s32 %s1005, %s1003
        %s1007 = smul.addr %s1006, 4
        %s1008 = scalar_lea.vmem %s4, %s1007
      $region56: #{transformer_forward.41} parent=51 // pred_fallthru
        _
    $region52: #{transformer_forward.41} parent=5 // pred_fallthru
      _
  $region6: #{transformer_forward.41} parent=0 // loop_footer
    %s14 = sadd.s32 1, %s10
  $region7: #{transformer_forward.41} parent=0 // loop_footer_branch
    %9 = sbr.rel target = $region3
  $region8: #{transformer_forward.41} parent=0 // loop_exit
    _

</llo_original>
